<compile_context>
chip_gen: v6e
topology: v6e:2x2x1
jax: 0.10.0
libtpu: 0.0.40
codegen_flags: <defaults>
</compile_context>

<pallas_src>
import math

import jax
import jax.numpy as jnp
from jax.experimental import pallas as pl
from jax.experimental.pallas import tpu as pltpu

# ---- hyperparameters mirroring the PyTorch module ----
MAX_SEQUENCE_LENGTH = 800
INPUT_DIM = 4
HIDDEN_DIM = 128
NUM_HEADS = 4
NUM_LAYERS = 2
NUM_CLASSES = 2
DIM_FEEDFORWARD = 2048          # nn.TransformerEncoderLayer default
LN_EPS = 1e-5                   # nn.LayerNorm default
HEAD_DIM = HIDDEN_DIM // NUM_HEADS
FF_CHUNK = 512                  # FFN hidden-dim chunk size (static unrolled loop)


def _layer_norm(x, gamma, beta):
    mu = jnp.mean(x, axis=-1, keepdims=True)
    xc = x - mu
    var = jnp.mean(xc * xc, axis=-1, keepdims=True)
    return xc * jax.lax.rsqrt(var + LN_EPS) * gamma + beta


# --------------------------------------------------------------------------
# Fused kernel: grid axis = encoder layer; activation carried in VMEM scratch.
# --------------------------------------------------------------------------
def fused_kernel(x_ref, t2v_w_ref, t2v_b_ref, t2v_w0_ref, t2v_b0_ref,
                 emb_w0_ref, emb_w1_ref, emb_b_ref, pos_ref,
                 seg_ref, segt_ref,
                 fc1_w_ref, fc1_b_ref, fc2_w_ref, fc2_b_ref,
                 win_ref, bin_ref, wout_ref, bout_ref,
                 ln1_g_ref, ln1_b_ref, ff1_w_ref, ff1_b_ref,
                 ff2_w_ref, ff2_b_ref, ln2_g_ref, ln2_b_ref,
                 out_ref, h_ref):
    layer = pl.program_id(0)
    B, S, D = x_ref.shape
    H = h_ref.shape[-1]

    # ---- Time2Vec + embedding Linear + positional encoding (first step only) ----
    @pl.when(layer == 0)
    def _embed():
        x = x_ref[...].reshape(B * S, D)
        # v1 = sin(x @ w + b);  v0 = w0 * x + b0 (elementwise, scalar b0)
        v1 = jnp.sin(jnp.dot(x, t2v_w_ref[...],
                             preferred_element_type=jnp.float32) + t2v_b_ref[...])
        v0 = t2v_w0_ref[...] * x + t2v_b0_ref[...]
        # embedding(concat([v0, v1], -1)) without materializing the concat.
        emb = (jnp.dot(v0, emb_w0_ref[...], preferred_element_type=jnp.float32)
               + jnp.dot(v1, emb_w1_ref[...], preferred_element_type=jnp.float32)
               + emb_b_ref[...])
        pos = pos_ref[...]                                   # (S, H)
        emb = emb + jnp.concatenate([pos] * B, axis=0)       # b-major (row = b*S + s)
        h_ref[...] = emb

    # ---- encoder layer `layer` (weights for this layer chosen by index_map) ----
    hf = h_ref[...]                                          # (B*S, H) f32
    hb = hf.astype(jnp.bfloat16)
    qkv = (jnp.dot(hb, win_ref[...], preferred_element_type=jnp.float32)
           + bin_ref[...])                                   # (B*S, 3H)

    q = qkv[:, 0 * H:1 * H]
    k = qkv[:, 1 * H:2 * H]
    v = qkv[:, 2 * H:3 * H]

    seg = seg_ref[...]                                       # (H, NH), 1/sqrt(HD) folded
    segt = segt_ref[...]                                     # (NH, H)

    # Attention mixes along the B axis (length B) independently for each s.
    # All (b, c) score pairs in ONE MXU push: rows for pair (b,c) = q_b * k_c.
    lhs = jnp.concatenate(
        [q[b * S:(b + 1) * S, :] * k[c * S:(c + 1) * S, :]
         for b in range(B) for c in range(B)], axis=0)       # (B*B*S, H)
    scores = jnp.dot(lhs, seg, preferred_element_type=jnp.float32)   # (B*B*S, NH)

    # softmax over c (length B) per target b, per head
    probs = []
    for b in range(B):
        scr = [scores[(b * B + c) * S:(b * B + c + 1) * S, :] for c in range(B)]
        m = scr[0]
        for c in range(1, B):
            m = jnp.maximum(m, scr[c])
        es = [jnp.exp(scr[c] - m) for c in range(B)]
        den = es[0]
        for c in range(1, B):
            den = den + es[c]
        inv = pl.reciprocal(den, approx=False)
        probs.extend([es[c] * inv for c in range(B)])
    p_all = jnp.concatenate(probs, axis=0)                   # (B*B*S, NH)
    # expand per-head prob to per-lane with ONE MXU push
    p_exp = jnp.dot(p_all, segt, preferred_element_type=jnp.float32)  # (B*B*S, H)

    ctxs = []
    for b in range(B):
        t = p_exp[(b * B) * S:(b * B + 1) * S, :] * v[0:S, :]
        for c in range(1, B):
            t = t + (p_exp[(b * B + c) * S:(b * B + c + 1) * S, :]
                     * v[c * S:(c + 1) * S, :])
        ctxs.append(t)                                       # (S, H)
    attn = jnp.concatenate(ctxs, axis=0)                     # (B*S, H)

    # out projection (full 128-wide contraction); bias added once.
    attn = (jnp.dot(attn.astype(jnp.bfloat16), wout_ref[...],
                    preferred_element_type=jnp.float32) + bout_ref[...])

    # residual + LayerNorm 1 (dropout1 identity in eval)
    x1 = _layer_norm(hf + attn, ln1_g_ref[...], ln1_b_ref[...])

    # feed-forward: linear2(relu(linear1(x))), chunked over DIM_FEEDFORWARD so the
    # live intermediate stays small (no (rows, 2048) f32 slab).
    x1b = x1.astype(jnp.bfloat16)
    ff = jnp.zeros_like(x1)                                  # (B*S, H) f32 accumulator
    for c in range(DIM_FEEDFORWARD // FF_CHUNK):
        lo = c * FF_CHUNK
        h1 = (jnp.dot(x1b, ff1_w_ref[:, lo:lo + FF_CHUNK],
                      preferred_element_type=jnp.float32)
              + ff1_b_ref[:, lo:lo + FF_CHUNK])
        h1 = jnp.maximum(h1, 0.0).astype(jnp.bfloat16)
        ff = ff + jnp.dot(h1, ff2_w_ref[lo:lo + FF_CHUNK, :],
                          preferred_element_type=jnp.float32)
    ff = ff + ff2_b_ref[...]

    # residual + LayerNorm 2 (dropout2 identity in eval)
    x2 = _layer_norm(x1 + ff, ln2_g_ref[...], ln2_b_ref[...])
    h_ref[...] = x2

    # ---- mean over original seq axis + fc1 + fc2 (last step only) ----
    @pl.when(layer == pl.num_programs(0) - 1)
    def _head():
        means = [jnp.mean(x2[b * S:(b + 1) * S, :], axis=0, keepdims=True)
                 for b in range(B)]
        m = jnp.concatenate(means, axis=0)                   # (B, H)
        # fc1 is zero-padded to 128 output lanes -> lane-dense; dropout is identity.
        z = (jnp.dot(m, fc1_w_ref[...], preferred_element_type=jnp.float32)
             + fc1_b_ref[...])
        # fc2 weights are zero-padded to 128 output lanes; wrapper slices 2 classes.
        out_ref[...] = (jnp.dot(z, fc2_w_ref[...],
                                preferred_element_type=jnp.float32) + fc2_b_ref[...])


# --------------------------------------------------------------------------
# BlockSpec helpers
# --------------------------------------------------------------------------
def _const_spec(shape):
    nd = len(shape)
    return pl.BlockSpec(tuple(shape), lambda l, _nd=nd: (0,) * _nd)


def _layer_spec(shape):
    # leading layer dim squeezed; block index follows the grid index l
    nd = len(shape)
    return pl.BlockSpec((None,) + tuple(shape), lambda l, _nd=nd: (l,) + (0,) * _nd)


# --------------------------------------------------------------------------
# Forward wrapper: one fused pallas_call for the whole model
# --------------------------------------------------------------------------
@jax.jit
def t2vbert_forward(x, pp):
    B, S, _ = x.shape
    H = HIDDEN_DIM
    pos = pp['pos'][0, :S, :]                               # (S, H)

    # Constant head-block indicator matrices (hoisted out of the kernel body).
    lane = jnp.arange(H, dtype=jnp.int32)
    head = jnp.arange(NUM_HEADS, dtype=jnp.int32)
    seg = jnp.where((lane[:, None] // HEAD_DIM) == head[None, :],
                    1.0 / math.sqrt(HEAD_DIM), 0.0).astype(jnp.float32)   # (H, NH)
    segt = jnp.where((lane[None, :] // HEAD_DIM) == head[:, None],
                     1.0, 0.0).astype(jnp.float32)                        # (NH, H)

    in_specs = [
        _const_spec((B, S, INPUT_DIM)),          # x
        _const_spec((INPUT_DIM, INPUT_DIM)),     # t2v_w
        _const_spec((1, INPUT_DIM)),             # t2v_b
        _const_spec((1, INPUT_DIM)),             # t2v_w0
        _const_spec((1, 1)),                     # t2v_b0
        _const_spec((INPUT_DIM, H)),             # emb_w0 (v0 rows)
        _const_spec((INPUT_DIM, H)),             # emb_w1 (v1 rows)
        _const_spec((1, H)),                     # emb_b
        _const_spec((S, H)),                     # pos
        _const_spec((H, NUM_HEADS)),             # seg
        _const_spec((NUM_HEADS, H)),             # seg_t
        _const_spec((H, H)),                     # fc1_w (lane-padded)
        _const_spec((1, H)),                     # fc1_b (lane-padded)
        _const_spec((H, H)),                     # fc2_w (lane-padded)
        _const_spec((1, H)),                     # fc2_b (lane-padded)
        _layer_spec((H, 3 * H)),                 # win   (bf16)
        _layer_spec((1, 3 * H)),                 # bin
        _layer_spec((H, H)),                     # wout  (bf16)
        _layer_spec((1, H)),                     # bout
        _layer_spec((1, H)),                     # ln1_g
        _layer_spec((1, H)),                     # ln1_b
        _layer_spec((H, DIM_FEEDFORWARD)),       # ff1_w (bf16)
        _layer_spec((1, DIM_FEEDFORWARD)),       # ff1_b
        _layer_spec((DIM_FEEDFORWARD, H)),       # ff2_w (bf16)
        _layer_spec((1, H)),                     # ff2_b
        _layer_spec((1, H)),                     # ln2_g
        _layer_spec((1, H)),                     # ln2_b
    ]

    out = pl.pallas_call(
        fused_kernel,
        out_shape=jax.ShapeDtypeStruct((B, H), jnp.float32),
        grid_spec=pltpu.PrefetchScalarGridSpec(
            num_scalar_prefetch=0,
            grid=(NUM_LAYERS,),
            in_specs=in_specs,
            out_specs=pl.BlockSpec((B, H), lambda l: (0, 0)),
            scratch_shapes=[pltpu.VMEM((B * S, H), jnp.float32)]),
        compiler_params=pltpu.CompilerParams(
            dimension_semantics=("arbitrary",)),   # sequential carry across layers
    )(x, pp['t2v_w'], pp['t2v_b'], pp['t2v_w0'], pp['t2v_b0'],
      pp['emb_w0'], pp['emb_w1'], pp['emb_b'], pos, seg, segt,
      pp['fc1_w'], pp['fc1_b'], pp['fc2_w'], pp['fc2_b'],
      pp['win'], pp['bin'], pp['wout'], pp['bout'],
      pp['ln1_g'], pp['ln1_b'], pp['ff1_w'], pp['ff1_b'],
      pp['ff2_w'], pp['ff2_b'], pp['ln2_g'], pp['ln2_b'])
    return out[:, :NUM_CLASSES]


# --------------------------------------------------------------------------
# Deterministic parameter initialization (shapes match the PyTorch module;
# Linear weights are stored pre-transposed as (in, out)).
# --------------------------------------------------------------------------
def init_params(key):
    keys = iter(jax.random.split(key, 40))

    def rnorm(shape, scale=1.0):
        return (scale * jax.random.normal(next(keys), shape)).astype(jnp.float32)

    p = {
        't2v_w0': rnorm((1, INPUT_DIM)),
        't2v_w':  rnorm((INPUT_DIM, INPUT_DIM)),
        't2v_b':  rnorm((1, INPUT_DIM)),
        't2v_b0': rnorm((1, 1)),
        'emb_w': rnorm((2 * INPUT_DIM, HIDDEN_DIM), 1.0 / math.sqrt(2 * INPUT_DIM)),
        'emb_b': rnorm((1, HIDDEN_DIM), 0.1),
        'pos': rnorm((1, MAX_SEQUENCE_LENGTH, HIDDEN_DIM)),
        'fc1_w': rnorm((HIDDEN_DIM, HIDDEN_DIM // 2), 1.0 / math.sqrt(HIDDEN_DIM)),
        'fc1_b': rnorm((1, HIDDEN_DIM // 2), 0.1),
        'fc2_w': rnorm((HIDDEN_DIM // 2, NUM_CLASSES), 1.0 / math.sqrt(HIDDEN_DIM // 2)),
        'fc2_b': rnorm((1, NUM_CLASSES), 0.1),
    }
    layers = []
    for _ in range(NUM_LAYERS):
        layers.append({
            'in_w':  rnorm((HIDDEN_DIM, 3 * HIDDEN_DIM), 1.0 / math.sqrt(HIDDEN_DIM)),
            'in_b':  rnorm((1, 3 * HIDDEN_DIM), 0.1),
            'out_w': rnorm((HIDDEN_DIM, HIDDEN_DIM), 1.0 / math.sqrt(HIDDEN_DIM)),
            'out_b': rnorm((1, HIDDEN_DIM), 0.1),
            'ln1_g': jnp.ones((1, HIDDEN_DIM), jnp.float32),
            'ln1_b': jnp.zeros((1, HIDDEN_DIM), jnp.float32),
            'ff1_w': rnorm((HIDDEN_DIM, DIM_FEEDFORWARD), 1.0 / math.sqrt(HIDDEN_DIM)),
            'ff1_b': rnorm((1, DIM_FEEDFORWARD), 0.1),
            'ff2_w': rnorm((DIM_FEEDFORWARD, HIDDEN_DIM), 1.0 / math.sqrt(DIM_FEEDFORWARD)),
            'ff2_b': rnorm((1, HIDDEN_DIM), 0.1),
            'ln2_g': jnp.ones((1, HIDDEN_DIM), jnp.float32),
            'ln2_b': jnp.zeros((1, HIDDEN_DIM), jnp.float32),
        })
    p['layers'] = layers
    return p


def pack_params(p):
    """Stack per-layer weights, cast large matmul weights to bf16, split emb_w,
    and lane-pad the head (fc1/fc2) to 128 output lanes.  Done once, outside jit."""
    H = HIDDEN_DIM

    def stack(name, dtype=jnp.float32):
        return jnp.stack([lp[name] for lp in p['layers']]).astype(dtype)

    fc1_w = jnp.zeros((H, H), jnp.float32).at[:, :H // 2].set(p['fc1_w'])
    fc1_b = jnp.zeros((1, H), jnp.float32).at[:, :H // 2].set(p['fc1_b'])
    fc2_w = jnp.zeros((H, H), jnp.float32).at[:H // 2, :NUM_CLASSES].set(p['fc2_w'])
    fc2_b = jnp.zeros((1, H), jnp.float32).at[:, :NUM_CLASSES].set(p['fc2_b'])

    return {
        't2v_w': p['t2v_w'], 't2v_b': p['t2v_b'],
        't2v_w0': p['t2v_w0'], 't2v_b0': p['t2v_b0'],
        'emb_w0': p['emb_w'][:INPUT_DIM], 'emb_w1': p['emb_w'][INPUT_DIM:],
        'emb_b': p['emb_b'], 'pos': p['pos'],
        'fc1_w': fc1_w, 'fc1_b': fc1_b,
        'fc2_w': fc2_w, 'fc2_b': fc2_b,
        'win': stack('in_w', jnp.bfloat16), 'bin': stack('in_b'),
        'wout': stack('out_w', jnp.bfloat16), 'bout': stack('out_b'),
        'ln1_g': stack('ln1_g'), 'ln1_b': stack('ln1_b'),
        'ff1_w': stack('ff1_w', jnp.bfloat16), 'ff1_b': stack('ff1_b'),
        'ff2_w': stack('ff2_w', jnp.bfloat16), 'ff2_b': stack('ff2_b'),
        'ln2_g': stack('ln2_g'), 'ln2_b': stack('ln2_b'),
    }


if __name__ == "__main__":
    key = jax.random.PRNGKey(0)
    pkey, xkey = jax.random.split(key)
    params = init_params(pkey)
    packed = pack_params(params)

    B, S = 2, 8
    x = jax.random.normal(xkey, (B, S, INPUT_DIM), dtype=jnp.float32)

    out = t2vbert_forward(x, packed)
    out = jax.block_until_ready(out)

    assert out.shape == (B, NUM_CLASSES), out.shape
    assert bool(jnp.all(jnp.isfinite(out)))
    # TODO(synk): dropout layers are implemented as eval-mode identities (no RNG dropout).
    print("KERNEL_OK")
</pallas_src>

<mosaic_0001>
module attributes {stable_mosaic.version = 11 : i64} {
  func.func @fused_kernel(%arg0: i32, %arg1: memref<2x8x4xf32, #tpu.memory_space<vmem>>, %arg2: memref<4x4xf32, #tpu.memory_space<vmem>>, %arg3: memref<1x4xf32, #tpu.memory_space<vmem>>, %arg4: memref<1x4xf32, #tpu.memory_space<vmem>>, %arg5: memref<1x1xf32, #tpu.memory_space<vmem>>, %arg6: memref<4x128xf32, #tpu.memory_space<vmem>>, %arg7: memref<4x128xf32, #tpu.memory_space<vmem>>, %arg8: memref<1x128xf32, #tpu.memory_space<vmem>>, %arg9: memref<8x128xf32, #tpu.memory_space<vmem>>, %arg10: memref<128x4xf32, #tpu.memory_space<vmem>>, %arg11: memref<4x128xf32, #tpu.memory_space<vmem>>, %arg12: memref<128x128xf32, #tpu.memory_space<vmem>>, %arg13: memref<1x128xf32, #tpu.memory_space<vmem>>, %arg14: memref<128x128xf32, #tpu.memory_space<vmem>>, %arg15: memref<1x128xf32, #tpu.memory_space<vmem>>, %arg16: memref<1x128x384xbf16, #tpu.memory_space<vmem>>, %arg17: memref<1x1x384xf32, #tpu.memory_space<vmem>>, %arg18: memref<1x128x128xbf16, #tpu.memory_space<vmem>>, %arg19: memref<1x1x128xf32, #tpu.memory_space<vmem>>, %arg20: memref<1x1x128xf32, #tpu.memory_space<vmem>>, %arg21: memref<1x1x128xf32, #tpu.memory_space<vmem>>, %arg22: memref<1x128x2048xbf16, #tpu.memory_space<vmem>>, %arg23: memref<1x1x2048xf32, #tpu.memory_space<vmem>>, %arg24: memref<1x2048x128xbf16, #tpu.memory_space<vmem>>, %arg25: memref<1x1x128xf32, #tpu.memory_space<vmem>>, %arg26: memref<1x1x128xf32, #tpu.memory_space<vmem>>, %arg27: memref<1x1x128xf32, #tpu.memory_space<vmem>>, %arg28: memref<2x128xf32, #tpu.memory_space<vmem>>, %arg29: memref<16x128xf32, #tpu.memory_space<vmem>>) attributes {dimension_semantics = [#tpu.dimension_semantics<arbitrary>], iteration_bounds = array<i64: 2>, scalar_prefetch = 0 : i64, scratch_operands = 1 : i64, tpu.core_type = #tpu.core_type<tc>, window_params = [{pipeline_mode = #tpu.pipeline_mode<synchronous>, transform_indices = @transform_0, window_bounds = array<i64: 2, 8, 4>}, {pipeline_mode = #tpu.pipeline_mode<synchronous>, transform_indices = @transform_1, window_bounds = array<i64: 4, 4>}, {pipeline_mode = #tpu.pipeline_mode<synchronous>, transform_indices = @transform_2, window_bounds = array<i64: 1, 4>}, {pipeline_mode = #tpu.pipeline_mode<synchronous>, transform_indices = @transform_3, window_bounds = array<i64: 1, 4>}, {pipeline_mode = #tpu.pipeline_mode<synchronous>, transform_indices = @transform_4, window_bounds = array<i64: 1, 1>}, {pipeline_mode = #tpu.pipeline_mode<synchronous>, transform_indices = @transform_5, window_bounds = array<i64: 4, 128>}, {pipeline_mode = #tpu.pipeline_mode<synchronous>, transform_indices = @transform_6, window_bounds = array<i64: 4, 128>}, {pipeline_mode = #tpu.pipeline_mode<synchronous>, transform_indices = @transform_7, window_bounds = array<i64: 1, 128>}, {pipeline_mode = #tpu.pipeline_mode<synchronous>, transform_indices = @transform_8, window_bounds = array<i64: 8, 128>}, {pipeline_mode = #tpu.pipeline_mode<synchronous>, transform_indices = @transform_9, window_bounds = array<i64: 128, 4>}, {pipeline_mode = #tpu.pipeline_mode<synchronous>, transform_indices = @transform_10, window_bounds = array<i64: 4, 128>}, {pipeline_mode = #tpu.pipeline_mode<synchronous>, transform_indices = @transform_11, window_bounds = array<i64: 128, 128>}, {pipeline_mode = #tpu.pipeline_mode<synchronous>, transform_indices = @transform_12, window_bounds = array<i64: 1, 128>}, {pipeline_mode = #tpu.pipeline_mode<synchronous>, transform_indices = @transform_13, window_bounds = array<i64: 128, 128>}, {pipeline_mode = #tpu.pipeline_mode<synchronous>, transform_indices = @transform_14, window_bounds = array<i64: 1, 128>}, {transform_indices = @transform_15, window_bounds = array<i64: 1, 128, 384>}, {transform_indices = @transform_16, window_bounds = array<i64: 1, 1, 384>}, {transform_indices = @transform_17, window_bounds = array<i64: 1, 128, 128>}, {transform_indices = @transform_18, window_bounds = array<i64: 1, 1, 128>}, {transform_indices = @transform_19, window_bounds = array<i64: 1, 1, 128>}, {transform_indices = @transform_20, window_bounds = array<i64: 1, 1, 128>}, {transform_indices = @transform_21, window_bounds = array<i64: 1, 128, 2048>}, {transform_indices = @transform_22, window_bounds = array<i64: 1, 1, 2048>}, {transform_indices = @transform_23, window_bounds = array<i64: 1, 2048, 128>}, {transform_indices = @transform_24, window_bounds = array<i64: 1, 1, 128>}, {transform_indices = @transform_25, window_bounds = array<i64: 1, 1, 128>}, {transform_indices = @transform_26, window_bounds = array<i64: 1, 1, 128>}, {pipeline_mode = #tpu.pipeline_mode<synchronous>, transform_indices = @transform_27, window_bounds = array<i64: 2, 128>}]} {
    %c0_i32 = arith.constant 0 : i32
    %0 = arith.cmpi eq, %arg0, %c0_i32 : i32
    %1 = arith.extui %0 : i1 to i32
    %c0_i32_0 = arith.constant 0 : i32
    %2 = arith.cmpi ne, %1, %c0_i32_0 : i32
    scf.if %2 {
      %c0_95 = arith.constant 0 : index
      %c0_96 = arith.constant 0 : index
      %c0_97 = arith.constant 0 : index
      %194 = vector.load %arg1[%c0_95, %c0_96, %c0_97] : memref<2x8x4xf32, #tpu.memory_space<vmem>>, vector<2x8x4xf32>
      %195 = vector.shape_cast %194 : vector<2x8x4xf32> to vector<16x4xf32>
      %c0_98 = arith.constant 0 : index
      %c0_99 = arith.constant 0 : index
      %196 = vector.load %arg2[%c0_98, %c0_99] : memref<4x4xf32, #tpu.memory_space<vmem>>, vector<4x4xf32>
      %cst_100 = arith.constant dense<0.000000e+00> : vector<16x4xf32>
      %197 = tpu.matmul %195, %196, %cst_100 {dimension_numbers = #tpu.dot_dimension_numbers<[1], [0], [0], [1], [0, 0, 1, 1], [], []>} : vector<16x4xf32>, vector<4x4xf32>, vector<16x4xf32> -> vector<16x4xf32>
      %c0_101 = arith.constant 0 : index
      %c0_102 = arith.constant 0 : index
      %198 = vector.load %arg3[%c0_101, %c0_102] : memref<1x4xf32, #tpu.memory_space<vmem>>, vector<1x4xf32>
      %199 = vector.broadcast %198 : vector<1x4xf32> to vector<16x4xf32>
      %200 = arith.addf %197, %199 : vector<16x4xf32>
      %201 = math.sin %200 : vector<16x4xf32>
      %c0_103 = arith.constant 0 : index
      %c0_104 = arith.constant 0 : index
      %202 = vector.load %arg4[%c0_103, %c0_104] : memref<1x4xf32, #tpu.memory_space<vmem>>, vector<1x4xf32>
      %203 = vector.broadcast %202 : vector<1x4xf32> to vector<16x4xf32>
      %204 = arith.mulf %203, %195 : vector<16x4xf32>
      %c0_105 = arith.constant 0 : index
      %c0_106 = arith.constant 0 : index
      %205 = vector.load %arg5[%c0_105, %c0_106] : memref<1x1xf32, #tpu.memory_space<vmem>>, vector<1x1xf32>
      %206 = vector.broadcast %205 : vector<1x1xf32> to vector<16x4xf32>
      %207 = arith.addf %204, %206 : vector<16x4xf32>
      %c0_107 = arith.constant 0 : index
      %c0_108 = arith.constant 0 : index
      %208 = vector.load %arg6[%c0_107, %c0_108] : memref<4x128xf32, #tpu.memory_space<vmem>>, vector<4x128xf32>
      %cst_109 = arith.constant dense<0.000000e+00> : vector<16x128xf32>
      %209 = tpu.matmul %207, %208, %cst_109 {dimension_numbers = #tpu.dot_dimension_numbers<[1], [0], [0], [1], [0, 0, 1, 1], [], []>} : vector<16x4xf32>, vector<4x128xf32>, vector<16x128xf32> -> vector<16x128xf32>
      %c0_110 = arith.constant 0 : index
      %c0_111 = arith.constant 0 : index
      %210 = vector.load %arg7[%c0_110, %c0_111] : memref<4x128xf32, #tpu.memory_space<vmem>>, vector<4x128xf32>
      %cst_112 = arith.constant dense<0.000000e+00> : vector<16x128xf32>
      %211 = tpu.matmul %201, %210, %cst_112 {dimension_numbers = #tpu.dot_dimension_numbers<[1], [0], [0], [1], [0, 0, 1, 1], [], []>} : vector<16x4xf32>, vector<4x128xf32>, vector<16x128xf32> -> vector<16x128xf32>
      %212 = arith.addf %209, %211 : vector<16x128xf32>
      %c0_113 = arith.constant 0 : index
      %c0_114 = arith.constant 0 : index
      %213 = vector.load %arg8[%c0_113, %c0_114] : memref<1x128xf32, #tpu.memory_space<vmem>>, vector<1x128xf32>
      %214 = vector.broadcast %213 : vector<1x128xf32> to vector<16x128xf32>
      %215 = arith.addf %212, %214 : vector<16x128xf32>
      %c0_115 = arith.constant 0 : index
      %c0_116 = arith.constant 0 : index
      %216 = vector.load %arg9[%c0_115, %c0_116] : memref<8x128xf32, #tpu.memory_space<vmem>>, vector<8x128xf32>
      %217 = tpu.concatenate %216, %216 in 0 : vector<8x128xf32>, vector<8x128xf32> -> vector<16x128xf32>
      %218 = arith.addf %215, %217 : vector<16x128xf32>
      %c0_117 = arith.constant 0 : index
      %c0_118 = arith.constant 0 : index
      %219 = vector.load %arg29[%c0_117, %c0_118] : memref<16x128xf32, #tpu.memory_space<vmem>>, vector<16x128xf32>
      tpu.vector_store %arg29[%c0_117, %c0_118], %218 {strides = array<i32>} : memref<16x128xf32, #tpu.memory_space<vmem>>, vector<16x128xf32>,
    } else {
    }
    %c0 = arith.constant 0 : index
    %c0_1 = arith.constant 0 : index
    %3 = vector.load %arg29[%c0, %c0_1] : memref<16x128xf32, #tpu.memory_space<vmem>>, vector<16x128xf32>
    %4 = arith.truncf %3 : vector<16x128xf32> to vector<16x128xbf16>
    %c0_2 = arith.constant 0 : index
    %c0_3 = arith.constant 0 : index
    %c0_4 = arith.constant 0 : index
    %5 = vector.load %arg16[%c0_2, %c0_3, %c0_4] : memref<1x128x384xbf16, #tpu.memory_space<vmem>>, vector<1x128x384xbf16>
    %6 = vector.shape_cast %5 : vector<1x128x384xbf16> to vector<128x384xbf16>
    %cst = arith.constant dense<0.000000e+00> : vector<16x384xf32>
    %7 = tpu.matmul %4, %6, %cst {dimension_numbers = #tpu.dot_dimension_numbers<[1], [0], [0], [1], [0, 0, 1, 1], [], []>} : vector<16x128xbf16>, vector<128x384xbf16>, vector<16x384xf32> -> vector<16x384xf32>
    %c0_5 = arith.constant 0 : index
    %c0_6 = arith.constant 0 : index
    %c0_7 = arith.constant 0 : index
    %8 = vector.load %arg17[%c0_5, %c0_6, %c0_7] : memref<1x1x384xf32, #tpu.memory_space<vmem>>, vector<1x1x384xf32>
    %9 = vector.shape_cast %8 : vector<1x1x384xf32> to vector<1x384xf32>
    %10 = vector.broadcast %9 : vector<1x384xf32> to vector<16x384xf32>
    %11 = arith.addf %7, %10 : vector<16x384xf32>
    %12 = vector.extract_strided_slice %11 {offsets = [0, 0], sizes = [16, 128], strides = [1, 1]} : vector<16x384xf32> to vector<16x128xf32>
    %13 = vector.extract_strided_slice %11 {offsets = [0, 128], sizes = [16, 128], strides = [1, 1]} : vector<16x384xf32> to vector<16x128xf32>
    %14 = vector.extract_strided_slice %11 {offsets = [0, 256], sizes = [16, 128], strides = [1, 1]} : vector<16x384xf32> to vector<16x128xf32>
    %c0_8 = arith.constant 0 : index
    %c0_9 = arith.constant 0 : index
    %15 = vector.load %arg10[%c0_8, %c0_9] : memref<128x4xf32, #tpu.memory_space<vmem>>, vector<128x4xf32>
    %c0_10 = arith.constant 0 : index
    %c0_11 = arith.constant 0 : index
    %16 = vector.load %arg11[%c0_10, %c0_11] : memref<4x128xf32, #tpu.memory_space<vmem>>, vector<4x128xf32>
    %17 = vector.extract_strided_slice %12 {offsets = [0, 0], sizes = [8, 128], strides = [1, 1]} : vector<16x128xf32> to vector<8x128xf32>
    %18 = vector.extract_strided_slice %13 {offsets = [0, 0], sizes = [8, 128], strides = [1, 1]} : vector<16x128xf32> to vector<8x128xf32>
    %19 = arith.mulf %17, %18 : vector<8x128xf32>
    %20 = vector.extract_strided_slice %12 {offsets = [0, 0], sizes = [8, 128], strides = [1, 1]} : vector<16x128xf32> to vector<8x128xf32>
    %21 = vector.extract_strided_slice %13 {offsets = [8, 0], sizes = [8, 128], strides = [1, 1]} : vector<16x128xf32> to vector<8x128xf32>
    %22 = arith.mulf %20, %21 : vector<8x128xf32>
    %23 = vector.extract_strided_slice %12 {offsets = [8, 0], sizes = [8, 128], strides = [1, 1]} : vector<16x128xf32> to vector<8x128xf32>
    %24 = vector.extract_strided_slice %13 {offsets = [0, 0], sizes = [8, 128], strides = [1, 1]} : vector<16x128xf32> to vector<8x128xf32>
    %25 = arith.mulf %23, %24 : vector<8x128xf32>
    %26 = vector.extract_strided_slice %12 {offsets = [8, 0], sizes = [8, 128], strides = [1, 1]} : vector<16x128xf32> to vector<8x128xf32>
    %27 = vector.extract_strided_slice %13 {offsets = [8, 0], sizes = [8, 128], strides = [1, 1]} : vector<16x128xf32> to vector<8x128xf32>
    %28 = arith.mulf %26, %27 : vector<8x128xf32>
    %29 = tpu.concatenate %19, %22, %25, %28 in 0 : vector<8x128xf32>, vector<8x128xf32>, vector<8x128xf32>, vector<8x128xf32> -> vector<32x128xf32>
    %cst_12 = arith.constant dense<0.000000e+00> : vector<32x4xf32>
    %30 = tpu.matmul %29, %15, %cst_12 {dimension_numbers = #tpu.dot_dimension_numbers<[1], [0], [0], [1], [0, 0, 1, 1], [], []>} : vector<32x128xf32>, vector<128x4xf32>, vector<32x4xf32> -> vector<32x4xf32>
    %31 = vector.extract_strided_slice %30 {offsets = [0, 0], sizes = [8, 4], strides = [1, 1]} : vector<32x4xf32> to vector<8x4xf32>
    %32 = vector.extract_strided_slice %30 {offsets = [8, 0], sizes = [8, 4], strides = [1, 1]} : vector<32x4xf32> to vector<8x4xf32>
    %33 = arith.maximumf %31, %32 : vector<8x4xf32>
    %34 = arith.subf %31, %33 : vector<8x4xf32>
    %35 = math.exp %34 : vector<8x4xf32>
    %36 = arith.subf %32, %33 : vector<8x4xf32>
    %37 = math.exp %36 : vector<8x4xf32>
    %38 = arith.addf %35, %37 : vector<8x4xf32>
    %39 = tpu.reciprocal %38 : vector<8x4xf32> -> vector<8x4xf32>
    %40 = arith.mulf %35, %39 : vector<8x4xf32>
    %41 = arith.mulf %37, %39 : vector<8x4xf32>
    %42 = vector.extract_strided_slice %30 {offsets = [16, 0], sizes = [8, 4], strides = [1, 1]} : vector<32x4xf32> to vector<8x4xf32>
    %43 = vector.extract_strided_slice %30 {offsets = [24, 0], sizes = [8, 4], strides = [1, 1]} : vector<32x4xf32> to vector<8x4xf32>
    %44 = arith.maximumf %42, %43 : vector<8x4xf32>
    %45 = arith.subf %42, %44 : vector<8x4xf32>
    %46 = math.exp %45 : vector<8x4xf32>
    %47 = arith.subf %43, %44 : vector<8x4xf32>
    %48 = math.exp %47 : vector<8x4xf32>
    %49 = arith.addf %46, %48 : vector<8x4xf32>
    %50 = tpu.reciprocal %49 : vector<8x4xf32> -> vector<8x4xf32>
    %51 = arith.mulf %46, %50 : vector<8x4xf32>
    %52 = arith.mulf %48, %50 : vector<8x4xf32>
    %53 = tpu.concatenate %40, %41, %51, %52 in 0 : vector<8x4xf32>, vector<8x4xf32>, vector<8x4xf32>, vector<8x4xf32> -> vector<32x4xf32>
    %cst_13 = arith.constant dense<0.000000e+00> : vector<32x128xf32>
    %54 = tpu.matmul %53, %16, %cst_13 {dimension_numbers = #tpu.dot_dimension_numbers<[1], [0], [0], [1], [0, 0, 1, 1], [], []>} : vector<32x4xf32>, vector<4x128xf32>, vector<32x128xf32> -> vector<32x128xf32>
    %55 = vector.extract_strided_slice %54 {offsets = [0, 0], sizes = [8, 128], strides = [1, 1]} : vector<32x128xf32> to vector<8x128xf32>
    %56 = vector.extract_strided_slice %14 {offsets = [0, 0], sizes = [8, 128], strides = [1, 1]} : vector<16x128xf32> to vector<8x128xf32>
    %57 = arith.mulf %55, %56 : vector<8x128xf32>
    %58 = vector.extract_strided_slice %54 {offsets = [8, 0], sizes = [8, 128], strides = [1, 1]} : vector<32x128xf32> to vector<8x128xf32>
    %59 = vector.extract_strided_slice %14 {offsets = [8, 0], sizes = [8, 128], strides = [1, 1]} : vector<16x128xf32> to vector<8x128xf32>
    %60 = arith.mulf %58, %59 : vector<8x128xf32>
    %61 = arith.addf %57, %60 : vector<8x128xf32>
    %62 = vector.extract_strided_slice %54 {offsets = [16, 0], sizes = [8, 128], strides = [1, 1]} : vector<32x128xf32> to vector<8x128xf32>
    %63 = vector.extract_strided_slice %14 {offsets = [0, 0], sizes = [8, 128], strides = [1, 1]} : vector<16x128xf32> to vector<8x128xf32>
    %64 = arith.mulf %62, %63 : vector<8x128xf32>
    %65 = vector.extract_strided_slice %54 {offsets = [24, 0], sizes = [8, 128], strides = [1, 1]} : vector<32x128xf32> to vector<8x128xf32>
    %66 = vector.extract_strided_slice %14 {offsets = [8, 0], sizes = [8, 128], strides = [1, 1]} : vector<16x128xf32> to vector<8x128xf32>
    %67 = arith.mulf %65, %66 : vector<8x128xf32>
    %68 = arith.addf %64, %67 : vector<8x128xf32>
    %69 = tpu.concatenate %61, %68 in 0 : vector<8x128xf32>, vector<8x128xf32> -> vector<16x128xf32>
    %70 = arith.truncf %69 : vector<16x128xf32> to vector<16x128xbf16>
    %c0_14 = arith.constant 0 : index
    %c0_15 = arith.constant 0 : index
    %c0_16 = arith.constant 0 : index
    %71 = vector.load %arg18[%c0_14, %c0_15, %c0_16] : memref<1x128x128xbf16, #tpu.memory_space<vmem>>, vector<1x128x128xbf16>
    %72 = vector.shape_cast %71 : vector<1x128x128xbf16> to vector<128x128xbf16>
    %cst_17 = arith.constant dense<0.000000e+00> : vector<16x128xf32>
    %73 = tpu.matmul %70, %72, %cst_17 {dimension_numbers = #tpu.dot_dimension_numbers<[1], [0], [0], [1], [0, 0, 1, 1], [], []>} : vector<16x128xbf16>, vector<128x128xbf16>, vector<16x128xf32> -> vector<16x128xf32>
    %c0_18 = arith.constant 0 : index
    %c0_19 = arith.constant 0 : index
    %c0_20 = arith.constant 0 : index
    %74 = vector.load %arg19[%c0_18, %c0_19, %c0_20] : memref<1x1x128xf32, #tpu.memory_space<vmem>>, vector<1x1x128xf32>
    %75 = vector.shape_cast %74 : vector<1x1x128xf32> to vector<1x128xf32>
    %76 = vector.broadcast %75 : vector<1x128xf32> to vector<16x128xf32>
    %77 = arith.addf %73, %76 : vector<16x128xf32>
    %78 = arith.addf %3, %77 : vector<16x128xf32>
    %c0_21 = arith.constant 0 : index
    %c0_22 = arith.constant 0 : index
    %c0_23 = arith.constant 0 : index
    %79 = vector.load %arg20[%c0_21, %c0_22, %c0_23] : memref<1x1x128xf32, #tpu.memory_space<vmem>>, vector<1x1x128xf32>
    %80 = vector.shape_cast %79 : vector<1x1x128xf32> to vector<1x128xf32>
    %c0_24 = arith.constant 0 : index
    %c0_25 = arith.constant 0 : index
    %c0_26 = arith.constant 0 : index
    %81 = vector.load %arg21[%c0_24, %c0_25, %c0_26] : memref<1x1x128xf32, #tpu.memory_space<vmem>>, vector<1x1x128xf32>
    %82 = vector.shape_cast %81 : vector<1x1x128xf32> to vector<1x128xf32>
    %cst_27 = arith.constant dense<0.000000e+00> : vector<16xf32>
    %83 = vector.multi_reduction <add>, %78, %cst_27 [1] : vector<16x128xf32> to vector<16xf32>
    %84 = vector.shape_cast %83 : vector<16xf32> to vector<16x1xf32>
    %cst_28 = arith.constant 1.280000e+02 : f32
    %85 = vector.broadcast %cst_28 : f32 to vector<16x1xf32>
    %86 = arith.divf %84, %85 : vector<16x1xf32>
    %87 = vector.broadcast %86 : vector<16x1xf32> to vector<16x128xf32>
    %88 = arith.subf %78, %87 : vector<16x128xf32>
    %89 = arith.mulf %88, %88 : vector<16x128xf32>
    %cst_29 = arith.constant dense<0.000000e+00> : vector<16xf32>
    %90 = vector.multi_reduction <add>, %89, %cst_29 [1] : vector<16x128xf32> to vector<16xf32>
    %91 = vector.shape_cast %90 : vector<16xf32> to vector<16x1xf32>
    %cst_30 = arith.constant 1.280000e+02 : f32
    %92 = vector.broadcast %cst_30 : f32 to vector<16x1xf32>
    %93 = arith.divf %91, %92 : vector<16x1xf32>
    %cst_31 = arith.constant 9.99999974E-6 : f32
    %94 = vector.broadcast %cst_31 : f32 to vector<16x1xf32>
    %95 = arith.addf %93, %94 : vector<16x1xf32>
    %96 = math.rsqrt %95 : vector<16x1xf32>
    %97 = vector.broadcast %96 : vector<16x1xf32> to vector<16x128xf32>
    %98 = arith.mulf %88, %97 : vector<16x128xf32>
    %99 = vector.broadcast %80 : vector<1x128xf32> to vector<16x128xf32>
    %100 = arith.mulf %98, %99 : vector<16x128xf32>
    %101 = vector.broadcast %82 : vector<1x128xf32> to vector<16x128xf32>
    %102 = arith.addf %100, %101 : vector<16x128xf32>
    %103 = arith.truncf %102 : vector<16x128xf32> to vector<16x128xbf16>
    %cst_32 = arith.constant 0.000000e+00 : f32
    %104 = vector.broadcast %cst_32 : f32 to vector<16x128xf32>
    %c0_33 = arith.constant 0 : index
    %c0_34 = arith.constant 0 : index
    %c0_35 = arith.constant 0 : index
    %105 = vector.load %arg22[%c0_33, %c0_34, %c0_35] : memref<1x128x2048xbf16, #tpu.memory_space<vmem>>, vector<1x128x512xbf16>
    %106 = vector.shape_cast %105 : vector<1x128x512xbf16> to vector<128x512xbf16>
    %cst_36 = arith.constant dense<0.000000e+00> : vector<16x512xf32>
    %107 = tpu.matmul %103, %106, %cst_36 {dimension_numbers = #tpu.dot_dimension_numbers<[1], [0], [0], [1], [0, 0, 1, 1], [], []>} : vector<16x128xbf16>, vector<128x512xbf16>, vector<16x512xf32> -> vector<16x512xf32>
    %c0_37 = arith.constant 0 : index
    %c0_38 = arith.constant 0 : index
    %c0_39 = arith.constant 0 : index
    %108 = vector.load %arg23[%c0_37, %c0_38, %c0_39] : memref<1x1x2048xf32, #tpu.memory_space<vmem>>, vector<1x1x512xf32>
    %109 = vector.shape_cast %108 : vector<1x1x512xf32> to vector<1x512xf32>
    %110 = vector.broadcast %109 : vector<1x512xf32> to vector<16x512xf32>
    %111 = arith.addf %107, %110 : vector<16x512xf32>
    %cst_40 = arith.constant 0.000000e+00 : f32
    %112 = vector.broadcast %cst_40 : f32 to vector<16x512xf32>
    %113 = arith.maximumf %111, %112 : vector<16x512xf32>
    %114 = arith.truncf %113 : vector<16x512xf32> to vector<16x512xbf16>
    %c0_41 = arith.constant 0 : index
    %c0_42 = arith.constant 0 : index
    %c0_43 = arith.constant 0 : index
    %115 = vector.load %arg24[%c0_41, %c0_42, %c0_43] : memref<1x2048x128xbf16, #tpu.memory_space<vmem>>, vector<1x512x128xbf16>
    %116 = vector.shape_cast %115 : vector<1x512x128xbf16> to vector<512x128xbf16>
    %cst_44 = arith.constant dense<0.000000e+00> : vector<16x128xf32>
    %117 = tpu.matmul %114, %116, %cst_44 {dimension_numbers = #tpu.dot_dimension_numbers<[1], [0], [0], [1], [0, 0, 1, 1], [], []>} : vector<16x512xbf16>, vector<512x128xbf16>, vector<16x128xf32> -> vector<16x128xf32>
    %118 = arith.addf %104, %117 : vector<16x128xf32>
    %c0_45 = arith.constant 0 : index
    %c0_46 = arith.constant 0 : index
    %c512 = arith.constant 512 : index
    %119 = vector.load %arg22[%c0_45, %c0_46, %c512] : memref<1x128x2048xbf16, #tpu.memory_space<vmem>>, vector<1x128x512xbf16>
    %120 = vector.shape_cast %119 : vector<1x128x512xbf16> to vector<128x512xbf16>
    %cst_47 = arith.constant dense<0.000000e+00> : vector<16x512xf32>
    %121 = tpu.matmul %103, %120, %cst_47 {dimension_numbers = #tpu.dot_dimension_numbers<[1], [0], [0], [1], [0, 0, 1, 1], [], []>} : vector<16x128xbf16>, vector<128x512xbf16>, vector<16x512xf32> -> vector<16x512xf32>
    %c0_48 = arith.constant 0 : index
    %c0_49 = arith.constant 0 : index
    %c512_50 = arith.constant 512 : index
    %122 = vector.load %arg23[%c0_48, %c0_49, %c512_50] : memref<1x1x2048xf32, #tpu.memory_space<vmem>>, vector<1x1x512xf32>
    %123 = vector.shape_cast %122 : vector<1x1x512xf32> to vector<1x512xf32>
    %124 = vector.broadcast %123 : vector<1x512xf32> to vector<16x512xf32>
    %125 = arith.addf %121, %124 : vector<16x512xf32>
    %cst_51 = arith.constant 0.000000e+00 : f32
    %126 = vector.broadcast %cst_51 : f32 to vector<16x512xf32>
    %127 = arith.maximumf %125, %126 : vector<16x512xf32>
    %128 = arith.truncf %127 : vector<16x512xf32> to vector<16x512xbf16>
    %c0_52 = arith.constant 0 : index
    %c512_53 = arith.constant 512 : index
    %c0_54 = arith.constant 0 : index
    %129 = vector.load %arg24[%c0_52, %c512_53, %c0_54] : memref<1x2048x128xbf16, #tpu.memory_space<vmem>>, vector<1x512x128xbf16>
    %130 = vector.shape_cast %129 : vector<1x512x128xbf16> to vector<512x128xbf16>
    %cst_55 = arith.constant dense<0.000000e+00> : vector<16x128xf32>
    %131 = tpu.matmul %128, %130, %cst_55 {dimension_numbers = #tpu.dot_dimension_numbers<[1], [0], [0], [1], [0, 0, 1, 1], [], []>} : vector<16x512xbf16>, vector<512x128xbf16>, vector<16x128xf32> -> vector<16x128xf32>
    %132 = arith.addf %118, %131 : vector<16x128xf32>
    %c0_56 = arith.constant 0 : index
    %c0_57 = arith.constant 0 : index
    %c1024 = arith.constant 1024 : index
    %133 = vector.load %arg22[%c0_56, %c0_57, %c1024] : memref<1x128x2048xbf16, #tpu.memory_space<vmem>>, vector<1x128x512xbf16>
    %134 = vector.shape_cast %133 : vector<1x128x512xbf16> to vector<128x512xbf16>
    %cst_58 = arith.constant dense<0.000000e+00> : vector<16x512xf32>
    %135 = tpu.matmul %103, %134, %cst_58 {dimension_numbers = #tpu.dot_dimension_numbers<[1], [0], [0], [1], [0, 0, 1, 1], [], []>} : vector<16x128xbf16>, vector<128x512xbf16>, vector<16x512xf32> -> vector<16x512xf32>
    %c0_59 = arith.constant 0 : index
    %c0_60 = arith.constant 0 : index
    %c1024_61 = arith.constant 1024 : index
    %136 = vector.load %arg23[%c0_59, %c0_60, %c1024_61] : memref<1x1x2048xf32, #tpu.memory_space<vmem>>, vector<1x1x512xf32>
    %137 = vector.shape_cast %136 : vector<1x1x512xf32> to vector<1x512xf32>
    %138 = vector.broadcast %137 : vector<1x512xf32> to vector<16x512xf32>
    %139 = arith.addf %135, %138 : vector<16x512xf32>
    %cst_62 = arith.constant 0.000000e+00 : f32
    %140 = vector.broadcast %cst_62 : f32 to vector<16x512xf32>
    %141 = arith.maximumf %139, %140 : vector<16x512xf32>
    %142 = arith.truncf %141 : vector<16x512xf32> to vector<16x512xbf16>
    %c0_63 = arith.constant 0 : index
    %c1024_64 = arith.constant 1024 : index
    %c0_65 = arith.constant 0 : index
    %143 = vector.load %arg24[%c0_63, %c1024_64, %c0_65] : memref<1x2048x128xbf16, #tpu.memory_space<vmem>>, vector<1x512x128xbf16>
    %144 = vector.shape_cast %143 : vector<1x512x128xbf16> to vector<512x128xbf16>
    %cst_66 = arith.constant dense<0.000000e+00> : vector<16x128xf32>
    %145 = tpu.matmul %142, %144, %cst_66 {dimension_numbers = #tpu.dot_dimension_numbers<[1], [0], [0], [1], [0, 0, 1, 1], [], []>} : vector<16x512xbf16>, vector<512x128xbf16>, vector<16x128xf32> -> vector<16x128xf32>
    %146 = arith.addf %132, %145 : vector<16x128xf32>
    %c0_67 = arith.constant 0 : index
    %c0_68 = arith.constant 0 : index
    %c1536 = arith.constant 1536 : index
    %147 = vector.load %arg22[%c0_67, %c0_68, %c1536] : memref<1x128x2048xbf16, #tpu.memory_space<vmem>>, vector<1x128x512xbf16>
    %148 = vector.shape_cast %147 : vector<1x128x512xbf16> to vector<128x512xbf16>
    %cst_69 = arith.constant dense<0.000000e+00> : vector<16x512xf32>
    %149 = tpu.matmul %103, %148, %cst_69 {dimension_numbers = #tpu.dot_dimension_numbers<[1], [0], [0], [1], [0, 0, 1, 1], [], []>} : vector<16x128xbf16>, vector<128x512xbf16>, vector<16x512xf32> -> vector<16x512xf32>
    %c0_70 = arith.constant 0 : index
    %c0_71 = arith.constant 0 : index
    %c1536_72 = arith.constant 1536 : index
    %150 = vector.load %arg23[%c0_70, %c0_71, %c1536_72] : memref<1x1x2048xf32, #tpu.memory_space<vmem>>, vector<1x1x512xf32>
    %151 = vector.shape_cast %150 : vector<1x1x512xf32> to vector<1x512xf32>
    %152 = vector.broadcast %151 : vector<1x512xf32> to vector<16x512xf32>
    %153 = arith.addf %149, %152 : vector<16x512xf32>
    %cst_73 = arith.constant 0.000000e+00 : f32
    %154 = vector.broadcast %cst_73 : f32 to vector<16x512xf32>
    %155 = arith.maximumf %153, %154 : vector<16x512xf32>
    %156 = arith.truncf %155 : vector<16x512xf32> to vector<16x512xbf16>
    %c0_74 = arith.constant 0 : index
    %c1536_75 = arith.constant 1536 : index
    %c0_76 = arith.constant 0 : index
    %157 = vector.load %arg24[%c0_74, %c1536_75, %c0_76] : memref<1x2048x128xbf16, #tpu.memory_space<vmem>>, vector<1x512x128xbf16>
    %158 = vector.shape_cast %157 : vector<1x512x128xbf16> to vector<512x128xbf16>
    %cst_77 = arith.constant dense<0.000000e+00> : vector<16x128xf32>
    %159 = tpu.matmul %156, %158, %cst_77 {dimension_numbers = #tpu.dot_dimension_numbers<[1], [0], [0], [1], [0, 0, 1, 1], [], []>} : vector<16x512xbf16>, vector<512x128xbf16>, vector<16x128xf32> -> vector<16x128xf32>
    %160 = arith.addf %146, %159 : vector<16x128xf32>
    %c0_78 = arith.constant 0 : index
    %c0_79 = arith.constant 0 : index
    %c0_80 = arith.constant 0 : index
    %161 = vector.load %arg25[%c0_78, %c0_79, %c0_80] : memref<1x1x128xf32, #tpu.memory_space<vmem>>, vector<1x1x128xf32>
    %162 = vector.shape_cast %161 : vector<1x1x128xf32> to vector<1x128xf32>
    %163 = vector.broadcast %162 : vector<1x128xf32> to vector<16x128xf32>
    %164 = arith.addf %160, %163 : vector<16x128xf32>
    %165 = arith.addf %102, %164 : vector<16x128xf32>
    %c0_81 = arith.constant 0 : index
    %c0_82 = arith.constant 0 : index
    %c0_83 = arith.constant 0 : index
    %166 = vector.load %arg26[%c0_81, %c0_82, %c0_83] : memref<1x1x128xf32, #tpu.memory_space<vmem>>, vector<1x1x128xf32>
    %167 = vector.shape_cast %166 : vector<1x1x128xf32> to vector<1x128xf32>
    %c0_84 = arith.constant 0 : index
    %c0_85 = arith.constant 0 : index
    %c0_86 = arith.constant 0 : index
    %168 = vector.load %arg27[%c0_84, %c0_85, %c0_86] : memref<1x1x128xf32, #tpu.memory_space<vmem>>, vector<1x1x128xf32>
    %169 = vector.shape_cast %168 : vector<1x1x128xf32> to vector<1x128xf32>
    %cst_87 = arith.constant dense<0.000000e+00> : vector<16xf32>
    %170 = vector.multi_reduction <add>, %165, %cst_87 [1] : vector<16x128xf32> to vector<16xf32>
    %171 = vector.shape_cast %170 : vector<16xf32> to vector<16x1xf32>
    %cst_88 = arith.constant 1.280000e+02 : f32
    %172 = vector.broadcast %cst_88 : f32 to vector<16x1xf32>
    %173 = arith.divf %171, %172 : vector<16x1xf32>
    %174 = vector.broadcast %173 : vector<16x1xf32> to vector<16x128xf32>
    %175 = arith.subf %165, %174 : vector<16x128xf32>
    %176 = arith.mulf %175, %175 : vector<16x128xf32>
    %cst_89 = arith.constant dense<0.000000e+00> : vector<16xf32>
    %177 = vector.multi_reduction <add>, %176, %cst_89 [1] : vector<16x128xf32> to vector<16xf32>
    %178 = vector.shape_cast %177 : vector<16xf32> to vector<16x1xf32>
    %cst_90 = arith.constant 1.280000e+02 : f32
    %179 = vector.broadcast %cst_90 : f32 to vector<16x1xf32>
    %180 = arith.divf %178, %179 : vector<16x1xf32>
    %cst_91 = arith.constant 9.99999974E-6 : f32
    %181 = vector.broadcast %cst_91 : f32 to vector<16x1xf32>
    %182 = arith.addf %180, %181 : vector<16x1xf32>
    %183 = math.rsqrt %182 : vector<16x1xf32>
    %184 = vector.broadcast %183 : vector<16x1xf32> to vector<16x128xf32>
    %185 = arith.mulf %175, %184 : vector<16x128xf32>
    %186 = vector.broadcast %167 : vector<1x128xf32> to vector<16x128xf32>
    %187 = arith.mulf %185, %186 : vector<16x128xf32>
    %188 = vector.broadcast %169 : vector<1x128xf32> to vector<16x128xf32>
    %189 = arith.addf %187, %188 : vector<16x128xf32>
    %c0_92 = arith.constant 0 : index
    %c0_93 = arith.constant 0 : index
    %190 = vector.load %arg29[%c0_92, %c0_93] : memref<16x128xf32, #tpu.memory_space<vmem>>, vector<16x128xf32>
    tpu.vector_store %arg29[%c0_92, %c0_93], %189 {strides = array<i32>} : memref<16x128xf32, #tpu.memory_space<vmem>>, vector<16x128xf32>,
    %c1_i32 = arith.constant 1 : i32
    %191 = arith.cmpi eq, %arg0, %c1_i32 : i32
    %192 = arith.extui %191 : i1 to i32
    %c0_i32_94 = arith.constant 0 : i32
    %193 = arith.cmpi ne, %192, %c0_i32_94 : i32
    scf.if %193 {
      %194 = vector.extract_strided_slice %189 {offsets = [0, 0], sizes = [8, 128], strides = [1, 1]} : vector<16x128xf32> to vector<8x128xf32>
      %cst_95 = arith.constant dense<0.000000e+00> : vector<128xf32>
      %195 = vector.multi_reduction <add>, %194, %cst_95 [0] : vector<8x128xf32> to vector<128xf32>
      %196 = vector.shape_cast %195 : vector<128xf32> to vector<1x128xf32>
      %cst_96 = arith.constant 8.000000e+00 : f32
      %197 = vector.broadcast %cst_96 : f32 to vector<1x128xf32>
      %198 = arith.divf %196, %197 : vector<1x128xf32>
      %199 = vector.extract_strided_slice %189 {offsets = [8, 0], sizes = [8, 128], strides = [1, 1]} : vector<16x128xf32> to vector<8x128xf32>
      %cst_97 = arith.constant dense<0.000000e+00> : vector<128xf32>
      %200 = vector.multi_reduction <add>, %199, %cst_97 [0] : vector<8x128xf32> to vector<128xf32>
      %201 = vector.shape_cast %200 : vector<128xf32> to vector<1x128xf32>
      %cst_98 = arith.constant 8.000000e+00 : f32
      %202 = vector.broadcast %cst_98 : f32 to vector<1x128xf32>
      %203 = arith.divf %201, %202 : vector<1x128xf32>
      %204 = tpu.concatenate %198, %203 in 0 : vector<1x128xf32>, vector<1x128xf32> -> vector<2x128xf32>
      %c0_99 = arith.constant 0 : index
      %c0_100 = arith.constant 0 : index
      %205 = vector.load %arg12[%c0_99, %c0_100] : memref<128x128xf32, #tpu.memory_space<vmem>>, vector<128x128xf32>
      %cst_101 = arith.constant dense<0.000000e+00> : vector<2x128xf32>
      %206 = tpu.matmul %204, %205, %cst_101 {dimension_numbers = #tpu.dot_dimension_numbers<[1], [0], [0], [1], [0, 0, 1, 1], [], []>} : vector<2x128xf32>, vector<128x128xf32>, vector<2x128xf32> -> vector<2x128xf32>
      %c0_102 = arith.constant 0 : index
      %c0_103 = arith.constant 0 : index
      %207 = vector.load %arg13[%c0_102, %c0_103] : memref<1x128xf32, #tpu.memory_space<vmem>>, vector<1x128xf32>
      %208 = vector.broadcast %207 : vector<1x128xf32> to vector<2x128xf32>
      %209 = arith.addf %206, %208 : vector<2x128xf32>
      %c0_104 = arith.constant 0 : index
      %c0_105 = arith.constant 0 : index
      %210 = vector.load %arg14[%c0_104, %c0_105] : memref<128x128xf32, #tpu.memory_space<vmem>>, vector<128x128xf32>
      %cst_106 = arith.constant dense<0.000000e+00> : vector<2x128xf32>
      %211 = tpu.matmul %209, %210, %cst_106 {dimension_numbers = #tpu.dot_dimension_numbers<[1], [0], [0], [1], [0, 0, 1, 1], [], []>} : vector<2x128xf32>, vector<128x128xf32>, vector<2x128xf32> -> vector<2x128xf32>
      %c0_107 = arith.constant 0 : index
      %c0_108 = arith.constant 0 : index
      %212 = vector.load %arg15[%c0_107, %c0_108] : memref<1x128xf32, #tpu.memory_space<vmem>>, vector<1x128xf32>
      %213 = vector.broadcast %212 : vector<1x128xf32> to vector<2x128xf32>
      %214 = arith.addf %211, %213 : vector<2x128xf32>
      %c0_109 = arith.constant 0 : index
      %c0_110 = arith.constant 0 : index
      %215 = vector.load %arg28[%c0_109, %c0_110] : memref<2x128xf32, #tpu.memory_space<vmem>>, vector<2x128xf32>
      tpu.vector_store %arg28[%c0_109, %c0_110], %214 {strides = array<i32>} : memref<2x128xf32, #tpu.memory_space<vmem>>, vector<2x128xf32>,
    } else {
    }
    return
  }
  func.func @transform_0(%arg0: i32) -> (i32, i32, i32) {
    %c0_i32 = arith.constant 0 : i32
    %c0_i32_0 = arith.constant 0 : i32
    %c0_i32_1 = arith.constant 0 : i32
    %c0_i32_2 = arith.constant 0 : i32
    return %c0_i32, %c0_i32_0, %c0_i32_1 : i32, i32, i32
  }
  func.func @transform_1(%arg0: i32) -> (i32, i32) {
    %c0_i32 = arith.constant 0 : i32
    %c0_i32_0 = arith.constant 0 : i32
    %c0_i32_1 = arith.constant 0 : i32
    return %c0_i32, %c0_i32_0 : i32, i32
  }
  func.func @transform_2(%arg0: i32) -> (i32, i32) {
    %c0_i32 = arith.constant 0 : i32
    %c0_i32_0 = arith.constant 0 : i32
    %c0_i32_1 = arith.constant 0 : i32
    return %c0_i32, %c0_i32_0 : i32, i32
  }
  func.func @transform_3(%arg0: i32) -> (i32, i32) {
    %c0_i32 = arith.constant 0 : i32
    %c0_i32_0 = arith.constant 0 : i32
    %c0_i32_1 = arith.constant 0 : i32
    return %c0_i32, %c0_i32_0 : i32, i32
  }
  func.func @transform_4(%arg0: i32) -> (i32, i32) {
    %c0_i32 = arith.constant 0 : i32
    %c0_i32_0 = arith.constant 0 : i32
    %c0_i32_1 = arith.constant 0 : i32
    return %c0_i32, %c0_i32_0 : i32, i32
  }
  func.func @transform_5(%arg0: i32) -> (i32, i32) {
    %c0_i32 = arith.constant 0 : i32
    %c0_i32_0 = arith.constant 0 : i32
    %c0_i32_1 = arith.constant 0 : i32
    return %c0_i32, %c0_i32_0 : i32, i32
  }
  func.func @transform_6(%arg0: i32) -> (i32, i32) {
    %c0_i32 = arith.constant 0 : i32
    %c0_i32_0 = arith.constant 0 : i32
    %c0_i32_1 = arith.constant 0 : i32
    return %c0_i32, %c0_i32_0 : i32, i32
  }
  func.func @transform_7(%arg0: i32) -> (i32, i32) {
    %c0_i32 = arith.constant 0 : i32
    %c0_i32_0 = arith.constant 0 : i32
    %c0_i32_1 = arith.constant 0 : i32
    return %c0_i32, %c0_i32_0 : i32, i32
  }
  func.func @transform_8(%arg0: i32) -> (i32, i32) {
    %c0_i32 = arith.constant 0 : i32
    %c0_i32_0 = arith.constant 0 : i32
    %c0_i32_1 = arith.constant 0 : i32
    return %c0_i32, %c0_i32_0 : i32, i32
  }
  func.func @transform_9(%arg0: i32) -> (i32, i32) {
    %c0_i32 = arith.constant 0 : i32
    %c0_i32_0 = arith.constant 0 : i32
    %c0_i32_1 = arith.constant 0 : i32
    return %c0_i32, %c0_i32_0 : i32, i32
  }
  func.func @transform_10(%arg0: i32) -> (i32, i32) {
    %c0_i32 = arith.constant 0 : i32
    %c0_i32_0 = arith.constant 0 : i32
    %c0_i32_1 = arith.constant 0 : i32
    return %c0_i32, %c0_i32_0 : i32, i32
  }
  func.func @transform_11(%arg0: i32) -> (i32, i32) {
    %c0_i32 = arith.constant 0 : i32
    %c0_i32_0 = arith.constant 0 : i32
    %c0_i32_1 = arith.constant 0 : i32
    return %c0_i32, %c0_i32_0 : i32, i32
  }
  func.func @transform_12(%arg0: i32) -> (i32, i32) {
    %c0_i32 = arith.constant 0 : i32
    %c0_i32_0 = arith.constant 0 : i32
    %c0_i32_1 = arith.constant 0 : i32
    return %c0_i32, %c0_i32_0 : i32, i32
  }
  func.func @transform_13(%arg0: i32) -> (i32, i32) {
    %c0_i32 = arith.constant 0 : i32
    %c0_i32_0 = arith.constant 0 : i32
    %c0_i32_1 = arith.constant 0 : i32
    return %c0_i32, %c0_i32_0 : i32, i32
  }
  func.func @transform_14(%arg0: i32) -> (i32, i32) {
    %c0_i32 = arith.constant 0 : i32
    %c0_i32_0 = arith.constant 0 : i32
    %c0_i32_1 = arith.constant 0 : i32
    return %c0_i32, %c0_i32_0 : i32, i32
  }
  func.func @transform_15(%arg0: i32) -> (i32, i32, i32) {
    %c0_i32 = arith.constant 0 : i32
    %c0_i32_0 = arith.constant 0 : i32
    %c0_i32_1 = arith.constant 0 : i32
    return %arg0, %c0_i32, %c0_i32_0 : i32, i32, i32
  }
  func.func @transform_16(%arg0: i32) -> (i32, i32, i32) {
    %c0_i32 = arith.constant 0 : i32
    %c0_i32_0 = arith.constant 0 : i32
    %c0_i32_1 = arith.constant 0 : i32
    return %arg0, %c0_i32, %c0_i32_0 : i32, i32, i32
  }
  func.func @transform_17(%arg0: i32) -> (i32, i32, i32) {
    %c0_i32 = arith.constant 0 : i32
    %c0_i32_0 = arith.constant 0 : i32
    %c0_i32_1 = arith.constant 0 : i32
    return %arg0, %c0_i32, %c0_i32_0 : i32, i32, i32
  }
  func.func @transform_18(%arg0: i32) -> (i32, i32, i32) {
    %c0_i32 = arith.constant 0 : i32
    %c0_i32_0 = arith.constant 0 : i32
    %c0_i32_1 = arith.constant 0 : i32
    return %arg0, %c0_i32, %c0_i32_0 : i32, i32, i32
  }
  func.func @transform_19(%arg0: i32) -> (i32, i32, i32) {
    %c0_i32 = arith.constant 0 : i32
    %c0_i32_0 = arith.constant 0 : i32
    %c0_i32_1 = arith.constant 0 : i32
    return %arg0, %c0_i32, %c0_i32_0 : i32, i32, i32
  }
  func.func @transform_20(%arg0: i32) -> (i32, i32, i32) {
    %c0_i32 = arith.constant 0 : i32
    %c0_i32_0 = arith.constant 0 : i32
    %c0_i32_1 = arith.constant 0 : i32
    return %arg0, %c0_i32, %c0_i32_0 : i32, i32, i32
  }
  func.func @transform_21(%arg0: i32) -> (i32, i32, i32) {
    %c0_i32 = arith.constant 0 : i32
    %c0_i32_0 = arith.constant 0 : i32
    %c0_i32_1 = arith.constant 0 : i32
    return %arg0, %c0_i32, %c0_i32_0 : i32, i32, i32
  }
  func.func @transform_22(%arg0: i32) -> (i32, i32, i32) {
    %c0_i32 = arith.constant 0 : i32
    %c0_i32_0 = arith.constant 0 : i32
    %c0_i32_1 = arith.constant 0 : i32
    return %arg0, %c0_i32, %c0_i32_0 : i32, i32, i32
  }
  func.func @transform_23(%arg0: i32) -> (i32, i32, i32) {
    %c0_i32 = arith.constant 0 : i32
    %c0_i32_0 = arith.constant 0 : i32
    %c0_i32_1 = arith.constant 0 : i32
    return %arg0, %c0_i32, %c0_i32_0 : i32, i32, i32
  }
  func.func @transform_24(%arg0: i32) -> (i32, i32, i32) {
    %c0_i32 = arith.constant 0 : i32
    %c0_i32_0 = arith.constant 0 : i32
    %c0_i32_1 = arith.constant 0 : i32
    return %arg0, %c0_i32, %c0_i32_0 : i32, i32, i32
  }
  func.func @transform_25(%arg0: i32) -> (i32, i32, i32) {
    %c0_i32 = arith.constant 0 : i32
    %c0_i32_0 = arith.constant 0 : i32
    %c0_i32_1 = arith.constant 0 : i32
    return %arg0, %c0_i32, %c0_i32_0 : i32, i32, i32
  }
  func.func @transform_26(%arg0: i32) -> (i32, i32, i32) {
    %c0_i32 = arith.constant 0 : i32
    %c0_i32_0 = arith.constant 0 : i32
    %c0_i32_1 = arith.constant 0 : i32
    return %arg0, %c0_i32, %c0_i32_0 : i32, i32, i32
  }
  func.func @transform_27(%arg0: i32) -> (i32, i32) {
    %c0_i32 = arith.constant 0 : i32
    %c0_i32_0 = arith.constant 0 : i32
    %c0_i32_1 = arith.constant 0 : i32
    return %c0_i32, %c0_i32_0 : i32, i32
  }
}

</mosaic_0001>

<llo_original>
// kernel: t2vbert_forward.1
$region0: #{t2vbert_forward.1}
  #allocation0 [shape = 'u32[]', space=smem, size = 0x4, offset = 0x4, fixed_abs, tag = 'smem constant byte address 0x4 - core index']
  #allocation1 [shape = 'u32[144,128]{1,0:T(1,128)}', space=vmem, size = 0x12000, scoped, tag = 'internal scratch']
  #allocation2 [shape = 'f32[16,128]{1,0:T(8,128)}', space=vmem, size = 0x2000, scoped, tag = 'scratch operand']
  #allocation3 [shape = 'f32[1,1]{1,0:T(1,128)S(1)}', space=vmem, size = 0x200, scoped, tag = 'scoped memory for t2vbert_forward.1']
  %s0 = inlined_call_operand.vmem [shape: f32[2,8,4], index: 0, kind: input, shape index: {}]
  %s1 = inlined_call_operand.vmem [shape: f32[4,4], index: 1, kind: input, shape index: {}]
  %s2 = inlined_call_operand.vmem [shape: f32[1,4], index: 2, kind: input, shape index: {}]
  %s3 = inlined_call_operand.vmem [shape: f32[1,4], index: 3, kind: input, shape index: {}]
  %s4 = inlined_call_operand.<no memory space> [shape: f32[1,1], index: 4, kind: input, shape index: {}]
  %s5 = inlined_call_operand.vmem [shape: f32[4,128], index: 5, kind: input, shape index: {}]
  %s6 = inlined_call_operand.vmem [shape: f32[4,128], index: 6, kind: input, shape index: {}]
  %s7 = inlined_call_operand.hbm [shape: f32[1,128], index: 7, kind: input, shape index: {}]
  %s8 = inlined_call_operand.vmem [shape: f32[8,128], index: 8, kind: input, shape index: {}]
  %s9 = inlined_call_operand.vmem [shape: f32[128,4], index: 9, kind: input, shape index: {}]
  %s10 = inlined_call_operand.vmem [shape: f32[4,128], index: 10, kind: input, shape index: {}]
  %s11 = inlined_call_operand.vmem [shape: f32[128,128], index: 11, kind: input, shape index: {}]
  %s12 = inlined_call_operand.hbm [shape: f32[1,128], index: 12, kind: input, shape index: {}]
  %s13 = inlined_call_operand.hbm [shape: f32[128,128], index: 13, kind: input, shape index: {}]
  %s14 = inlined_call_operand.hbm [shape: f32[1,128], index: 14, kind: input, shape index: {}]
  %s15 = inlined_call_operand.hbm [shape: bf16[2,128,384], index: 15, kind: input, shape index: {}]
  %s16 = inlined_call_operand.vmem [shape: f32[2,1,384], index: 16, kind: input, shape index: {}]
  %s17 = inlined_call_operand.hbm [shape: bf16[2,128,128], index: 17, kind: input, shape index: {}]
  %s18 = inlined_call_operand.vmem [shape: f32[2,1,128], index: 18, kind: input, shape index: {}]
  %s19 = inlined_call_operand.vmem [shape: f32[2,1,128], index: 19, kind: input, shape index: {}]
  %s20 = inlined_call_operand.vmem [shape: f32[2,1,128], index: 20, kind: input, shape index: {}]
  %s21 = inlined_call_operand.hbm [shape: bf16[2,128,2048], index: 21, kind: input, shape index: {}]
  %s22 = inlined_call_operand.vmem [shape: f32[2,1,2048], index: 22, kind: input, shape index: {}]
  %s23 = inlined_call_operand.hbm [shape: bf16[2,2048,128], index: 23, kind: input, shape index: {}]
  %s24 = inlined_call_operand.vmem [shape: f32[2,1,128], index: 24, kind: input, shape index: {}]
  %s25 = inlined_call_operand.vmem [shape: f32[2,1,128], index: 25, kind: input, shape index: {}]
  %s26 = inlined_call_operand.vmem [shape: f32[2,1,128], index: 26, kind: input, shape index: {}]
  %s27 = inlined_call_operand.hbm [shape: f32[2,128], index: 27, kind: output, shape index: {}]
  %s28 = sld [smem:[#allocation0]]
  $region181: #{t2vbert_forward.1} parent=0
    _
  %s30 = ssub.s32 1, %s28
  %s31 = scalar_select 0, %s30, %s28
  %v32 = vstv %s4
  %33 = vst [vmem:[#allocation3] sm:$0x1] %v32
  $region1: #{t2vbert_forward.1} parent=0
    #allocation4 [shape = 'u8[512]{0}', space=vmem, size = 0x400, scoped, tag = 'input window, operand 7, single buffered']
    #allocation5 [shape = 's32[2]{0}', space=sflag, size = 0x8, scoped, tag = 'scoped memory for t2vbert_forward.1']
    #allocation6 [shape = 's32[2]{0}', space=sflag, size = 0x8, scoped, tag = 'scoped memory for t2vbert_forward.1']
    #allocation7 [shape = 'u8[512]{0}', space=vmem, size = 0x400, scoped, tag = 'input window, operand 12, single buffered']
    #allocation8 [shape = 's32[1]{0}', space=sflag, size = 0x4, scoped, tag = 'scoped memory for t2vbert_forward.1']
    #allocation9 [shape = 'u8[65536]{0}', space=vmem, size = 0x10000, scoped, tag = 'input window, operand 13, single buffered']
    #allocation10 [shape = 'u8[512]{0}', space=vmem, size = 0x400, scoped, tag = 'input window, operand 14, single buffered']
    #allocation11 [shape = 's32[1]{0}', space=sflag, size = 0x4, scoped, tag = 'scoped memory for t2vbert_forward.1']
    #allocation12 [shape = 'u8[196608]{0}', space=vmem, size = 0x30000, scoped, tag = 'input window, operand 15']
    #allocation13 [shape = 'u8[65536]{0}', space=vmem, size = 0x10000, scoped, tag = 'input window, operand 17']
    #allocation14 [shape = 'u8[1048576]{0}', space=vmem, size = 0x100000, scoped, tag = 'input window, operand 21']
    #allocation15 [shape = 'u8[1048576]{0}', space=vmem, size = 0x100000, scoped, tag = 'input window, operand 23']
    #allocation16 [shape = 'u8[1024]{0}', space=vmem, size = 0x400, scoped, tag = 'output window, operand 0, single buffered']
    %34 = vsyncpa [#allocation5], 0
    %35 = vsyncpa [#allocation8], 0
    %36 = vsyncpa [#allocation11], 0
    %37 = vsyncpa [#allocation6], 0
    loop: start=0, step=1, limit=4
    $region2: #{t2vbert_forward.1} parent=1 // loop_pre_header
      _
    $region3: #{t2vbert_forward.1} parent=1 // loop_header
      %s39 = sphi 0, %s43
      %p40 = scmp.ge.s32.totalorder %s39, 4
      %s47 = sphi 0, %s47
      %s49 = sphi 0, %s47
      %s50 = sphi 0, %s49
      %s64 = sphi 0, %s50
      %s68 = sphi 0, %s68
      %s70 = sphi 0, %s68
      %s71 = sphi 0, %s70
      %s85 = sphi 0, %s71
      %s89 = sphi 0, %s89
      %s91 = sphi 0, %s89
      %s92 = sphi 0, %s91
      %s106 = sphi 0, %s92
      %s110 = sphi 0, %s110
      %s112 = sphi 0, %s110
      %s113 = sphi 0, %s112
      %s127 = sphi 0, %s113
      %s131 = sphi 0, %s131
      %s133 = sphi 0, %s131
      %s134 = sphi 0, %s133
      %s148 = sphi 0, %s134
      %s152 = sphi 0, %s152
      %s154 = sphi 0, %s152
      %s155 = sphi 0, %s154
      %s169 = sphi 0, %s155
      %s173 = sphi 0, %s173
      %s175 = sphi 0, %s173
      %s176 = sphi 0, %s175
      %s190 = sphi 0, %s176
      %s194 = sphi 0, %s194
      %s196 = sphi 0, %s194
      %s197 = sphi 0, %s196
      %s211 = sphi 0, %s197
      %s215 = sphi 0, %s215
      %s217 = sphi 0, %s215
      %s218 = sphi 0, %s217
      %s232 = sphi 0, %s218
      %s236 = sphi 0, %s236
      %s238 = sphi 0, %s236
      %s239 = sphi 0, %s238
      %s253 = sphi 0, %s239
      %s257 = sphi 0, %s257
      %s259 = sphi 0, %s257
      %s260 = sphi 0, %s259
      %s274 = sphi 0, %s260
      %s278 = sphi 0, %s278
      %s280 = sphi 0, %s278
      %s281 = sphi 0, %s280
      %s295 = sphi 0, %s281
      %s299 = sphi 0, %s299
      %s301 = sphi 0, %s299
      %s302 = sphi 0, %s301
      %s316 = sphi 0, %s302
      %s320 = sphi 0, %s320
      %s322 = sphi 0, %s320
      %s323 = sphi 0, %s322
      %s337 = sphi 0, %s323
      %s341 = sphi 0, %s341
      %s343 = sphi 0, %s341
      %s344 = sphi 0, %s343
      %s358 = sphi 0, %s344
      %s364 = sphi 0, %s366
      %s367 = sphi 0, %s364
      %s368 = sphi 0, %s367
      %s384 = sphi 0, %s368
      %s390 = sphi 0, %s392
      %s393 = sphi 0, %s390
      %s394 = sphi 0, %s393
      %s410 = sphi 0, %s394
      %s416 = sphi 0, %s418
      %s419 = sphi 0, %s416
      %s420 = sphi 0, %s419
      %s436 = sphi 0, %s420
      %s442 = sphi 0, %s444
      %s445 = sphi 0, %s442
      %s446 = sphi 0, %s445
      %s462 = sphi 0, %s446
      %s468 = sphi 0, %s470
      %s471 = sphi 0, %s468
      %s472 = sphi 0, %s471
      %s488 = sphi 0, %s472
      %s494 = sphi 0, %s496
      %s497 = sphi 0, %s494
      %s498 = sphi 0, %s497
      %s514 = sphi 0, %s498
      %s520 = sphi 0, %s522
      %s523 = sphi 0, %s520
      %s524 = sphi 0, %s523
      %s540 = sphi 0, %s524
      %s546 = sphi 0, %s548
      %s549 = sphi 0, %s546
      %s550 = sphi 0, %s549
      %s566 = sphi 0, %s550
      %s572 = sphi 0, %s574
      %s575 = sphi 0, %s572
      %s576 = sphi 0, %s575
      %s592 = sphi 0, %s576
      %s598 = sphi 0, %s600
      %s601 = sphi 0, %s598
      %s602 = sphi 0, %s601
      %s618 = sphi 0, %s602
      %s624 = sphi 0, %s626
      %s627 = sphi 0, %s624
      %s628 = sphi 0, %s627
      %s644 = sphi 0, %s628
      %s650 = sphi 0, %s652
      %s653 = sphi 0, %s650
      %s654 = sphi 0, %s653
      %s670 = sphi 0, %s654
      %s674 = sphi 0, %s674
      %s676 = sphi 0, %s674
      %s677 = sphi 0, %s676
      %s691 = sphi 0, %s677
    $region4: #{t2vbert_forward.1} parent=1 // loop_header_branch
      %42 = sbr.rel (%p40) target = $region8
    $region5: #{t2vbert_forward.1} parent=1 // loop_body
      %s44 = ssub.s32 %s39, 1
      %s45 = ssub.s32 %s39, 2
      %s46 = sadd.s32 %s39, 1
      %s48 = sadd.s32 %s47, 1
      %p51 = scmp.eq.s32.totalorder %s39, 1
      %p52 = scmp.ne.s32.totalorder %s47, %s49
      %p53 = scmp.eq.s32.totalorder %s39, 0
      %p54 = por %p52, %p53
      %p55 = scmp.ne.s32.totalorder %s47, %s49
      %p56 = scmp.eq.s32.totalorder %s44, 1
      %p57 = por %p55, %p56
      %p58 = scmp.ne.s32.totalorder %s49, %s50
      %p59 = scmp.eq.s32.totalorder %s44, 0
      %p60 = por %p58, %p59
      %p61 = scmp.ne.s32.totalorder %s49, %s50
      %p62 = scmp.eq.s32.totalorder %s45, 1
      %p63 = por %p61, %p62
      %p65 = scmp.ne.s32.totalorder %s50, %s64
      %p66 = scmp.eq.s32.totalorder %s45, 0
      %p67 = por %p65, %p66
      %s69 = sadd.s32 %s68, 1
      %p72 = scmp.eq.s32.totalorder %s39, 1
      %p73 = scmp.ne.s32.totalorder %s68, %s70
      %p74 = scmp.eq.s32.totalorder %s39, 0
      %p75 = por %p73, %p74
      %p76 = scmp.ne.s32.totalorder %s68, %s70
      %p77 = scmp.eq.s32.totalorder %s44, 1
      %p78 = por %p76, %p77
      %p79 = scmp.ne.s32.totalorder %s70, %s71
      %p80 = scmp.eq.s32.totalorder %s44, 0
      %p81 = por %p79, %p80
      %p82 = scmp.ne.s32.totalorder %s70, %s71
      %p83 = scmp.eq.s32.totalorder %s45, 1
      %p84 = por %p82, %p83
      %p86 = scmp.ne.s32.totalorder %s71, %s85
      %p87 = scmp.eq.s32.totalorder %s45, 0
      %p88 = por %p86, %p87
      %s90 = sadd.s32 %s89, 1
      %p93 = scmp.eq.s32.totalorder %s39, 1
      %p94 = scmp.ne.s32.totalorder %s89, %s91
      %p95 = scmp.eq.s32.totalorder %s39, 0
      %p96 = por %p94, %p95
      %p97 = scmp.ne.s32.totalorder %s89, %s91
      %p98 = scmp.eq.s32.totalorder %s44, 1
      %p99 = por %p97, %p98
      %p100 = scmp.ne.s32.totalorder %s91, %s92
      %p101 = scmp.eq.s32.totalorder %s44, 0
      %p102 = por %p100, %p101
      %p103 = scmp.ne.s32.totalorder %s91, %s92
      %p104 = scmp.eq.s32.totalorder %s45, 1
      %p105 = por %p103, %p104
      %p107 = scmp.ne.s32.totalorder %s92, %s106
      %p108 = scmp.eq.s32.totalorder %s45, 0
      %p109 = por %p107, %p108
      %s111 = sadd.s32 %s110, 1
      %p114 = scmp.eq.s32.totalorder %s39, 1
      %p115 = scmp.ne.s32.totalorder %s110, %s112
      %p116 = scmp.eq.s32.totalorder %s39, 0
      %p117 = por %p115, %p116
      %p118 = scmp.ne.s32.totalorder %s110, %s112
      %p119 = scmp.eq.s32.totalorder %s44, 1
      %p120 = por %p118, %p119
      %p121 = scmp.ne.s32.totalorder %s112, %s113
      %p122 = scmp.eq.s32.totalorder %s44, 0
      %p123 = por %p121, %p122
      %p124 = scmp.ne.s32.totalorder %s112, %s113
      %p125 = scmp.eq.s32.totalorder %s45, 1
      %p126 = por %p124, %p125
      %p128 = scmp.ne.s32.totalorder %s113, %s127
      %p129 = scmp.eq.s32.totalorder %s45, 0
      %p130 = por %p128, %p129
      %s132 = sadd.s32 %s131, 1
      %p135 = scmp.eq.s32.totalorder %s39, 1
      %p136 = scmp.ne.s32.totalorder %s131, %s133
      %p137 = scmp.eq.s32.totalorder %s39, 0
      %p138 = por %p136, %p137
      %p139 = scmp.ne.s32.totalorder %s131, %s133
      %p140 = scmp.eq.s32.totalorder %s44, 1
      %p141 = por %p139, %p140
      %p142 = scmp.ne.s32.totalorder %s133, %s134
      %p143 = scmp.eq.s32.totalorder %s44, 0
      %p144 = por %p142, %p143
      %p145 = scmp.ne.s32.totalorder %s133, %s134
      %p146 = scmp.eq.s32.totalorder %s45, 1
      %p147 = por %p145, %p146
      %p149 = scmp.ne.s32.totalorder %s134, %s148
      %p150 = scmp.eq.s32.totalorder %s45, 0
      %p151 = por %p149, %p150
      %s153 = sadd.s32 %s152, 1
      %p156 = scmp.eq.s32.totalorder %s39, 1
      %p157 = scmp.ne.s32.totalorder %s152, %s154
      %p158 = scmp.eq.s32.totalorder %s39, 0
      %p159 = por %p157, %p158
      %p160 = scmp.ne.s32.totalorder %s152, %s154
      %p161 = scmp.eq.s32.totalorder %s44, 1
      %p162 = por %p160, %p161
      %p163 = scmp.ne.s32.totalorder %s154, %s155
      %p164 = scmp.eq.s32.totalorder %s44, 0
      %p165 = por %p163, %p164
      %p166 = scmp.ne.s32.totalorder %s154, %s155
      %p167 = scmp.eq.s32.totalorder %s45, 1
      %p168 = por %p166, %p167
      %p170 = scmp.ne.s32.totalorder %s155, %s169
      %p171 = scmp.eq.s32.totalorder %s45, 0
      %p172 = por %p170, %p171
      %s174 = sadd.s32 %s173, 1
      %p177 = scmp.eq.s32.totalorder %s39, 1
      %p178 = scmp.ne.s32.totalorder %s173, %s175
      %p179 = scmp.eq.s32.totalorder %s39, 0
      %p180 = por %p178, %p179
      %p181 = scmp.ne.s32.totalorder %s173, %s175
      %p182 = scmp.eq.s32.totalorder %s44, 1
      %p183 = por %p181, %p182
      %p184 = scmp.ne.s32.totalorder %s175, %s176
      %p185 = scmp.eq.s32.totalorder %s44, 0
      %p186 = por %p184, %p185
      %p187 = scmp.ne.s32.totalorder %s175, %s176
      %p188 = scmp.eq.s32.totalorder %s45, 1
      %p189 = por %p187, %p188
      %p191 = scmp.ne.s32.totalorder %s176, %s190
      %p192 = scmp.eq.s32.totalorder %s45, 0
      %p193 = por %p191, %p192
      %s195 = sadd.s32 %s194, 1
      %p198 = scmp.eq.s32.totalorder %s39, 1
      %p199 = scmp.ne.s32.totalorder %s194, %s196
      %p200 = scmp.eq.s32.totalorder %s39, 0
      %p201 = por %p199, %p200
      %p202 = scmp.ne.s32.totalorder %s194, %s196
      %p203 = scmp.eq.s32.totalorder %s44, 1
      %p204 = por %p202, %p203
      %p205 = scmp.ne.s32.totalorder %s196, %s197
      %p206 = scmp.eq.s32.totalorder %s44, 0
      %p207 = por %p205, %p206
      %p208 = scmp.ne.s32.totalorder %s196, %s197
      %p209 = scmp.eq.s32.totalorder %s45, 1
      %p210 = por %p208, %p209
      %p212 = scmp.ne.s32.totalorder %s197, %s211
      %p213 = scmp.eq.s32.totalorder %s45, 0
      %p214 = por %p212, %p213
      %s216 = sadd.s32 %s215, 1
      %p219 = scmp.eq.s32.totalorder %s39, 1
      %p220 = scmp.ne.s32.totalorder %s215, %s217
      %p221 = scmp.eq.s32.totalorder %s39, 0
      %p222 = por %p220, %p221
      %p223 = scmp.ne.s32.totalorder %s215, %s217
      %p224 = scmp.eq.s32.totalorder %s44, 1
      %p225 = por %p223, %p224
      %p226 = scmp.ne.s32.totalorder %s217, %s218
      %p227 = scmp.eq.s32.totalorder %s44, 0
      %p228 = por %p226, %p227
      %p229 = scmp.ne.s32.totalorder %s217, %s218
      %p230 = scmp.eq.s32.totalorder %s45, 1
      %p231 = por %p229, %p230
      %p233 = scmp.ne.s32.totalorder %s218, %s232
      %p234 = scmp.eq.s32.totalorder %s45, 0
      %p235 = por %p233, %p234
      %s237 = sadd.s32 %s236, 1
      %p240 = scmp.eq.s32.totalorder %s39, 1
      %p241 = scmp.ne.s32.totalorder %s236, %s238
      %p242 = scmp.eq.s32.totalorder %s39, 0
      %p243 = por %p241, %p242
      %p244 = scmp.ne.s32.totalorder %s236, %s238
      %p245 = scmp.eq.s32.totalorder %s44, 1
      %p246 = por %p244, %p245
      %p247 = scmp.ne.s32.totalorder %s238, %s239
      %p248 = scmp.eq.s32.totalorder %s44, 0
      %p249 = por %p247, %p248
      %p250 = scmp.ne.s32.totalorder %s238, %s239
      %p251 = scmp.eq.s32.totalorder %s45, 1
      %p252 = por %p250, %p251
      %p254 = scmp.ne.s32.totalorder %s239, %s253
      %p255 = scmp.eq.s32.totalorder %s45, 0
      %p256 = por %p254, %p255
      %s258 = sadd.s32 %s257, 1
      %p261 = scmp.eq.s32.totalorder %s39, 1
      %p262 = scmp.ne.s32.totalorder %s257, %s259
      %p263 = scmp.eq.s32.totalorder %s39, 0
      %p264 = por %p262, %p263
      %p265 = scmp.ne.s32.totalorder %s257, %s259
      %p266 = scmp.eq.s32.totalorder %s44, 1
      %p267 = por %p265, %p266
      %p268 = scmp.ne.s32.totalorder %s259, %s260
      %p269 = scmp.eq.s32.totalorder %s44, 0
      %p270 = por %p268, %p269
      %p271 = scmp.ne.s32.totalorder %s259, %s260
      %p272 = scmp.eq.s32.totalorder %s45, 1
      %p273 = por %p271, %p272
      %p275 = scmp.ne.s32.totalorder %s260, %s274
      %p276 = scmp.eq.s32.totalorder %s45, 0
      %p277 = por %p275, %p276
      %s279 = sadd.s32 %s278, 1
      %p282 = scmp.eq.s32.totalorder %s39, 1
      %p283 = scmp.ne.s32.totalorder %s278, %s280
      %p284 = scmp.eq.s32.totalorder %s39, 0
      %p285 = por %p283, %p284
      %p286 = scmp.ne.s32.totalorder %s278, %s280
      %p287 = scmp.eq.s32.totalorder %s44, 1
      %p288 = por %p286, %p287
      %p289 = scmp.ne.s32.totalorder %s280, %s281
      %p290 = scmp.eq.s32.totalorder %s44, 0
      %p291 = por %p289, %p290
      %p292 = scmp.ne.s32.totalorder %s280, %s281
      %p293 = scmp.eq.s32.totalorder %s45, 1
      %p294 = por %p292, %p293
      %p296 = scmp.ne.s32.totalorder %s281, %s295
      %p297 = scmp.eq.s32.totalorder %s45, 0
      %p298 = por %p296, %p297
      %s300 = sadd.s32 %s299, 1
      %p303 = scmp.eq.s32.totalorder %s39, 1
      %p304 = scmp.ne.s32.totalorder %s299, %s301
      %p305 = scmp.eq.s32.totalorder %s39, 0
      %p306 = por %p304, %p305
      %p307 = scmp.ne.s32.totalorder %s299, %s301
      %p308 = scmp.eq.s32.totalorder %s44, 1
      %p309 = por %p307, %p308
      %p310 = scmp.ne.s32.totalorder %s301, %s302
      %p311 = scmp.eq.s32.totalorder %s44, 0
      %p312 = por %p310, %p311
      %p313 = scmp.ne.s32.totalorder %s301, %s302
      %p314 = scmp.eq.s32.totalorder %s45, 1
      %p315 = por %p313, %p314
      %p317 = scmp.ne.s32.totalorder %s302, %s316
      %p318 = scmp.eq.s32.totalorder %s45, 0
      %p319 = por %p317, %p318
      %s321 = sadd.s32 %s320, 1
      %p324 = scmp.eq.s32.totalorder %s39, 1
      %p325 = scmp.ne.s32.totalorder %s320, %s322
      %p326 = scmp.eq.s32.totalorder %s39, 0
      %p327 = por %p325, %p326
      %p328 = scmp.ne.s32.totalorder %s320, %s322
      %p329 = scmp.eq.s32.totalorder %s44, 1
      %p330 = por %p328, %p329
      %p331 = scmp.ne.s32.totalorder %s322, %s323
      %p332 = scmp.eq.s32.totalorder %s44, 0
      %p333 = por %p331, %p332
      %p334 = scmp.ne.s32.totalorder %s322, %s323
      %p335 = scmp.eq.s32.totalorder %s45, 1
      %p336 = por %p334, %p335
      %p338 = scmp.ne.s32.totalorder %s323, %s337
      %p339 = scmp.eq.s32.totalorder %s45, 0
      %p340 = por %p338, %p339
      %s342 = sadd.s32 %s341, 1
      %p345 = scmp.eq.s32.totalorder %s39, 1
      %p346 = scmp.ne.s32.totalorder %s341, %s343
      %p347 = scmp.eq.s32.totalorder %s39, 0
      %p348 = por %p346, %p347
      %p349 = scmp.ne.s32.totalorder %s341, %s343
      %p350 = scmp.eq.s32.totalorder %s44, 1
      %p351 = por %p349, %p350
      %p352 = scmp.ne.s32.totalorder %s343, %s344
      %p353 = scmp.eq.s32.totalorder %s44, 0
      %p354 = por %p352, %p353
      %p355 = scmp.ne.s32.totalorder %s343, %s344
      %p356 = scmp.eq.s32.totalorder %s45, 1
      %p357 = por %p355, %p356
      %p359 = scmp.ne.s32.totalorder %s344, %s358
      %p360 = scmp.eq.s32.totalorder %s45, 0
      %p361 = por %p359, %p360
      %s362 = ssub.s32 %s39, %s46
      %p363 = scmp.eq.s32.totalorder %s362, 0
      %s365 = sadd.s32 %s364, 1
      %s366 = scalar_select %p363, %s364, %s365
      %p369 = pneg %p363
      %p370 = scmp.eq.s32.totalorder %s39, 1
      %p371 = por %p369, %p370
      %p372 = scmp.ne.s32.totalorder %s364, %s367
      %p373 = scmp.eq.s32.totalorder %s39, 0
      %p374 = por %p372, %p373
      %p375 = scmp.ne.s32.totalorder %s364, %s367
      %p376 = scmp.eq.s32.totalorder %s44, 1
      %p377 = por %p375, %p376
      %p378 = scmp.ne.s32.totalorder %s367, %s368
      %p379 = scmp.eq.s32.totalorder %s44, 0
      %p380 = por %p378, %p379
      %p381 = scmp.ne.s32.totalorder %s367, %s368
      %p382 = scmp.eq.s32.totalorder %s45, 1
      %p383 = por %p381, %p382
      %p385 = scmp.ne.s32.totalorder %s368, %s384
      %p386 = scmp.eq.s32.totalorder %s45, 0
      %p387 = por %p385, %p386
      %s388 = ssub.s32 %s39, %s46
      %p389 = scmp.eq.s32.totalorder %s388, 0
      %s391 = sadd.s32 %s390, 1
      %s392 = scalar_select %p389, %s390, %s391
      %p395 = pneg %p389
      %p396 = scmp.eq.s32.totalorder %s39, 1
      %p397 = por %p395, %p396
      %p398 = scmp.ne.s32.totalorder %s390, %s393
      %p399 = scmp.eq.s32.totalorder %s39, 0
      %p400 = por %p398, %p399
      %p401 = scmp.ne.s32.totalorder %s390, %s393
      %p402 = scmp.eq.s32.totalorder %s44, 1
      %p403 = por %p401, %p402
      %p404 = scmp.ne.s32.totalorder %s393, %s394
      %p405 = scmp.eq.s32.totalorder %s44, 0
      %p406 = por %p404, %p405
      %p407 = scmp.ne.s32.totalorder %s393, %s394
      %p408 = scmp.eq.s32.totalorder %s45, 1
      %p409 = por %p407, %p408
      %p411 = scmp.ne.s32.totalorder %s394, %s410
      %p412 = scmp.eq.s32.totalorder %s45, 0
      %p413 = por %p411, %p412
      %s414 = ssub.s32 %s39, %s46
      %p415 = scmp.eq.s32.totalorder %s414, 0
      %s417 = sadd.s32 %s416, 1
      %s418 = scalar_select %p415, %s416, %s417
      %p421 = pneg %p415
      %p422 = scmp.eq.s32.totalorder %s39, 1
      %p423 = por %p421, %p422
      %p424 = scmp.ne.s32.totalorder %s416, %s419
      %p425 = scmp.eq.s32.totalorder %s39, 0
      %p426 = por %p424, %p425
      %p427 = scmp.ne.s32.totalorder %s416, %s419
      %p428 = scmp.eq.s32.totalorder %s44, 1
      %p429 = por %p427, %p428
      %p430 = scmp.ne.s32.totalorder %s419, %s420
      %p431 = scmp.eq.s32.totalorder %s44, 0
      %p432 = por %p430, %p431
      %p433 = scmp.ne.s32.totalorder %s419, %s420
      %p434 = scmp.eq.s32.totalorder %s45, 1
      %p435 = por %p433, %p434
      %p437 = scmp.ne.s32.totalorder %s420, %s436
      %p438 = scmp.eq.s32.totalorder %s45, 0
      %p439 = por %p437, %p438
      %s440 = ssub.s32 %s39, %s46
      %p441 = scmp.eq.s32.totalorder %s440, 0
      %s443 = sadd.s32 %s442, 1
      %s444 = scalar_select %p441, %s442, %s443
      %p447 = pneg %p441
      %p448 = scmp.eq.s32.totalorder %s39, 1
      %p449 = por %p447, %p448
      %p450 = scmp.ne.s32.totalorder %s442, %s445
      %p451 = scmp.eq.s32.totalorder %s39, 0
      %p452 = por %p450, %p451
      %p453 = scmp.ne.s32.totalorder %s442, %s445
      %p454 = scmp.eq.s32.totalorder %s44, 1
      %p455 = por %p453, %p454
      %p456 = scmp.ne.s32.totalorder %s445, %s446
      %p457 = scmp.eq.s32.totalorder %s44, 0
      %p458 = por %p456, %p457
      %p459 = scmp.ne.s32.totalorder %s445, %s446
      %p460 = scmp.eq.s32.totalorder %s45, 1
      %p461 = por %p459, %p460
      %p463 = scmp.ne.s32.totalorder %s446, %s462
      %p464 = scmp.eq.s32.totalorder %s45, 0
      %p465 = por %p463, %p464
      %s466 = ssub.s32 %s39, %s46
      %p467 = scmp.eq.s32.totalorder %s466, 0
      %s469 = sadd.s32 %s468, 1
      %s470 = scalar_select %p467, %s468, %s469
      %p473 = pneg %p467
      %p474 = scmp.eq.s32.totalorder %s39, 1
      %p475 = por %p473, %p474
      %p476 = scmp.ne.s32.totalorder %s468, %s471
      %p477 = scmp.eq.s32.totalorder %s39, 0
      %p478 = por %p476, %p477
      %p479 = scmp.ne.s32.totalorder %s468, %s471
      %p480 = scmp.eq.s32.totalorder %s44, 1
      %p481 = por %p479, %p480
      %p482 = scmp.ne.s32.totalorder %s471, %s472
      %p483 = scmp.eq.s32.totalorder %s44, 0
      %p484 = por %p482, %p483
      %p485 = scmp.ne.s32.totalorder %s471, %s472
      %p486 = scmp.eq.s32.totalorder %s45, 1
      %p487 = por %p485, %p486
      %p489 = scmp.ne.s32.totalorder %s472, %s488
      %p490 = scmp.eq.s32.totalorder %s45, 0
      %p491 = por %p489, %p490
      %s492 = ssub.s32 %s39, %s46
      %p493 = scmp.eq.s32.totalorder %s492, 0
      %s495 = sadd.s32 %s494, 1
      %s496 = scalar_select %p493, %s494, %s495
      %p499 = pneg %p493
      %p500 = scmp.eq.s32.totalorder %s39, 1
      %p501 = por %p499, %p500
      %p502 = scmp.ne.s32.totalorder %s494, %s497
      %p503 = scmp.eq.s32.totalorder %s39, 0
      %p504 = por %p502, %p503
      %p505 = scmp.ne.s32.totalorder %s494, %s497
      %p506 = scmp.eq.s32.totalorder %s44, 1
      %p507 = por %p505, %p506
      %p508 = scmp.ne.s32.totalorder %s497, %s498
      %p509 = scmp.eq.s32.totalorder %s44, 0
      %p510 = por %p508, %p509
      %p511 = scmp.ne.s32.totalorder %s497, %s498
      %p512 = scmp.eq.s32.totalorder %s45, 1
      %p513 = por %p511, %p512
      %p515 = scmp.ne.s32.totalorder %s498, %s514
      %p516 = scmp.eq.s32.totalorder %s45, 0
      %p517 = por %p515, %p516
      %s518 = ssub.s32 %s39, %s46
      %p519 = scmp.eq.s32.totalorder %s518, 0
      %s521 = sadd.s32 %s520, 1
      %s522 = scalar_select %p519, %s520, %s521
      %p525 = pneg %p519
      %p526 = scmp.eq.s32.totalorder %s39, 1
      %p527 = por %p525, %p526
      %p528 = scmp.ne.s32.totalorder %s520, %s523
      %p529 = scmp.eq.s32.totalorder %s39, 0
      %p530 = por %p528, %p529
      %p531 = scmp.ne.s32.totalorder %s520, %s523
      %p532 = scmp.eq.s32.totalorder %s44, 1
      %p533 = por %p531, %p532
      %p534 = scmp.ne.s32.totalorder %s523, %s524
      %p535 = scmp.eq.s32.totalorder %s44, 0
      %p536 = por %p534, %p535
      %p537 = scmp.ne.s32.totalorder %s523, %s524
      %p538 = scmp.eq.s32.totalorder %s45, 1
      %p539 = por %p537, %p538
      %p541 = scmp.ne.s32.totalorder %s524, %s540
      %p542 = scmp.eq.s32.totalorder %s45, 0
      %p543 = por %p541, %p542
      %s544 = ssub.s32 %s39, %s46
      %p545 = scmp.eq.s32.totalorder %s544, 0
      %s547 = sadd.s32 %s546, 1
      %s548 = scalar_select %p545, %s546, %s547
      %p551 = pneg %p545
      %p552 = scmp.eq.s32.totalorder %s39, 1
      %p553 = por %p551, %p552
      %p554 = scmp.ne.s32.totalorder %s546, %s549
      %p555 = scmp.eq.s32.totalorder %s39, 0
      %p556 = por %p554, %p555
      %p557 = scmp.ne.s32.totalorder %s546, %s549
      %p558 = scmp.eq.s32.totalorder %s44, 1
      %p559 = por %p557, %p558
      %p560 = scmp.ne.s32.totalorder %s549, %s550
      %p561 = scmp.eq.s32.totalorder %s44, 0
      %p562 = por %p560, %p561
      %p563 = scmp.ne.s32.totalorder %s549, %s550
      %p564 = scmp.eq.s32.totalorder %s45, 1
      %p565 = por %p563, %p564
      %p567 = scmp.ne.s32.totalorder %s550, %s566
      %p568 = scmp.eq.s32.totalorder %s45, 0
      %p569 = por %p567, %p568
      %s570 = ssub.s32 %s39, %s46
      %p571 = scmp.eq.s32.totalorder %s570, 0
      %s573 = sadd.s32 %s572, 1
      %s574 = scalar_select %p571, %s572, %s573
      %p577 = pneg %p571
      %p578 = scmp.eq.s32.totalorder %s39, 1
      %p579 = por %p577, %p578
      %p580 = scmp.ne.s32.totalorder %s572, %s575
      %p581 = scmp.eq.s32.totalorder %s39, 0
      %p582 = por %p580, %p581
      %p583 = scmp.ne.s32.totalorder %s572, %s575
      %p584 = scmp.eq.s32.totalorder %s44, 1
      %p585 = por %p583, %p584
      %p586 = scmp.ne.s32.totalorder %s575, %s576
      %p587 = scmp.eq.s32.totalorder %s44, 0
      %p588 = por %p586, %p587
      %p589 = scmp.ne.s32.totalorder %s575, %s576
      %p590 = scmp.eq.s32.totalorder %s45, 1
      %p591 = por %p589, %p590
      %p593 = scmp.ne.s32.totalorder %s576, %s592
      %p594 = scmp.eq.s32.totalorder %s45, 0
      %p595 = por %p593, %p594
      %s596 = ssub.s32 %s39, %s46
      %p597 = scmp.eq.s32.totalorder %s596, 0
      %s599 = sadd.s32 %s598, 1
      %s600 = scalar_select %p597, %s598, %s599
      %p603 = pneg %p597
      %p604 = scmp.eq.s32.totalorder %s39, 1
      %p605 = por %p603, %p604
      %p606 = scmp.ne.s32.totalorder %s598, %s601
      %p607 = scmp.eq.s32.totalorder %s39, 0
      %p608 = por %p606, %p607
      %p609 = scmp.ne.s32.totalorder %s598, %s601
      %p610 = scmp.eq.s32.totalorder %s44, 1
      %p611 = por %p609, %p610
      %p612 = scmp.ne.s32.totalorder %s601, %s602
      %p613 = scmp.eq.s32.totalorder %s44, 0
      %p614 = por %p612, %p613
      %p615 = scmp.ne.s32.totalorder %s601, %s602
      %p616 = scmp.eq.s32.totalorder %s45, 1
      %p617 = por %p615, %p616
      %p619 = scmp.ne.s32.totalorder %s602, %s618
      %p620 = scmp.eq.s32.totalorder %s45, 0
      %p621 = por %p619, %p620
      %s622 = ssub.s32 %s39, %s46
      %p623 = scmp.eq.s32.totalorder %s622, 0
      %s625 = sadd.s32 %s624, 1
      %s626 = scalar_select %p623, %s624, %s625
      %p629 = pneg %p623
      %p630 = scmp.eq.s32.totalorder %s39, 1
      %p631 = por %p629, %p630
      %p632 = scmp.ne.s32.totalorder %s624, %s627
      %p633 = scmp.eq.s32.totalorder %s39, 0
      %p634 = por %p632, %p633
      %p635 = scmp.ne.s32.totalorder %s624, %s627
      %p636 = scmp.eq.s32.totalorder %s44, 1
      %p637 = por %p635, %p636
      %p638 = scmp.ne.s32.totalorder %s627, %s628
      %p639 = scmp.eq.s32.totalorder %s44, 0
      %p640 = por %p638, %p639
      %p641 = scmp.ne.s32.totalorder %s627, %s628
      %p642 = scmp.eq.s32.totalorder %s45, 1
      %p643 = por %p641, %p642
      %p645 = scmp.ne.s32.totalorder %s628, %s644
      %p646 = scmp.eq.s32.totalorder %s45, 0
      %p647 = por %p645, %p646
      %s648 = ssub.s32 %s39, %s46
      %p649 = scmp.eq.s32.totalorder %s648, 0
      %s651 = sadd.s32 %s650, 1
      %s652 = scalar_select %p649, %s650, %s651
      %p655 = pneg %p649
      %p656 = scmp.eq.s32.totalorder %s39, 1
      %p657 = por %p655, %p656
      %p658 = scmp.ne.s32.totalorder %s650, %s653
      %p659 = scmp.eq.s32.totalorder %s39, 0
      %p660 = por %p658, %p659
      %p661 = scmp.ne.s32.totalorder %s650, %s653
      %p662 = scmp.eq.s32.totalorder %s44, 1
      %p663 = por %p661, %p662
      %p664 = scmp.ne.s32.totalorder %s653, %s654
      %p665 = scmp.eq.s32.totalorder %s44, 0
      %p666 = por %p664, %p665
      %p667 = scmp.ne.s32.totalorder %s653, %s654
      %p668 = scmp.eq.s32.totalorder %s45, 1
      %p669 = por %p667, %p668
      %p671 = scmp.ne.s32.totalorder %s654, %s670
      %p672 = scmp.eq.s32.totalorder %s45, 0
      %p673 = por %p671, %p672
      %s675 = sadd.s32 %s674, 1
      %p678 = scmp.eq.s32.totalorder %s39, 1
      %p679 = scmp.ne.s32.totalorder %s674, %s676
      %p680 = scmp.eq.s32.totalorder %s39, 0
      %p681 = por %p679, %p680
      %p682 = scmp.ne.s32.totalorder %s674, %s676
      %p683 = scmp.eq.s32.totalorder %s44, 1
      %p684 = por %p682, %p683
      %p685 = scmp.ne.s32.totalorder %s676, %s677
      %p686 = scmp.eq.s32.totalorder %s44, 0
      %p687 = por %p685, %p686
      %p688 = scmp.ne.s32.totalorder %s676, %s677
      %p689 = scmp.eq.s32.totalorder %s45, 1
      %p690 = por %p688, %p689
      %p692 = scmp.ne.s32.totalorder %s677, %s691
      %p693 = scmp.eq.s32.totalorder %s45, 0
      %p694 = por %p692, %p693
      %p695 = scmp.le.s32.totalorder 1, %s39
      %p696 = scmp.lt.s32.totalorder %s39, 3
      %p697 = pnand %p695, %p696
      %p698 = pneg %p697
      // Predicated region
      $region9: #{t2vbert_forward.1} parent=5 // pred_check
        _
      $region10: #{t2vbert_forward.1} parent=5 // pred_check_branch
        %700 = sbr.rel (%p697) target = $region12
      $region11: #{t2vbert_forward.1} parent=5 // pred_region
        %s701 = ssub.s32 %s39, 1
        // Predicated region
        $region13: #{t2vbert_forward.1} parent=11 // pred_check
          %p702 = pneg %p60
        $region14: #{t2vbert_forward.1} parent=11 // pred_check_branch
          %704 = sbr.rel (%p702) target = $region16
        $region15: #{t2vbert_forward.1} parent=11 // pred_region
          _
        $region16: #{t2vbert_forward.1} parent=11 // pred_fallthru
          _
        // Predicated region
        $region17: #{t2vbert_forward.1} parent=11 // pred_check
          %p705 = pneg %p81
        $region18: #{t2vbert_forward.1} parent=11 // pred_check_branch
          %707 = sbr.rel (%p705) target = $region20
        $region19: #{t2vbert_forward.1} parent=11 // pred_region
          _
        $region20: #{t2vbert_forward.1} parent=11 // pred_fallthru
          _
        // Predicated region
        $region21: #{t2vbert_forward.1} parent=11 // pred_check
          %p708 = pneg %p102
        $region22: #{t2vbert_forward.1} parent=11 // pred_check_branch
          %710 = sbr.rel (%p708) target = $region24
        $region23: #{t2vbert_forward.1} parent=11 // pred_region
          _
        $region24: #{t2vbert_forward.1} parent=11 // pred_fallthru
          _
        // Predicated region
        $region25: #{t2vbert_forward.1} parent=11 // pred_check
          %p711 = pneg %p123
        $region26: #{t2vbert_forward.1} parent=11 // pred_check_branch
          %713 = sbr.rel (%p711) target = $region28
        $region27: #{t2vbert_forward.1} parent=11 // pred_region
          _
        $region28: #{t2vbert_forward.1} parent=11 // pred_fallthru
          _
        // Predicated region
        $region29: #{t2vbert_forward.1} parent=11 // pred_check
          %p714 = pneg %p144
        $region30: #{t2vbert_forward.1} parent=11 // pred_check_branch
          %716 = sbr.rel (%p714) target = $region32
        $region31: #{t2vbert_forward.1} parent=11 // pred_region
          _
        $region32: #{t2vbert_forward.1} parent=11 // pred_fallthru
          _
        // Predicated region
        $region33: #{t2vbert_forward.1} parent=11 // pred_check
          %p717 = pneg %p165
        $region34: #{t2vbert_forward.1} parent=11 // pred_check_branch
          %719 = sbr.rel (%p717) target = $region36
        $region35: #{t2vbert_forward.1} parent=11 // pred_region
          _
        $region36: #{t2vbert_forward.1} parent=11 // pred_fallthru
          _
        // Predicated region
        $region37: #{t2vbert_forward.1} parent=11 // pred_check
          %p720 = pneg %p186
        $region38: #{t2vbert_forward.1} parent=11 // pred_check_branch
          %722 = sbr.rel (%p720) target = $region40
        $region39: #{t2vbert_forward.1} parent=11 // pred_region
          _
        $region40: #{t2vbert_forward.1} parent=11 // pred_fallthru
          _
        // Predicated region
        $region41: #{t2vbert_forward.1} parent=11 // pred_check
          %p723 = pneg %p207
        $region42: #{t2vbert_forward.1} parent=11 // pred_check_branch
          %725 = sbr.rel (%p723) target = $region44
        $region43: #{t2vbert_forward.1} parent=11 // pred_region
          %s727 = ssub.s32 16, 16
          %728 = vsyncadd [#allocation5], %s727
          %s730 = sshll.u32 [#allocation4], 4
          %s731 = int_to_ptr.vmem [resolvable:$true] %s730
          %733 = dma.hbm_to_vmem [thread:$0]  %s7, 16, %s731, [#allocation5]
        $region44: #{t2vbert_forward.1} parent=11 // pred_fallthru
          _
        // Predicated region
        $region45: #{t2vbert_forward.1} parent=11 // pred_check
          %p734 = pneg %p228
        $region46: #{t2vbert_forward.1} parent=11 // pred_check_branch
          %736 = sbr.rel (%p734) target = $region48
        $region47: #{t2vbert_forward.1} parent=11 // pred_region
          _
        $region48: #{t2vbert_forward.1} parent=11 // pred_fallthru
          _
        // Predicated region
        $region49: #{t2vbert_forward.1} parent=11 // pred_check
          %p737 = pneg %p249
        $region50: #{t2vbert_forward.1} parent=11 // pred_check_branch
          %739 = sbr.rel (%p737) target = $region52
        $region51: #{t2vbert_forward.1} parent=11 // pred_region
          _
        $region52: #{t2vbert_forward.1} parent=11 // pred_fallthru
          _
        // Predicated region
        $region53: #{t2vbert_forward.1} parent=11 // pred_check
          %p740 = pneg %p270
        $region54: #{t2vbert_forward.1} parent=11 // pred_check_branch
          %742 = sbr.rel (%p740) target = $region56
        $region55: #{t2vbert_forward.1} parent=11 // pred_region
          _
        $region56: #{t2vbert_forward.1} parent=11 // pred_fallthru
          _
        // Predicated region
        $region57: #{t2vbert_forward.1} parent=11 // pred_check
          %p743 = pneg %p291
        $region58: #{t2vbert_forward.1} parent=11 // pred_check_branch
          %745 = sbr.rel (%p743) target = $region60
        $region59: #{t2vbert_forward.1} parent=11 // pred_region
          _
        $region60: #{t2vbert_forward.1} parent=11 // pred_fallthru
          _
        // Predicated region
        $region61: #{t2vbert_forward.1} parent=11 // pred_check
          %p746 = pneg %p312
        $region62: #{t2vbert_forward.1} parent=11 // pred_check_branch
          %748 = sbr.rel (%p746) target = $region64
        $region63: #{t2vbert_forward.1} parent=11 // pred_region
          %s750 = ssub.s32 16, 16
          %751 = vsyncadd [#allocation8], %s750
          %s753 = sshll.u32 [#allocation7], 4
          %s754 = int_to_ptr.vmem [resolvable:$true] %s753
          %756 = dma.hbm_to_vmem [thread:$0]  %s12, 16, %s754, [#allocation8]
        $region64: #{t2vbert_forward.1} parent=11 // pred_fallthru
          _
        // Predicated region
        $region65: #{t2vbert_forward.1} parent=11 // pred_check
          %p757 = pneg %p333
        $region66: #{t2vbert_forward.1} parent=11 // pred_check_branch
          %759 = sbr.rel (%p757) target = $region68
        $region67: #{t2vbert_forward.1} parent=11 // pred_region
          %s761 = ssub.s32 2048, 2048
          %762 = vsyncadd [#allocation8], %s761
          %s763 = sshll.u32 [#allocation9], 4
          %s764 = int_to_ptr.vmem [resolvable:$true] %s763
          %769 = dma.hbm_to_vmem [thread:$0]  %s13, 2048, %s764, [#allocation8], 128, 128, 8
        $region68: #{t2vbert_forward.1} parent=11 // pred_fallthru
          _
        // Predicated region
        $region69: #{t2vbert_forward.1} parent=11 // pred_check
          %p770 = pneg %p354
        $region70: #{t2vbert_forward.1} parent=11 // pred_check_branch
          %772 = sbr.rel (%p770) target = $region72
        $region71: #{t2vbert_forward.1} parent=11 // pred_region
          %s774 = ssub.s32 16, 16
          %775 = vsyncadd [#allocation11], %s774
          %s777 = sshll.u32 [#allocation10], 4
          %s778 = int_to_ptr.vmem [resolvable:$true] %s777
          %780 = dma.hbm_to_vmem [thread:$0]  %s14, 16, %s778, [#allocation11]
        $region72: #{t2vbert_forward.1} parent=11 // pred_fallthru
          _
      $region12: #{t2vbert_forward.1} parent=5 // pred_fallthru
        _
      %p781 = scmp.lt.s32.totalorder %s39, 2
      // Predicated region
      $region73: #{t2vbert_forward.1} parent=5 // pred_check
        %p782 = pneg %p781
      $region74: #{t2vbert_forward.1} parent=5 // pred_check_branch
        %784 = sbr.rel (%p782) target = $region76
      $region75: #{t2vbert_forward.1} parent=5 // pred_region
        // Predicated region
        $region77: #{t2vbert_forward.1} parent=75 // pred_check
          %p785 = pneg %p374
        $region78: #{t2vbert_forward.1} parent=75 // pred_check_branch
          %787 = sbr.rel (%p785) target = $region80
        $region79: #{t2vbert_forward.1} parent=75 // pred_region
          %s788 = sand.u32 %s39, 1
          %s789 = scalar_lea.sflag [#allocation5], %s788
          %s790 = sand.u32 %s364, 1
          %s791 = smul.addr %s790, 192
          %s792 = scalar_lea.vmem [#allocation12], %s791
          %s794 = ssub.s32 3072, 3072
          %795 = vsyncadd %s789, %s794
          %s796 = smul.addr %s39, 48
          %s797 = smul.addr %s796, 64
          %s798 = scalar_lea.hbm %s15, %s797
          %s799 = sshll.u32 %s792, 4
          %s800 = int_to_ptr.vmem [resolvable:$true] %s799
          %805 = dma.hbm_to_vmem [thread:$0]  %s798, 3072, %s800, %s789, 192, 192, 12
        $region80: #{t2vbert_forward.1} parent=75 // pred_fallthru
          _
        // Predicated region
        $region81: #{t2vbert_forward.1} parent=75 // pred_check
          %p806 = pneg %p400
        $region82: #{t2vbert_forward.1} parent=75 // pred_check_branch
          %808 = sbr.rel (%p806) target = $region84
        $region83: #{t2vbert_forward.1} parent=75 // pred_region
          %p809 = scmp.lt.s32.totalorder %s39, 1
          %s810 = scalar_select %p809, %s39, 1
          %s811 = smul.addr %s810, 3
          %s812 = scalar_lea.vmem %s16, %s811
        $region84: #{t2vbert_forward.1} parent=75 // pred_fallthru
          _
        // Predicated region
        $region85: #{t2vbert_forward.1} parent=75 // pred_check
          %p813 = pneg %p426
        $region86: #{t2vbert_forward.1} parent=75 // pred_check_branch
          %815 = sbr.rel (%p813) target = $region88
        $region87: #{t2vbert_forward.1} parent=75 // pred_region
          %s816 = sand.u32 %s39, 1
          %s817 = scalar_lea.sflag [#allocation5], %s816
          %s818 = sand.u32 %s416, 1
          %s819 = smul.addr %s818, 64
          %s820 = scalar_lea.vmem [#allocation13], %s819
          %s822 = ssub.s32 1024, 1024
          %823 = vsyncadd %s817, %s822
          %s824 = smul.addr %s39, 16
          %s825 = smul.addr %s824, 64
          %s826 = scalar_lea.hbm %s17, %s825
          %s827 = sshll.u32 %s820, 4
          %s828 = int_to_ptr.vmem [resolvable:$true] %s827
          %833 = dma.hbm_to_vmem [thread:$0]  %s826, 1024, %s828, %s817, 64, 64, 4
        $region88: #{t2vbert_forward.1} parent=75 // pred_fallthru
          _
        // Predicated region
        $region89: #{t2vbert_forward.1} parent=75 // pred_check
          %p834 = pneg %p452
        $region90: #{t2vbert_forward.1} parent=75 // pred_check_branch
          %836 = sbr.rel (%p834) target = $region92
        $region91: #{t2vbert_forward.1} parent=75 // pred_region
          %p837 = scmp.lt.s32.totalorder %s39, 1
          %s838 = scalar_select %p837, %s39, 1
          %s839 = scalar_lea.vmem %s18, %s838
        $region92: #{t2vbert_forward.1} parent=75 // pred_fallthru
          _
        // Predicated region
        $region93: #{t2vbert_forward.1} parent=75 // pred_check
          %p840 = pneg %p478
        $region94: #{t2vbert_forward.1} parent=75 // pred_check_branch
          %842 = sbr.rel (%p840) target = $region96
        $region95: #{t2vbert_forward.1} parent=75 // pred_region
          %p843 = scmp.lt.s32.totalorder %s39, 1
          %s844 = scalar_select %p843, %s39, 1
          %s845 = scalar_lea.vmem %s19, %s844
        $region96: #{t2vbert_forward.1} parent=75 // pred_fallthru
          _
        // Predicated region
        $region97: #{t2vbert_forward.1} parent=75 // pred_check
          %p846 = pneg %p504
        $region98: #{t2vbert_forward.1} parent=75 // pred_check_branch
          %848 = sbr.rel (%p846) target = $region100
        $region99: #{t2vbert_forward.1} parent=75 // pred_region
          %p849 = scmp.lt.s32.totalorder %s39, 1
          %s850 = scalar_select %p849, %s39, 1
          %s851 = scalar_lea.vmem %s20, %s850
        $region100: #{t2vbert_forward.1} parent=75 // pred_fallthru
          _
        // Predicated region
        $region101: #{t2vbert_forward.1} parent=75 // pred_check
          %p852 = pneg %p530
        $region102: #{t2vbert_forward.1} parent=75 // pred_check_branch
          %854 = sbr.rel (%p852) target = $region104
        $region103: #{t2vbert_forward.1} parent=75 // pred_region
          %s855 = sand.u32 %s39, 1
          %s856 = scalar_lea.sflag [#allocation5], %s855
          %s857 = sand.u32 %s520, 1
          %s858 = smul.addr %s857, 1024
          %s859 = scalar_lea.vmem [#allocation14], %s858
          %s861 = ssub.s32 16384, 16384
          %862 = vsyncadd %s856, %s861
          %s863 = smul.addr %s39, 256
          %s864 = smul.addr %s863, 64
          %s865 = scalar_lea.hbm %s21, %s864
          %s866 = sshll.u32 %s859, 4
          %s867 = int_to_ptr.vmem [resolvable:$true] %s866
          %872 = dma.hbm_to_vmem [thread:$0]  %s865, 16384, %s867, %s856, 1024, 1024, 64
        $region104: #{t2vbert_forward.1} parent=75 // pred_fallthru
          _
        // Predicated region
        $region105: #{t2vbert_forward.1} parent=75 // pred_check
          %p873 = pneg %p556
        $region106: #{t2vbert_forward.1} parent=75 // pred_check_branch
          %875 = sbr.rel (%p873) target = $region108
        $region107: #{t2vbert_forward.1} parent=75 // pred_region
          %p876 = scmp.lt.s32.totalorder %s39, 1
          %s877 = scalar_select %p876, %s39, 1
          %s878 = smul.addr %s877, 16
          %s879 = scalar_lea.vmem %s22, %s878
        $region108: #{t2vbert_forward.1} parent=75 // pred_fallthru
          _
        // Predicated region
        $region109: #{t2vbert_forward.1} parent=75 // pred_check
          %p880 = pneg %p582
        $region110: #{t2vbert_forward.1} parent=75 // pred_check_branch
          %882 = sbr.rel (%p880) target = $region112
        $region111: #{t2vbert_forward.1} parent=75 // pred_region
          %s883 = sand.u32 %s39, 1
          %s884 = scalar_lea.sflag [#allocation5], %s883
          %s885 = sand.u32 %s572, 1
          %s886 = smul.addr %s885, 1024
          %s887 = scalar_lea.vmem [#allocation15], %s886
          %s889 = ssub.s32 16384, 16384
          %890 = vsyncadd %s884, %s889
          %s891 = smul.addr %s39, 256
          %s892 = smul.addr %s891, 64
          %s893 = scalar_lea.hbm %s23, %s892
          %s894 = sshll.u32 %s887, 4
          %s895 = int_to_ptr.vmem [resolvable:$true] %s894
          %900 = dma.hbm_to_vmem [thread:$0]  %s893, 16384, %s895, %s884, 64, 64, 4
        $region112: #{t2vbert_forward.1} parent=75 // pred_fallthru
          _
        // Predicated region
        $region113: #{t2vbert_forward.1} parent=75 // pred_check
          %p901 = pneg %p608
        $region114: #{t2vbert_forward.1} parent=75 // pred_check_branch
          %903 = sbr.rel (%p901) target = $region116
        $region115: #{t2vbert_forward.1} parent=75 // pred_region
          %p904 = scmp.lt.s32.totalorder %s39, 1
          %s905 = scalar_select %p904, %s39, 1
          %s906 = scalar_lea.vmem %s24, %s905
        $region116: #{t2vbert_forward.1} parent=75 // pred_fallthru
          _
        // Predicated region
        $region117: #{t2vbert_forward.1} parent=75 // pred_check
          %p907 = pneg %p634
        $region118: #{t2vbert_forward.1} parent=75 // pred_check_branch
          %909 = sbr.rel (%p907) target = $region120
        $region119: #{t2vbert_forward.1} parent=75 // pred_region
          %p910 = scmp.lt.s32.totalorder %s39, 1
          %s911 = scalar_select %p910, %s39, 1
          %s912 = scalar_lea.vmem %s25, %s911
        $region120: #{t2vbert_forward.1} parent=75 // pred_fallthru
          _
        // Predicated region
        $region121: #{t2vbert_forward.1} parent=75 // pred_check
          %p913 = pneg %p660
        $region122: #{t2vbert_forward.1} parent=75 // pred_check_branch
          %915 = sbr.rel (%p913) target = $region124
        $region123: #{t2vbert_forward.1} parent=75 // pred_region
          %p916 = scmp.lt.s32.totalorder %s39, 1
          %s917 = scalar_select %p916, %s39, 1
          %s918 = scalar_lea.vmem %s26, %s917
        $region124: #{t2vbert_forward.1} parent=75 // pred_fallthru
          _
      $region76: #{t2vbert_forward.1} parent=5 // pred_fallthru
        _
      %p919 = scmp.le.s32.totalorder 1, %s39
      %p920 = scmp.lt.s32.totalorder %s39, 3
      %p921 = pnand %p919, %p920
      %p922 = pneg %p921
      // Predicated region
      $region125: #{t2vbert_forward.1} parent=5 // pred_check
        _
      $region126: #{t2vbert_forward.1} parent=5 // pred_check_branch
        %924 = sbr.rel (%p921) target = $region128
      $region127: #{t2vbert_forward.1} parent=5 // pred_region
        %s925 = ssub.s32 %s39, 1
        // Predicated region
        $region129: #{t2vbert_forward.1} parent=127 // pred_check
          %p926 = pneg %p207
        $region130: #{t2vbert_forward.1} parent=127 // pred_check_branch
          %928 = sbr.rel (%p926) target = $region132
        $region131: #{t2vbert_forward.1} parent=127 // pred_region
          %929 = dma.done [#allocation5], 16
        $region132: #{t2vbert_forward.1} parent=127 // pred_fallthru
          _
        // Predicated region
        $region133: #{t2vbert_forward.1} parent=127 // pred_check
          %p930 = pneg %p312
        $region134: #{t2vbert_forward.1} parent=127 // pred_check_branch
          %932 = sbr.rel (%p930) target = $region136
        $region135: #{t2vbert_forward.1} parent=127 // pred_region
          %933 = dma.done [#allocation8], 16
        $region136: #{t2vbert_forward.1} parent=127 // pred_fallthru
          _
        // Predicated region
        $region137: #{t2vbert_forward.1} parent=127 // pred_check
          %p934 = pneg %p333
        $region138: #{t2vbert_forward.1} parent=127 // pred_check_branch
          %936 = sbr.rel (%p934) target = $region140
        $region139: #{t2vbert_forward.1} parent=127 // pred_region
          %937 = dma.done [#allocation8], 2048
        $region140: #{t2vbert_forward.1} parent=127 // pred_fallthru
          _
        // Predicated region
        $region141: #{t2vbert_forward.1} parent=127 // pred_check
          %p938 = pneg %p354
        $region142: #{t2vbert_forward.1} parent=127 // pred_check_branch
          %940 = sbr.rel (%p938) target = $region144
        $region143: #{t2vbert_forward.1} parent=127 // pred_region
          %941 = dma.done [#allocation11], 16
        $region144: #{t2vbert_forward.1} parent=127 // pred_fallthru
          _
        %s942 = sand.u32 %s44, 1
        %s943 = scalar_lea.sflag [#allocation5], %s942
        %s944 = sand.u32 %s367, 1
        %s945 = smul.addr %s944, 192
        %s946 = scalar_lea.vmem [#allocation12], %s945
        // Predicated region
        $region145: #{t2vbert_forward.1} parent=127 // pred_check
          %p947 = pneg %p380
        $region146: #{t2vbert_forward.1} parent=127 // pred_check_branch
          %949 = sbr.rel (%p947) target = $region148
        $region147: #{t2vbert_forward.1} parent=127 // pred_region
          %950 = dma.done %s943, 3072
        $region148: #{t2vbert_forward.1} parent=127 // pred_fallthru
          _
        %s951 = sand.u32 %s44, 1
        %s952 = scalar_lea.sflag [#allocation5], %s951
        %s953 = sand.u32 %s419, 1
        %s954 = smul.addr %s953, 64
        %s955 = scalar_lea.vmem [#allocation13], %s954
        // Predicated region
        $region149: #{t2vbert_forward.1} parent=127 // pred_check
          %p956 = pneg %p432
        $region150: #{t2vbert_forward.1} parent=127 // pred_check_branch
          %958 = sbr.rel (%p956) target = $region152
        $region151: #{t2vbert_forward.1} parent=127 // pred_region
          %959 = dma.done %s952, 1024
        $region152: #{t2vbert_forward.1} parent=127 // pred_fallthru
          _
        %s960 = sand.u32 %s44, 1
        %s961 = scalar_lea.sflag [#allocation5], %s960
        %s962 = sand.u32 %s523, 1
        %s963 = smul.addr %s962, 1024
        %s964 = scalar_lea.vmem [#allocation14], %s963
        // Predicated region
        $region153: #{t2vbert_forward.1} parent=127 // pred_check
          %p965 = pneg %p536
        $region154: #{t2vbert_forward.1} parent=127 // pred_check_branch
          %967 = sbr.rel (%p965) target = $region156
        $region155: #{t2vbert_forward.1} parent=127 // pred_region
          %968 = dma.done %s961, 16384
        $region156: #{t2vbert_forward.1} parent=127 // pred_fallthru
          _
        %s969 = sand.u32 %s44, 1
        %s970 = scalar_lea.sflag [#allocation5], %s969
        %s971 = sand.u32 %s575, 1
        %s972 = smul.addr %s971, 1024
        %s973 = scalar_lea.vmem [#allocation15], %s972
        // Predicated region
        $region157: #{t2vbert_forward.1} parent=127 // pred_check
          %p974 = pneg %p588
        $region158: #{t2vbert_forward.1} parent=127 // pred_check_branch
          %976 = sbr.rel (%p974) target = $region160
        $region159: #{t2vbert_forward.1} parent=127 // pred_region
          %977 = dma.done %s970, 16384
        $region160: #{t2vbert_forward.1} parent=127 // pred_fallthru
          _
        %p978 = pneg %p60
        %p979 = pneg %p57
        %p980 = pneg %p81
        %p981 = pneg %p78
        %p982 = pneg %p102
        %p983 = pneg %p99
        %p984 = pneg %p123
        %p985 = pneg %p120
        %p986 = pneg %p144
        %p987 = pneg %p141
        %p988 = pneg %p165
        %p989 = pneg %p162
        %p990 = pneg %p186
        %p991 = pneg %p183
        %p992 = pneg %p207
        %p993 = pneg %p204
        %p994 = pneg %p228
        %p995 = pneg %p225
        %p996 = pneg %p249
        %p997 = pneg %p246
        %p998 = pneg %p270
        %p999 = pneg %p267
        %p1000 = pneg %p291
        %p1001 = pneg %p288
        %p1002 = pneg %p312
        %p1003 = pneg %p309
        %p1004 = pneg %p333
        %p1005 = pneg %p330
        %p1006 = pneg %p354
        %p1007 = pneg %p351
        %s1008 = sand.u32 %s44, 1
        %s1009 = scalar_lea.sflag [#allocation5], %s1008
        %s1010 = sand.u32 %s367, 1
        %s1011 = smul.addr %s1010, 192
        %s1012 = scalar_lea.vmem [#allocation12], %s1011
        %p1013 = pneg %p380
        %p1014 = pneg %p377
        %p1015 = scmp.lt.s32.totalorder %s44, 1
        %s1016 = scalar_select %p1015, %s44, 1
        %s1017 = smul.addr %s1016, 3
        %s1018 = scalar_lea.vmem %s16, %s1017
        %p1019 = pneg %p406
        %p1020 = pneg %p403
        %s1021 = sand.u32 %s44, 1
        %s1022 = scalar_lea.sflag [#allocation5], %s1021
        %s1023 = sand.u32 %s419, 1
        %s1024 = smul.addr %s1023, 64
        %s1025 = scalar_lea.vmem [#allocation13], %s1024
        %p1026 = pneg %p432
        %p1027 = pneg %p429
        %p1028 = scmp.lt.s32.totalorder %s44, 1
        %s1029 = scalar_select %p1028, %s44, 1
        %s1030 = scalar_lea.vmem %s18, %s1029
        %p1031 = pneg %p458
        %p1032 = pneg %p455
        %p1033 = scmp.lt.s32.totalorder %s44, 1
        %s1034 = scalar_select %p1033, %s44, 1
        %s1035 = scalar_lea.vmem %s19, %s1034
        %p1036 = pneg %p484
        %p1037 = pneg %p481
        %p1038 = scmp.lt.s32.totalorder %s44, 1
        %s1039 = scalar_select %p1038, %s44, 1
        %s1040 = scalar_lea.vmem %s20, %s1039
        %p1041 = pneg %p510
        %p1042 = pneg %p507
        %s1043 = sand.u32 %s44, 1
        %s1044 = scalar_lea.sflag [#allocation5], %s1043
        %s1045 = sand.u32 %s523, 1
        %s1046 = smul.addr %s1045, 1024
        %s1047 = scalar_lea.vmem [#allocation14], %s1046
        %p1048 = pneg %p536
        %p1049 = pneg %p533
        %p1050 = scmp.lt.s32.totalorder %s44, 1
        %s1051 = scalar_select %p1050, %s44, 1
        %s1052 = smul.addr %s1051, 16
        %s1053 = scalar_lea.vmem %s22, %s1052
        %p1054 = pneg %p562
        %p1055 = pneg %p559
        %s1056 = sand.u32 %s44, 1
        %s1057 = scalar_lea.sflag [#allocation5], %s1056
        %s1058 = sand.u32 %s575, 1
        %s1059 = smul.addr %s1058, 1024
        %s1060 = scalar_lea.vmem [#allocation15], %s1059
        %p1061 = pneg %p588
        %p1062 = pneg %p585
        %p1063 = scmp.lt.s32.totalorder %s44, 1
        %s1064 = scalar_select %p1063, %s44, 1
        %s1065 = scalar_lea.vmem %s24, %s1064
        %p1066 = pneg %p614
        %p1067 = pneg %p611
        %p1068 = scmp.lt.s32.totalorder %s44, 1
        %s1069 = scalar_select %p1068, %s44, 1
        %s1070 = scalar_lea.vmem %s25, %s1069
        %p1071 = pneg %p640
        %p1072 = pneg %p637
        %p1073 = scmp.lt.s32.totalorder %s44, 1
        %s1074 = scalar_select %p1073, %s44, 1
        %s1075 = scalar_lea.vmem %s26, %s1074
        %p1076 = pneg %p666
        %p1077 = pneg %p663
        %p1078 = pneg %p687
        %p1079 = pneg %p684
        %p1080 = scmp.lt.s32.totalorder %s44, 1
        %s1081 = scalar_select %p1080, %s44, 1
        %s1082 = smul.addr %s1081, 3
        %s1083 = scalar_lea.vmem %s16, %s1082
        %p1084 = scmp.lt.s32.totalorder %s44, 1
        %s1085 = scalar_select %p1084, %s44, 1
        %s1086 = scalar_lea.vmem %s18, %s1085
        %p1087 = scmp.lt.s32.totalorder %s44, 1
        %s1088 = scalar_select %p1087, %s44, 1
        %s1089 = scalar_lea.vmem %s19, %s1088
        %p1090 = scmp.lt.s32.totalorder %s44, 1
        %s1091 = scalar_select %p1090, %s44, 1
        %s1092 = scalar_lea.vmem %s20, %s1091
        %p1093 = scmp.lt.s32.totalorder %s44, 1
        %s1094 = scalar_select %p1093, %s44, 1
        %s1095 = smul.addr %s1094, 16
        %s1096 = scalar_lea.vmem %s22, %s1095
        %p1097 = scmp.lt.s32.totalorder %s44, 1
        %s1098 = scalar_select %p1097, %s44, 1
        %s1099 = scalar_lea.vmem %s24, %s1098
        %p1100 = scmp.lt.s32.totalorder %s44, 1
        %s1101 = scalar_select %p1100, %s44, 1
        %s1102 = scalar_lea.vmem %s25, %s1101
        %p1103 = scmp.lt.s32.totalorder %s44, 1
        %s1104 = scalar_select %p1103, %s44, 1
        %s1105 = scalar_lea.vmem %s26, %s1104
        %p1107 = scmp.eq.s32.totalorder %s44, 0
        // Predicated region
        $region161: #{t2vbert_forward.1} parent=127 // pred_check
          %p1108 = pneg %p1107
        $region162: #{t2vbert_forward.1} parent=127 // pred_check_branch
          %1110 = sbr.rel (%p1108) target = $region164
        $region163: #{t2vbert_forward.1} parent=127 // pred_region
          %v1111 = vld [vmem:[%s0] sm:$0xff]
          %v1112 = vld [vmem:[%s0 + $0x8] sm:$0xff]
          %v1113 = vld [vmem:[%s1] sm:$0xf]
          %v1114 = vld [vmem:[%s2] sm:$0x1]
          %v1116 = vlaneseq
          %v1117 = vshrl.u32 %v1116, 7
          %v1118 = vsub.s32 0, %v1117
          %v1119 = vrot.slane %v1114, %v1118
          %vm1121 = vcmask 31744
          %v1123 = vsel %vm1121, %v1111, 0
          %v1126 = vsel %vm1121, %v1112, 0
          %vm1128 = vcmask 1043456
          %v1130 = vsel %vm1128, %v1113, 0
          %1132 = vmatprep.subr.mxu0 0.0
          %1133 = vmatpush1.msra.mxu0 0.0
          %1134 = vmatprep.subr.mxu0 0.0
          %1135 = vmatpush1.msra.mxu0 0.0
          %1136 = vmatprep.subr.mxu0 0.0
          %1137 = vmatpush1.msra.mxu0 0.0
          %1138 = vmatprep.subr.mxu0 0.0
          %1139 = vmatpush1.msra.mxu0 0.0
          %1140 = vmatprep.subr.mxu0 0.0
          %1141 = vmatpush1.msra.mxu0 0.0
          %1142 = vmatprep.subr.mxu0 0.0
          %1143 = vmatpush1.msra.mxu0 0.0
          %1144 = vmatprep.subr.mxu0 0.0
          %1145 = vmatpush1.msra.mxu0 0.0
          %1146 = vmatprep.subr.mxu0 0.0
          %1147 = vmatpush1.msra.mxu0 0.0
          %1148 = vmatprep.subr.mxu0 0.0
          %1149 = vmatpush1.msra.mxu0 0.0
          %1150 = vmatprep.subr.mxu0 0.0
          %1151 = vmatpush1.msra.mxu0 0.0
          %1152 = vmatprep.subr.mxu0 0.0
          %1153 = vmatpush1.msra.mxu0 0.0
          %1154 = vmatprep.subr.mxu0 0.0
          %1155 = vmatpush1.msra.mxu0 0.0
          %1156 = vmatprep.subr.mxu0 0.0
          %1157 = vmatpush1.msra.mxu0 0.0
          %1158 = vmatprep.subr.mxu0 0.0
          %1159 = vmatpush1.msra.mxu0 0.0
          %1160 = vmatprep.subr.mxu0 0.0
          %1161 = vmatpush1.msra.mxu0 0.0
          %1162 = vmatprep.subr.mxu0 0.0
          %1163 = vmatpush1.msra.mxu0 %v1130
          %1164 = vmatprep.subr.mxu0 0.0
          %1165 = vmatpush2.msra.mxu0 0.0
          %1166 = vmatprep.subr.mxu0 0.0
          %1167 = vmatpush2.msra.mxu0 0.0
          %1168 = vmatprep.subr.mxu0 0.0
          %1169 = vmatpush2.msra.mxu0 0.0
          %1170 = vmatprep.subr.mxu0 0.0
          %1171 = vmatpush2.msra.mxu0 0.0
          %1172 = vmatprep.subr.mxu0 0.0
          %1173 = vmatpush2.msra.mxu0 0.0
          %1174 = vmatprep.subr.mxu0 0.0
          %1175 = vmatpush2.msra.mxu0 0.0
          %1176 = vmatprep.subr.mxu0 0.0
          %1177 = vmatpush2.msra.mxu0 0.0
          %1178 = vmatprep.subr.mxu0 0.0
          %1179 = vmatpush2.msra.mxu0 0.0
          %1180 = vmatprep.subr.mxu0 0.0
          %1181 = vmatpush2.msra.mxu0 0.0
          %1182 = vmatprep.subr.mxu0 0.0
          %1183 = vmatpush2.msra.mxu0 0.0
          %1184 = vmatprep.subr.mxu0 0.0
          %1185 = vmatpush2.msra.mxu0 0.0
          %1186 = vmatprep.subr.mxu0 0.0
          %1187 = vmatpush2.msra.mxu0 0.0
          %1188 = vmatprep.subr.mxu0 0.0
          %1189 = vmatpush2.msra.mxu0 0.0
          %1190 = vmatprep.subr.mxu0 0.0
          %1191 = vmatpush2.msra.mxu0 0.0
          %1192 = vmatprep.subr.mxu0 0.0
          %1193 = vmatpush2.msra.mxu0 0.0
          %1194 = vmatprep.subr.mxu0 0.0
          %1195 = vmatpush2.msra.mxu0 0.0
          %1196 = vmatprep.mubr.f32.mxu0 0.0
          %1197 = vmatmul.mubr.f32.gmra.mxu0 %v1123
          %v1198 = vpop.f32.mrf.mxu0
          %v1199 = vadd.f32 %v1119, %v1198
          %v1200 = vpop.f32.mrf.mxu0
          %1201 = vmatprep.mubr.f32.mxu0 0.0
          %1202 = vmatmul.mubr.f32.gmra.mxu0 %v1126
          %v1203 = vpop.f32.mrf.mxu0
          %v1204 = vadd.f32 %v1119, %v1203
          %v1205 = vpop.f32.mrf.mxu0
          %1206 = vdwg.mxu0
          %v1207 = vand.u32 2147483647, %v1199
          %vm1208 = vcmp.le.f32.partialorder %v1207, 0.7853982
          %vm1209 = vcmp.lt.s32.totalorder %v1199, 0
          %v1210 = vand.u32 %v1199, 2139095040
          %v1211 = vshrl.u32 %v1210, 23
          %v1212 = vsub.s32 %v1211, 127
          %v1213 = vand.u32 2147483647, %v1199
          %v1214 = vand.u32 %v1213, 8388607
          %v1215 = vor.u32 %v1214, 8388608
          %v1216 = vsub.s32 0, %v1215
          %v1217 = vadd.s32 %v1212, 1
          %vm1218 = vcmp.gt.s32.totalorder %v1217, 0
          %v1219 = vsel %vm1218, %v1217, 0
          %v1220 = vshrl.u32 %v1219, 5
          %v1221 = vand.u32 %v1219, 31
          %v1222 = vsub.s32 32, %v1221
          %v1223 = vshrl.u32 683565275, %v1222
          %v1224 = vshll.u32 683565275, %v1221
          %v1225 = vshrl.u32 2475754826, %v1222
          %v1226 = vor.u32 %v1224, %v1225
          %v1227 = vshll.u32 2475754826, %v1221
          %v1228 = vshrl.u32 2131351028, %v1222
          %v1229 = vor.u32 %v1227, %v1228
          %v1230 = vshll.u32 2131351028, %v1221
          %v1231 = vshrl.u32 2102212464, %v1222
          %v1232 = vor.u32 %v1230, %v1231
          %v1233 = vshll.u32 2102212464, %v1221
          %v1234 = vshrl.u32 920167782, %v1222
          %v1235 = vor.u32 %v1233, %v1234
          %v1236 = vshll.u32 920167782, %v1221
          %v1237 = vshrl.u32 1326507024, %v1222
          %v1238 = vor.u32 %v1236, %v1237
          %vm1239 = vcmp.lt.s32.totalorder %v1220, 1
          %vm1240 = vcmp.lt.s32.totalorder %v1220, 2
          %vm1241 = vcmp.lt.s32.totalorder %v1220, 3
          %vm1242 = vcmp.lt.s32.totalorder %v1220, 4
          %v1243 = vsel %vm1239, %v1223, %v1226
          %v1244 = vsel %vm1242, %v1232, 2102212464
          %v1245 = vsel %vm1241, %v1229, %v1244
          %v1246 = vsel %vm1240, %v1243, %v1245
          %v1247 = vsel %vm1239, %v1226, %v1229
          %v1248 = vsel %vm1242, %v1235, 920167782
          %v1249 = vsel %vm1241, %v1232, %v1248
          %v1250 = vsel %vm1240, %v1247, %v1249
          %v1251 = vsel %vm1239, %v1229, %v1232
          %v1252 = vsel %vm1242, %v1238, 1326507024
          %v1253 = vsel %vm1241, %v1235, %v1252
          %v1254 = vsel %vm1240, %v1251, %v1253
          %v1255 = vshll.u32 %v1215, 8
          %v1256 = vmul.u32.u64.compose %v1255, %v1254
          %v1257 = vextract.low.u32 %v1256
          %v1258 = vextract.high.u32 %v1256
          %v1259 = vmul.u32.u64.compose %v1255, %v1250
          %v1260 = vextract.low.u32 %v1259
          %v1261 = vextract.high.u32 %v1259
          %v1262 = vmul.u32 %v1255, %v1246
          %v1263 = vadd.s32 %v1258, %v1260
          %vm1264 = vc.u32 %v1258, %v1260
          %v1265 = vadd.s32 %v1261, 1
          %v1266 = vsel %vm1264, %v1265, %v1261
          %v1267 = vadd.s32 %v1262, %v1266
          %v1268 = vadd.s32 %v1267, 536870912
          %v1269 = vshrl.u32 %v1268, 30
          %v1270 = vshll.u32 %v1269, 30
          %v1271 = vsub.s32 %v1267, %v1270
          %vm1272 = vcmp.lt.s32.totalorder %v1271, 0
          %v1273 = vsub.s32 0, %v1271
          %v1274 = vsel %vm1272, %v1273, %v1271
          %v1275 = vclz %v1274
          %v1276 = vsub.s32 %v1275, 2
          %vm1277 = vcmp.gt.s32.totalorder 0, %v1276
          %v1278 = vsel %vm1277, 0, %v1276
          %v1279 = vsub.s32 32, %v1278
          %v1280 = vshll.u32 %v1271, %v1278
          %v1281 = vshrl.u32 %v1263, %v1279
          %v1282 = vor.u32 %v1280, %v1281
          %v1283 = vsub.s32 4294967266, %v1278
          %v1284 = vadd.s32 %v1283, 127
          %v1285 = vshll.u32 %v1284, 23
          %v1286 = vor.u32 4788187, %v1285
          %v1287 = vand.u32 2147483647, %v1286
          %v1289 = vcvt.s32.f32 %v1282
          %v1290 = vmul.f32 %v1289, %v1287
          %v1291 = vxor.u32 %v1290, 2147483648
          %v1292 = vsel %vm1209, %v1291, %v1290
          %v1293 = vsub.s32 4, %v1269
          %v1294 = vsel %vm1209, %v1293, %v1269
          %v1295 = vsel %vm1208, %v1199, %v1292
          %v1296 = vsel %vm1208, 0, %v1294
          %v1297 = vcosq.f32.pop %v1295
          %v1298 = vsinq.f32.pop %v1295
          %vm1299 = vweird.f32 %v1199
          %v1300 = vadd.s32 %v1296, 3
          %v1301 = vand.u32 %v1300, 3
          %vm1302 = vcmp.lt.s32.totalorder %v1301, 2
          %vm1303 = vcmp.eq.s32.totalorder %v1301, 0
          %v1304 = vxor.u32 %v1298, 2147483648
          %v1305 = vsel %vm1303, %v1297, %v1304
          %vm1306 = vcmp.eq.s32.totalorder %v1301, 2
          %v1307 = vxor.u32 %v1297, 2147483648
          %v1308 = vsel %vm1306, %v1307, %v1298
          %v1309 = vsel %vm1302, %v1305, %v1308
          %v1310 = vsel %vm1299, nan, %v1309
          %v1311 = vand.u32 2147483647, %v1204
          %vm1312 = vcmp.le.f32.partialorder %v1311, 0.7853982
          %vm1313 = vcmp.lt.s32.totalorder %v1204, 0
          %v1314 = vand.u32 %v1204, 2139095040
          %v1315 = vshrl.u32 %v1314, 23
          %v1316 = vsub.s32 %v1315, 127
          %v1317 = vand.u32 2147483647, %v1204
          %v1318 = vand.u32 %v1317, 8388607
          %v1319 = vor.u32 %v1318, 8388608
          %v1320 = vsub.s32 0, %v1319
          %v1321 = vadd.s32 %v1316, 1
          %vm1322 = vcmp.gt.s32.totalorder %v1321, 0
          %v1323 = vsel %vm1322, %v1321, 0
          %v1324 = vshrl.u32 %v1323, 5
          %v1325 = vand.u32 %v1323, 31
          %v1326 = vsub.s32 32, %v1325
          %v1327 = vshrl.u32 683565275, %v1326
          %v1328 = vshll.u32 683565275, %v1325
          %v1329 = vshrl.u32 2475754826, %v1326
          %v1330 = vor.u32 %v1328, %v1329
          %v1331 = vshll.u32 2475754826, %v1325
          %v1332 = vshrl.u32 2131351028, %v1326
          %v1333 = vor.u32 %v1331, %v1332
          %v1334 = vshll.u32 2131351028, %v1325
          %v1335 = vshrl.u32 2102212464, %v1326
          %v1336 = vor.u32 %v1334, %v1335
          %v1337 = vshll.u32 2102212464, %v1325
          %v1338 = vshrl.u32 920167782, %v1326
          %v1339 = vor.u32 %v1337, %v1338
          %v1340 = vshll.u32 920167782, %v1325
          %v1341 = vshrl.u32 1326507024, %v1326
          %v1342 = vor.u32 %v1340, %v1341
          %vm1343 = vcmp.lt.s32.totalorder %v1324, 1
          %vm1344 = vcmp.lt.s32.totalorder %v1324, 2
          %vm1345 = vcmp.lt.s32.totalorder %v1324, 3
          %vm1346 = vcmp.lt.s32.totalorder %v1324, 4
          %v1347 = vsel %vm1343, %v1327, %v1330
          %v1348 = vsel %vm1346, %v1336, 2102212464
          %v1349 = vsel %vm1345, %v1333, %v1348
          %v1350 = vsel %vm1344, %v1347, %v1349
          %v1351 = vsel %vm1343, %v1330, %v1333
          %v1352 = vsel %vm1346, %v1339, 920167782
          %v1353 = vsel %vm1345, %v1336, %v1352
          %v1354 = vsel %vm1344, %v1351, %v1353
          %v1355 = vsel %vm1343, %v1333, %v1336
          %v1356 = vsel %vm1346, %v1342, 1326507024
          %v1357 = vsel %vm1345, %v1339, %v1356
          %v1358 = vsel %vm1344, %v1355, %v1357
          %v1359 = vshll.u32 %v1319, 8
          %v1360 = vmul.u32.u64.compose %v1359, %v1358
          %v1361 = vextract.low.u32 %v1360
          %v1362 = vextract.high.u32 %v1360
          %v1363 = vmul.u32.u64.compose %v1359, %v1354
          %v1364 = vextract.low.u32 %v1363
          %v1365 = vextract.high.u32 %v1363
          %v1366 = vmul.u32 %v1359, %v1350
          %v1367 = vadd.s32 %v1362, %v1364
          %vm1368 = vc.u32 %v1362, %v1364
          %v1369 = vadd.s32 %v1365, 1
          %v1370 = vsel %vm1368, %v1369, %v1365
          %v1371 = vadd.s32 %v1366, %v1370
          %v1372 = vadd.s32 %v1371, 536870912
          %v1373 = vshrl.u32 %v1372, 30
          %v1374 = vshll.u32 %v1373, 30
          %v1375 = vsub.s32 %v1371, %v1374
          %vm1376 = vcmp.lt.s32.totalorder %v1375, 0
          %v1377 = vsub.s32 0, %v1375
          %v1378 = vsel %vm1376, %v1377, %v1375
          %v1379 = vclz %v1378
          %v1380 = vsub.s32 %v1379, 2
          %vm1381 = vcmp.gt.s32.totalorder 0, %v1380
          %v1382 = vsel %vm1381, 0, %v1380
          %v1383 = vsub.s32 32, %v1382
          %v1384 = vshll.u32 %v1375, %v1382
          %v1385 = vshrl.u32 %v1367, %v1383
          %v1386 = vor.u32 %v1384, %v1385
          %v1387 = vsub.s32 4294967266, %v1382
          %v1388 = vadd.s32 %v1387, 127
          %v1389 = vshll.u32 %v1388, 23
          %v1390 = vor.u32 4788187, %v1389
          %v1391 = vand.u32 2147483647, %v1390
          %v1393 = vcvt.s32.f32 %v1386
          %v1394 = vmul.f32 %v1393, %v1391
          %v1395 = vxor.u32 %v1394, 2147483648
          %v1396 = vsel %vm1313, %v1395, %v1394
          %v1397 = vsub.s32 4, %v1373
          %v1398 = vsel %vm1313, %v1397, %v1373
          %v1399 = vsel %vm1312, %v1204, %v1396
          %v1400 = vsel %vm1312, 0, %v1398
          %v1401 = vcosq.f32.pop %v1399
          %v1402 = vsinq.f32.pop %v1399
          %vm1403 = vweird.f32 %v1204
          %v1404 = vadd.s32 %v1400, 3
          %v1405 = vand.u32 %v1404, 3
          %vm1406 = vcmp.lt.s32.totalorder %v1405, 2
          %vm1407 = vcmp.eq.s32.totalorder %v1405, 0
          %v1408 = vxor.u32 %v1402, 2147483648
          %v1409 = vsel %vm1407, %v1401, %v1408
          %vm1410 = vcmp.eq.s32.totalorder %v1405, 2
          %v1411 = vxor.u32 %v1401, 2147483648
          %v1412 = vsel %vm1410, %v1411, %v1402
          %v1413 = vsel %vm1406, %v1409, %v1412
          %v1414 = vsel %vm1403, nan, %v1413
          %v1415 = vld [vmem:[%s3] sm:$0x1]
          %v1417 = vlaneseq
          %v1418 = vshrl.u32 %v1417, 7
          %v1419 = vsub.s32 0, %v1418
          %v1420 = vrot.slane %v1415, %v1419
          %v1422 = vmul.f32 %v1420, %v1111
          %v1423 = vmul.f32 %v1420, %v1112
          %v1424 = vld [vmem:[#allocation3] sm:$0x1]
          %v1426 = vlaneseq
          %v1427 = vshrl.u32 %v1426, 7
          %v1428 = vsub.s32 0, %v1427
          %v1429 = vrot.slane %v1424, %v1428
          %1430 = vset.pattern.permute.xlu0 0
          %1431 = vperm.xlu0 %1430, %v1429
          %v1432 = vpop.permute.xlu0 %1431
          %v1434 = vadd.f32 %v1422, %v1432
          %v1435 = vadd.f32 %v1423, %v1432
          %v1436 = vld [vmem:[%s5] sm:$0xf]
          %v1437 = vld [vmem:[%s6] sm:$0xf]
          %v1439 = vsel %vm1121, %v1310, 0
          %v1442 = vsel %vm1121, %v1414, 0
          %v1445 = vsel %vm1128, %v1437, 0
          %1447 = vmatprep.subr.mxu0 0.0
          %1448 = vmatpush1.msra.mxu0 0.0
          %1449 = vmatprep.subr.mxu0 0.0
          %1450 = vmatpush1.msra.mxu0 0.0
          %1451 = vmatprep.subr.mxu0 0.0
          %1452 = vmatpush1.msra.mxu0 0.0
          %1453 = vmatprep.subr.mxu0 0.0
          %1454 = vmatpush1.msra.mxu0 0.0
          %1455 = vmatprep.subr.mxu0 0.0
          %1456 = vmatpush1.msra.mxu0 0.0
          %1457 = vmatprep.subr.mxu0 0.0
          %1458 = vmatpush1.msra.mxu0 0.0
          %1459 = vmatprep.subr.mxu0 0.0
          %1460 = vmatpush1.msra.mxu0 0.0
          %1461 = vmatprep.subr.mxu0 0.0
          %1462 = vmatpush1.msra.mxu0 0.0
          %1463 = vmatprep.subr.mxu0 0.0
          %1464 = vmatpush1.msra.mxu0 0.0
          %1465 = vmatprep.subr.mxu0 0.0
          %1466 = vmatpush1.msra.mxu0 0.0
          %1467 = vmatprep.subr.mxu0 0.0
          %1468 = vmatpush1.msra.mxu0 0.0
          %1469 = vmatprep.subr.mxu0 0.0
          %1470 = vmatpush1.msra.mxu0 0.0
          %1471 = vmatprep.subr.mxu0 0.0
          %1472 = vmatpush1.msra.mxu0 0.0
          %1473 = vmatprep.subr.mxu0 0.0
          %1474 = vmatpush1.msra.mxu0 0.0
          %1475 = vmatprep.subr.mxu0 0.0
          %1476 = vmatpush1.msra.mxu0 0.0
          %1477 = vmatprep.subr.mxu0 0.0
          %1478 = vmatpush1.msra.mxu0 %v1445
          %1479 = vmatprep.subr.mxu0 0.0
          %1480 = vmatpush2.msra.mxu0 0.0
          %1481 = vmatprep.subr.mxu0 0.0
          %1482 = vmatpush2.msra.mxu0 0.0
          %1483 = vmatprep.subr.mxu0 0.0
          %1484 = vmatpush2.msra.mxu0 0.0
          %1485 = vmatprep.subr.mxu0 0.0
          %1486 = vmatpush2.msra.mxu0 0.0
          %1487 = vmatprep.subr.mxu0 0.0
          %1488 = vmatpush2.msra.mxu0 0.0
          %1489 = vmatprep.subr.mxu0 0.0
          %1490 = vmatpush2.msra.mxu0 0.0
          %1491 = vmatprep.subr.mxu0 0.0
          %1492 = vmatpush2.msra.mxu0 0.0
          %1493 = vmatprep.subr.mxu0 0.0
          %1494 = vmatpush2.msra.mxu0 0.0
          %1495 = vmatprep.subr.mxu0 0.0
          %1496 = vmatpush2.msra.mxu0 0.0
          %1497 = vmatprep.subr.mxu0 0.0
          %1498 = vmatpush2.msra.mxu0 0.0
          %1499 = vmatprep.subr.mxu0 0.0
          %1500 = vmatpush2.msra.mxu0 0.0
          %1501 = vmatprep.subr.mxu0 0.0
          %1502 = vmatpush2.msra.mxu0 0.0
          %1503 = vmatprep.subr.mxu0 0.0
          %1504 = vmatpush2.msra.mxu0 0.0
          %1505 = vmatprep.subr.mxu0 0.0
          %1506 = vmatpush2.msra.mxu0 0.0
          %1507 = vmatprep.subr.mxu0 0.0
          %1508 = vmatpush2.msra.mxu0 0.0
          %1509 = vmatprep.subr.mxu0 0.0
          %1510 = vmatpush2.msra.mxu0 0.0
          %1511 = vmatprep.mubr.f32.mxu0 0.0
          %1512 = vmatmul.mubr.f32.gmra.mxu0 %v1439
          %v1513 = vpop.f32.mrf.mxu0
          %v1514 = vadd.f32 0.0, %v1513
          %v1515 = vpop.f32.mrf.mxu0
          %1516 = vmatprep.mubr.f32.mxu0 0.0
          %1517 = vmatmul.mubr.f32.gmra.mxu0 %v1442
          %v1518 = vpop.f32.mrf.mxu0
          %v1519 = vadd.f32 0.0, %v1518
          %v1520 = vpop.f32.mrf.mxu0
          %1521 = vdwg.mxu0
          %v1523 = vsel %vm1121, %v1434, 0
          %v1526 = vsel %vm1121, %v1435, 0
          %v1529 = vsel %vm1128, %v1436, 0
          %1531 = vmatprep.subr.mxu0 0.0
          %1532 = vmatpush1.msra.mxu0 0.0
          %1533 = vmatprep.subr.mxu0 0.0
          %1534 = vmatpush1.msra.mxu0 0.0
          %1535 = vmatprep.subr.mxu0 0.0
          %1536 = vmatpush1.msra.mxu0 0.0
          %1537 = vmatprep.subr.mxu0 0.0
          %1538 = vmatpush1.msra.mxu0 0.0
          %1539 = vmatprep.subr.mxu0 0.0
          %1540 = vmatpush1.msra.mxu0 0.0
          %1541 = vmatprep.subr.mxu0 0.0
          %1542 = vmatpush1.msra.mxu0 0.0
          %1543 = vmatprep.subr.mxu0 0.0
          %1544 = vmatpush1.msra.mxu0 0.0
          %1545 = vmatprep.subr.mxu0 0.0
          %1546 = vmatpush1.msra.mxu0 0.0
          %1547 = vmatprep.subr.mxu0 0.0
          %1548 = vmatpush1.msra.mxu0 0.0
          %1549 = vmatprep.subr.mxu0 0.0
          %1550 = vmatpush1.msra.mxu0 0.0
          %1551 = vmatprep.subr.mxu0 0.0
          %1552 = vmatpush1.msra.mxu0 0.0
          %1553 = vmatprep.subr.mxu0 0.0
          %1554 = vmatpush1.msra.mxu0 0.0
          %1555 = vmatprep.subr.mxu0 0.0
          %1556 = vmatpush1.msra.mxu0 0.0
          %1557 = vmatprep.subr.mxu0 0.0
          %1558 = vmatpush1.msra.mxu0 0.0
          %1559 = vmatprep.subr.mxu0 0.0
          %1560 = vmatpush1.msra.mxu0 0.0
          %1561 = vmatprep.subr.mxu0 0.0
          %1562 = vmatpush1.msra.mxu0 %v1529
          %1563 = vmatprep.subr.mxu0 0.0
          %1564 = vmatpush2.msra.mxu0 0.0
          %1565 = vmatprep.subr.mxu0 0.0
          %1566 = vmatpush2.msra.mxu0 0.0
          %1567 = vmatprep.subr.mxu0 0.0
          %1568 = vmatpush2.msra.mxu0 0.0
          %1569 = vmatprep.subr.mxu0 0.0
          %1570 = vmatpush2.msra.mxu0 0.0
          %1571 = vmatprep.subr.mxu0 0.0
          %1572 = vmatpush2.msra.mxu0 0.0
          %1573 = vmatprep.subr.mxu0 0.0
          %1574 = vmatpush2.msra.mxu0 0.0
          %1575 = vmatprep.subr.mxu0 0.0
          %1576 = vmatpush2.msra.mxu0 0.0
          %1577 = vmatprep.subr.mxu0 0.0
          %1578 = vmatpush2.msra.mxu0 0.0
          %1579 = vmatprep.subr.mxu0 0.0
          %1580 = vmatpush2.msra.mxu0 0.0
          %1581 = vmatprep.subr.mxu0 0.0
          %1582 = vmatpush2.msra.mxu0 0.0
          %1583 = vmatprep.subr.mxu0 0.0
          %1584 = vmatpush2.msra.mxu0 0.0
          %1585 = vmatprep.subr.mxu0 0.0
          %1586 = vmatpush2.msra.mxu0 0.0
          %1587 = vmatprep.subr.mxu0 0.0
          %1588 = vmatpush2.msra.mxu0 0.0
          %1589 = vmatprep.subr.mxu0 0.0
          %1590 = vmatpush2.msra.mxu0 0.0
          %1591 = vmatprep.subr.mxu0 0.0
          %1592 = vmatpush2.msra.mxu0 0.0
          %1593 = vmatprep.subr.mxu0 0.0
          %1594 = vmatpush2.msra.mxu0 0.0
          %1595 = vmatprep.mubr.f32.mxu0 0.0
          %1596 = vmatmul.mubr.f32.gmra.mxu0 %v1523
          %v1597 = vpop.f32.mrf.mxu0
          %v1598 = vadd.f32 %v1514, %v1597
          %v1599 = vpop.f32.mrf.mxu0
          %1600 = vmatprep.mubr.f32.mxu0 0.0
          %1601 = vmatmul.mubr.f32.gmra.mxu0 %v1526
          %v1602 = vpop.f32.mrf.mxu0
          %v1603 = vadd.f32 %v1519, %v1602
          %v1604 = vpop.f32.mrf.mxu0
          %1605 = vdwg.mxu0
          %v1606 = vld [vmem:[#allocation4] sm:$0x1]
          %v1608 = vlaneseq
          %v1609 = vshrl.u32 %v1608, 7
          %v1610 = vsub.s32 0, %v1609
          %v1611 = vrot.slane %v1606, %v1610
          %v1613 = vadd.f32 %v1598, %v1611
          %v1614 = vadd.f32 %v1603, %v1611
          %v1615 = vld [vmem:[%s8] sm:$0xff]
          %v1616 = vadd.f32 %v1613, %v1615
          %v1617 = vadd.f32 %v1614, %v1615
          %1618 = vst [vmem:[#allocation2] sm:$0xff] %v1616
          %1619 = vst [vmem:[#allocation2 + $0x8] sm:$0xff] %v1617
        $region164: #{t2vbert_forward.1} parent=127 // pred_fallthru
          _
        %v1620 = vld [vmem:[#allocation2] sm:$0xff]
        %v1621 = vld [vmem:[#allocation2 + $0x8] sm:$0xff]
        %v1622 = vpack.c.bf16 %v1621, %v1620
        %v1623 = vld [vmem:[%s946] sm:$0xff]
        %v1624 = vld [vmem:[%s946 + $0x8] sm:$0xf]
        %v1625 = vld [vmem:[%s946 + $0xc] sm:$0xff]
        %v1626 = vld [vmem:[%s946 + $0x14] sm:$0xf]
        %v1627 = vld [vmem:[%s946 + $0x18] sm:$0xff]
        %v1628 = vld [vmem:[%s946 + $0x20] sm:$0xf]
        %v1629 = vld [vmem:[%s946 + $0x24] sm:$0xff]
        %v1630 = vld [vmem:[%s946 + $0x2c] sm:$0xf]
        %v1631 = vld [vmem:[%s946 + $0x30] sm:$0xff]
        %v1632 = vld [vmem:[%s946 + $0x38] sm:$0xf]
        %v1633 = vld [vmem:[%s946 + $0x3c] sm:$0xff]
        %v1634 = vld [vmem:[%s946 + $0x44] sm:$0xf]
        %v1635 = vld [vmem:[%s946 + $0x48] sm:$0xff]
        %v1636 = vld [vmem:[%s946 + $0x50] sm:$0xf]
        %v1637 = vld [vmem:[%s946 + $0x54] sm:$0xff]
        %v1638 = vld [vmem:[%s946 + $0x5c] sm:$0xf]
        %v1639 = vld [vmem:[%s946 + $0x60] sm:$0xff]
        %v1640 = vld [vmem:[%s946 + $0x68] sm:$0xf]
        %v1641 = vld [vmem:[%s946 + $0x6c] sm:$0xff]
        %v1642 = vld [vmem:[%s946 + $0x74] sm:$0xf]
        %v1643 = vld [vmem:[%s946 + $0x78] sm:$0xff]
        %v1644 = vld [vmem:[%s946 + $0x80] sm:$0xf]
        %v1645 = vld [vmem:[%s946 + $0x84] sm:$0xff]
        %v1646 = vld [vmem:[%s946 + $0x8c] sm:$0xf]
        %v1647 = vld [vmem:[%s946 + $0x90] sm:$0xff]
        %v1648 = vld [vmem:[%s946 + $0x98] sm:$0xf]
        %v1649 = vld [vmem:[%s946 + $0x9c] sm:$0xff]
        %v1650 = vld [vmem:[%s946 + $0xa4] sm:$0xf]
        %v1651 = vld [vmem:[%s946 + $0xa8] sm:$0xff]
        %v1652 = vld [vmem:[%s946 + $0xb0] sm:$0xf]
        %v1653 = vld [vmem:[%s946 + $0xb4] sm:$0xff]
        %v1654 = vld [vmem:[%s946 + $0xbc] sm:$0xf]
        %v1655 = vld [vmem:[%s1083] sm:$0x7]
        %v1657 = vlaneseq
        %v1658 = vshrl.u32 %v1657, 7
        %v1659 = vsub.s32 0, %v1658
        %v1660 = vrot.slane %v1655, %v1659
        %v1661 = vlaneseq
        %v1662 = vshrl.u32 %v1661, 7
        %v1663 = vsub.s32 1, %v1662
        %v1664 = vrot.slane %v1655, %v1663
        %v1665 = vlaneseq
        %v1666 = vshrl.u32 %v1665, 7
        %v1667 = vsub.s32 2, %v1666
        %v1668 = vrot.slane %v1655, %v1667
        %v1704 = vunpack.c.l.b16 %v1623
        %v1705 = vunpack.c.h.b16 %v1623
        %v1706 = vunpack.c.l.b16 %v1624
        %v1707 = vunpack.c.l.b16 %v1625
        %v1708 = vunpack.c.h.b16 %v1625
        %v1709 = vunpack.c.l.b16 %v1626
        %v1710 = vunpack.c.l.b16 %v1627
        %v1711 = vunpack.c.h.b16 %v1627
        %v1712 = vunpack.c.l.b16 %v1628
        %v1713 = vunpack.c.l.b16 %v1629
        %v1714 = vunpack.c.h.b16 %v1629
        %v1715 = vunpack.c.l.b16 %v1630
        %v1716 = vunpack.c.l.b16 %v1631
        %v1717 = vunpack.c.h.b16 %v1631
        %v1718 = vunpack.c.l.b16 %v1632
        %v1719 = vunpack.c.l.b16 %v1633
        %v1720 = vunpack.c.h.b16 %v1633
        %v1721 = vunpack.c.l.b16 %v1634
        %v1722 = vunpack.c.l.b16 %v1635
        %v1723 = vunpack.c.h.b16 %v1635
        %v1724 = vunpack.c.l.b16 %v1636
        %v1725 = vunpack.c.l.b16 %v1637
        %v1726 = vunpack.c.h.b16 %v1637
        %v1727 = vunpack.c.l.b16 %v1638
        %v1728 = vunpack.c.l.b16 %v1639
        %v1729 = vunpack.c.h.b16 %v1639
        %v1730 = vunpack.c.l.b16 %v1640
        %v1731 = vunpack.c.l.b16 %v1641
        %v1732 = vunpack.c.h.b16 %v1641
        %v1733 = vunpack.c.l.b16 %v1642
        %v1734 = vunpack.c.l.b16 %v1643
        %v1735 = vunpack.c.h.b16 %v1643
        %v1736 = vunpack.c.l.b16 %v1644
        %v1737 = vunpack.c.l.b16 %v1645
        %v1738 = vunpack.c.h.b16 %v1645
        %v1739 = vunpack.c.l.b16 %v1646
        %v1740 = vunpack.c.l.b16 %v1647
        %v1741 = vunpack.c.h.b16 %v1647
        %v1742 = vunpack.c.l.b16 %v1648
        %v1743 = vunpack.c.l.b16 %v1649
        %v1744 = vunpack.c.h.b16 %v1649
        %v1745 = vunpack.c.l.b16 %v1650
        %v1746 = vunpack.c.l.b16 %v1651
        %v1747 = vunpack.c.h.b16 %v1651
        %v1748 = vunpack.c.l.b16 %v1652
        %v1749 = vunpack.c.l.b16 %v1653
        %v1750 = vunpack.c.h.b16 %v1653
        %v1751 = vunpack.c.l.b16 %v1654
        %v1752 = vpack.c.b16 %v1707, %v1704
        %v1753 = vpack.c.b16 %v1708, %v1705
        %v1754 = vpack.c.b16 %v1709, %v1706
        %v1755 = vpack.c.b16 %v1713, %v1710
        %v1756 = vpack.c.b16 %v1714, %v1711
        %v1757 = vpack.c.b16 %v1715, %v1712
        %v1758 = vpack.c.b16 %v1719, %v1716
        %v1759 = vpack.c.b16 %v1720, %v1717
        %v1760 = vpack.c.b16 %v1721, %v1718
        %v1761 = vpack.c.b16 %v1725, %v1722
        %v1762 = vpack.c.b16 %v1726, %v1723
        %v1763 = vpack.c.b16 %v1727, %v1724
        %v1764 = vpack.c.b16 %v1731, %v1728
        %v1765 = vpack.c.b16 %v1732, %v1729
        %v1766 = vpack.c.b16 %v1733, %v1730
        %v1767 = vpack.c.b16 %v1737, %v1734
        %v1768 = vpack.c.b16 %v1738, %v1735
        %v1769 = vpack.c.b16 %v1739, %v1736
        %v1770 = vpack.c.b16 %v1743, %v1740
        %v1771 = vpack.c.b16 %v1744, %v1741
        %v1772 = vpack.c.b16 %v1745, %v1742
        %v1773 = vpack.c.b16 %v1749, %v1746
        %v1774 = vpack.c.b16 %v1750, %v1747
        %v1775 = vpack.c.b16 %v1751, %v1748
        %1800 = vmatprep.subr.bf16.mxu0 %v1774
        %1801 = vmatpush1.bf16.msra.mxu0 %v1773
        %1802 = vmatprep.subr.bf16.mxu0 %v1771
        %1803 = vmatpush1.bf16.msra.mxu0 %v1770
        %1804 = vmatprep.subr.bf16.mxu0 %v1768
        %1805 = vmatpush1.bf16.msra.mxu0 %v1767
        %1806 = vmatprep.subr.bf16.mxu0 %v1765
        %1807 = vmatpush1.bf16.msra.mxu0 %v1764
        %1808 = vmatprep.subr.bf16.mxu0 %v1762
        %1809 = vmatpush1.bf16.msra.mxu0 %v1761
        %1810 = vmatprep.subr.bf16.mxu0 %v1759
        %1811 = vmatpush1.bf16.msra.mxu0 %v1758
        %1812 = vmatprep.subr.bf16.mxu0 %v1756
        %1813 = vmatpush1.bf16.msra.mxu0 %v1755
        %1814 = vmatprep.subr.bf16.mxu0 %v1753
        %1815 = vmatpush1.bf16.msra.mxu0 %v1752
        %1816 = vmatprep.subr.bf16.mxu0 0
        %1817 = vmatpush2.bf16.msra.mxu0 0
        %1818 = vmatprep.subr.bf16.mxu0 0
        %1819 = vmatpush2.bf16.msra.mxu0 0
        %1820 = vmatprep.subr.bf16.mxu0 0
        %1821 = vmatpush2.bf16.msra.mxu0 0
        %1822 = vmatprep.subr.bf16.mxu0 0
        %1823 = vmatpush2.bf16.msra.mxu0 0
        %1824 = vmatprep.subr.bf16.mxu0 0
        %1825 = vmatpush2.bf16.msra.mxu0 0
        %1826 = vmatprep.subr.bf16.mxu0 0
        %1827 = vmatpush2.bf16.msra.mxu0 0
        %1828 = vmatprep.subr.bf16.mxu0 0
        %1829 = vmatpush2.bf16.msra.mxu0 0
        %1830 = vmatprep.subr.bf16.mxu0 0
        %1831 = vmatpush2.bf16.msra.mxu0 0
        %1832 = vmatprep.mubr.bf16.mxu0 0
        %1833 = vmatmul.mubr.bf16.gmra.mxu0 %v1622
        %v1834 = vpop.f32.mrf.mxu0
        %v1835 = vadd.f32 %v1660, %v1834
        %v1836 = vpop.f32.mrf.mxu0
        %v1837 = vadd.f32 %v1664, %v1836
        %v1838 = vpop.f32.mrf.mxu0
        %v1839 = vadd.f32 %v1660, %v1838
        %v1840 = vpop.f32.mrf.mxu0
        %v1841 = vadd.f32 %v1664, %v1840
        %1842 = vdwg.mxu0
        %1843 = vmatprep.subr.bf16.mxu0 0
        %1844 = vmatpush1.bf16.msra.mxu0 %v1775
        %1845 = vmatprep.subr.bf16.mxu0 0
        %1846 = vmatpush1.bf16.msra.mxu0 %v1772
        %1847 = vmatprep.subr.bf16.mxu0 0
        %1848 = vmatpush1.bf16.msra.mxu0 %v1769
        %1849 = vmatprep.subr.bf16.mxu0 0
        %1850 = vmatpush1.bf16.msra.mxu0 %v1766
        %1851 = vmatprep.subr.bf16.mxu0 0
        %1852 = vmatpush1.bf16.msra.mxu0 %v1763
        %1853 = vmatprep.subr.bf16.mxu0 0
        %1854 = vmatpush1.bf16.msra.mxu0 %v1760
        %1855 = vmatprep.subr.bf16.mxu0 0
        %1856 = vmatpush1.bf16.msra.mxu0 %v1757
        %1857 = vmatprep.subr.bf16.mxu0 0
        %1858 = vmatpush1.bf16.msra.mxu0 %v1754
        %1859 = vmatprep.subr.bf16.mxu0 0
        %1860 = vmatpush2.bf16.msra.mxu0 0
        %1861 = vmatprep.subr.bf16.mxu0 0
        %1862 = vmatpush2.bf16.msra.mxu0 0
        %1863 = vmatprep.subr.bf16.mxu0 0
        %1864 = vmatpush2.bf16.msra.mxu0 0
        %1865 = vmatprep.subr.bf16.mxu0 0
        %1866 = vmatpush2.bf16.msra.mxu0 0
        %1867 = vmatprep.subr.bf16.mxu0 0
        %1868 = vmatpush2.bf16.msra.mxu0 0
        %1869 = vmatprep.subr.bf16.mxu0 0
        %1870 = vmatpush2.bf16.msra.mxu0 0
        %1871 = vmatprep.subr.bf16.mxu0 0
        %1872 = vmatpush2.bf16.msra.mxu0 0
        %1873 = vmatprep.subr.bf16.mxu0 0
        %1874 = vmatpush2.bf16.msra.mxu0 0
        %1875 = vmatprep.mubr.bf16.mxu0 0
        %1876 = vmatmul.mubr.bf16.gmra.mxu0 %v1622
        %v1877 = vpop.f32.mrf.mxu0
        %v1878 = vadd.f32 %v1668, %v1877
        %v1879 = vpop.f32.mrf.mxu0
        %v1880 = vpop.f32.mrf.mxu0
        %v1881 = vadd.f32 %v1668, %v1880
        %v1882 = vpop.f32.mrf.mxu0
        %1883 = vdwg.mxu0
        %v1884 = vld [vmem:[%s9] sm:$0xff]
        %v1885 = vld [vmem:[%s9 + $0x8] sm:$0xff]
        %v1886 = vld [vmem:[%s9 + $0x10] sm:$0xff]
        %v1887 = vld [vmem:[%s9 + $0x18] sm:$0xff]
        %v1888 = vld [vmem:[%s9 + $0x20] sm:$0xff]
        %v1889 = vld [vmem:[%s9 + $0x28] sm:$0xff]
        %v1890 = vld [vmem:[%s9 + $0x30] sm:$0xff]
        %v1891 = vld [vmem:[%s9 + $0x38] sm:$0xff]
        %v1892 = vld [vmem:[%s9 + $0x40] sm:$0xff]
        %v1893 = vld [vmem:[%s9 + $0x48] sm:$0xff]
        %v1894 = vld [vmem:[%s9 + $0x50] sm:$0xff]
        %v1895 = vld [vmem:[%s9 + $0x58] sm:$0xff]
        %v1896 = vld [vmem:[%s9 + $0x60] sm:$0xff]
        %v1897 = vld [vmem:[%s9 + $0x68] sm:$0xff]
        %v1898 = vld [vmem:[%s9 + $0x70] sm:$0xff]
        %v1899 = vld [vmem:[%s9 + $0x78] sm:$0xff]
        %v1900 = vld [vmem:[%s10] sm:$0xf]
        %v1901 = vmul.f32 %v1835, %v1837
        %v1902 = vmul.f32 %v1835, %v1841
        %v1903 = vmul.f32 %v1839, %v1837
        %v1904 = vmul.f32 %v1839, %v1841
        %1905 = vmatprep.subr.mxu0 0.0
        %1906 = vmatpush1.msra.mxu0 %v1899
        %1907 = vmatprep.subr.mxu0 0.0
        %1908 = vmatpush1.msra.mxu0 %v1898
        %1909 = vmatprep.subr.mxu0 0.0
        %1910 = vmatpush1.msra.mxu0 %v1897
        %1911 = vmatprep.subr.mxu0 0.0
        %1912 = vmatpush1.msra.mxu0 %v1896
        %1913 = vmatprep.subr.mxu0 0.0
        %1914 = vmatpush1.msra.mxu0 %v1895
        %1915 = vmatprep.subr.mxu0 0.0
        %1916 = vmatpush1.msra.mxu0 %v1894
        %1917 = vmatprep.subr.mxu0 0.0
        %1918 = vmatpush1.msra.mxu0 %v1893
        %1919 = vmatprep.subr.mxu0 0.0
        %1920 = vmatpush1.msra.mxu0 %v1892
        %1921 = vmatprep.subr.mxu0 0.0
        %1922 = vmatpush1.msra.mxu0 %v1891
        %1923 = vmatprep.subr.mxu0 0.0
        %1924 = vmatpush1.msra.mxu0 %v1890
        %1925 = vmatprep.subr.mxu0 0.0
        %1926 = vmatpush1.msra.mxu0 %v1889
        %1927 = vmatprep.subr.mxu0 0.0
        %1928 = vmatpush1.msra.mxu0 %v1888
        %1929 = vmatprep.subr.mxu0 0.0
        %1930 = vmatpush1.msra.mxu0 %v1887
        %1931 = vmatprep.subr.mxu0 0.0
        %1932 = vmatpush1.msra.mxu0 %v1886
        %1933 = vmatprep.subr.mxu0 0.0
        %1934 = vmatpush1.msra.mxu0 %v1885
        %1935 = vmatprep.subr.mxu0 0.0
        %1936 = vmatpush1.msra.mxu0 %v1884
        %1937 = vmatprep.subr.mxu0 0.0
        %1938 = vmatpush2.msra.mxu0 0.0
        %1939 = vmatprep.subr.mxu0 0.0
        %1940 = vmatpush2.msra.mxu0 0.0
        %1941 = vmatprep.subr.mxu0 0.0
        %1942 = vmatpush2.msra.mxu0 0.0
        %1943 = vmatprep.subr.mxu0 0.0
        %1944 = vmatpush2.msra.mxu0 0.0
        %1945 = vmatprep.subr.mxu0 0.0
        %1946 = vmatpush2.msra.mxu0 0.0
        %1947 = vmatprep.subr.mxu0 0.0
        %1948 = vmatpush2.msra.mxu0 0.0
        %1949 = vmatprep.subr.mxu0 0.0
        %1950 = vmatpush2.msra.mxu0 0.0
        %1951 = vmatprep.subr.mxu0 0.0
        %1952 = vmatpush2.msra.mxu0 0.0
        %1953 = vmatprep.subr.mxu0 0.0
        %1954 = vmatpush2.msra.mxu0 0.0
        %1955 = vmatprep.subr.mxu0 0.0
        %1956 = vmatpush2.msra.mxu0 0.0
        %1957 = vmatprep.subr.mxu0 0.0
        %1958 = vmatpush2.msra.mxu0 0.0
        %1959 = vmatprep.subr.mxu0 0.0
        %1960 = vmatpush2.msra.mxu0 0.0
        %1961 = vmatprep.subr.mxu0 0.0
        %1962 = vmatpush2.msra.mxu0 0.0
        %1963 = vmatprep.subr.mxu0 0.0
        %1964 = vmatpush2.msra.mxu0 0.0
        %1965 = vmatprep.subr.mxu0 0.0
        %1966 = vmatpush2.msra.mxu0 0.0
        %1967 = vmatprep.subr.mxu0 0.0
        %1968 = vmatpush2.msra.mxu0 0.0
        %1969 = vmatprep.mubr.f32.mxu0 0.0
        %1970 = vmatmul.mubr.f32.gmra.mxu0 %v1901
        %v1971 = vpop.f32.mrf.mxu0
        %v1972 = vadd.f32 0.0, %v1971
        %v1973 = vpop.f32.mrf.mxu0
        %1974 = vmatprep.mubr.f32.mxu0 0.0
        %1975 = vmatmul.mubr.f32.gmra.mxu0 %v1902
        %v1976 = vpop.f32.mrf.mxu0
        %v1977 = vadd.f32 0.0, %v1976
        %v1978 = vpop.f32.mrf.mxu0
        %1979 = vmatprep.mubr.f32.mxu0 0.0
        %1980 = vmatmul.mubr.f32.gmra.mxu0 %v1903
        %v1981 = vpop.f32.mrf.mxu0
        %v1982 = vadd.f32 0.0, %v1981
        %v1983 = vpop.f32.mrf.mxu0
        %1984 = vmatprep.mubr.f32.mxu0 0.0
        %1985 = vmatmul.mubr.f32.gmra.mxu0 %v1904
        %v1986 = vpop.f32.mrf.mxu0
        %v1987 = vadd.f32 0.0, %v1986
        %v1988 = vpop.f32.mrf.mxu0
        %1989 = vdwg.mxu0
        %v1990 = vmax.f32 %v1972, %v1977
        %v1991 = vsub.f32 %v1972, %v1990
        %v1992 = vmul.f32 %v1991, 1.442695
        %v1993 = vpow.pop %v1992
        %v1994 = vsub.f32 %v1977, %v1990
        %v1995 = vmul.f32 %v1994, 1.442695
        %v1996 = vpow.pop %v1995
        %v1997 = vadd.f32 %v1993, %v1996
        %v1998 = vrcp.pop %v1997
        %v1999 = vmul.f32 %v1993, %v1998
        %v2000 = vmul.f32 %v1996, %v1998
        %v2001 = vmax.f32 %v1982, %v1987
        %v2002 = vsub.f32 %v1982, %v2001
        %v2003 = vmul.f32 %v2002, 1.442695
        %v2004 = vpow.pop %v2003
        %v2005 = vsub.f32 %v1987, %v2001
        %v2006 = vmul.f32 %v2005, 1.442695
        %v2007 = vpow.pop %v2006
        %v2008 = vadd.f32 %v2004, %v2007
        %v2009 = vrcp.pop %v2008
        %v2010 = vmul.f32 %v2004, %v2009
        %v2011 = vmul.f32 %v2007, %v2009
        %vm2012 = vcmask 31744
        %v2014 = vsel %vm2012, %v1999, 0
        %v2017 = vsel %vm2012, %v2000, 0
        %v2020 = vsel %vm2012, %v2010, 0
        %v2023 = vsel %vm2012, %v2011, 0
        %vm2025 = vcmask 1043456
        %v2027 = vsel %vm2025, %v1900, 0
        %2029 = vmatprep.subr.mxu0 0.0
        %2030 = vmatpush1.msra.mxu0 0.0
        %2031 = vmatprep.subr.mxu0 0.0
        %2032 = vmatpush1.msra.mxu0 0.0
        %2033 = vmatprep.subr.mxu0 0.0
        %2034 = vmatpush1.msra.mxu0 0.0
        %2035 = vmatprep.subr.mxu0 0.0
        %2036 = vmatpush1.msra.mxu0 0.0
        %2037 = vmatprep.subr.mxu0 0.0
        %2038 = vmatpush1.msra.mxu0 0.0
        %2039 = vmatprep.subr.mxu0 0.0
        %2040 = vmatpush1.msra.mxu0 0.0
        %2041 = vmatprep.subr.mxu0 0.0
        %2042 = vmatpush1.msra.mxu0 0.0
        %2043 = vmatprep.subr.mxu0 0.0
        %2044 = vmatpush1.msra.mxu0 0.0
        %2045 = vmatprep.subr.mxu0 0.0
        %2046 = vmatpush1.msra.mxu0 0.0
        %2047 = vmatprep.subr.mxu0 0.0
        %2048 = vmatpush1.msra.mxu0 0.0
        %2049 = vmatprep.subr.mxu0 0.0
        %2050 = vmatpush1.msra.mxu0 0.0
        %2051 = vmatprep.subr.mxu0 0.0
        %2052 = vmatpush1.msra.mxu0 0.0
        %2053 = vmatprep.subr.mxu0 0.0
        %2054 = vmatpush1.msra.mxu0 0.0
        %2055 = vmatprep.subr.mxu0 0.0
        %2056 = vmatpush1.msra.mxu0 0.0
        %2057 = vmatprep.subr.mxu0 0.0
        %2058 = vmatpush1.msra.mxu0 0.0
        %2059 = vmatprep.subr.mxu0 0.0
        %2060 = vmatpush1.msra.mxu0 %v2027
        %2061 = vmatprep.subr.mxu0 0.0
        %2062 = vmatpush2.msra.mxu0 0.0
        %2063 = vmatprep.subr.mxu0 0.0
        %2064 = vmatpush2.msra.mxu0 0.0
        %2065 = vmatprep.subr.mxu0 0.0
        %2066 = vmatpush2.msra.mxu0 0.0
        %2067 = vmatprep.subr.mxu0 0.0
        %2068 = vmatpush2.msra.mxu0 0.0
        %2069 = vmatprep.subr.mxu0 0.0
        %2070 = vmatpush2.msra.mxu0 0.0
        %2071 = vmatprep.subr.mxu0 0.0
        %2072 = vmatpush2.msra.mxu0 0.0
        %2073 = vmatprep.subr.mxu0 0.0
        %2074 = vmatpush2.msra.mxu0 0.0
        %2075 = vmatprep.subr.mxu0 0.0
        %2076 = vmatpush2.msra.mxu0 0.0
        %2077 = vmatprep.subr.mxu0 0.0
        %2078 = vmatpush2.msra.mxu0 0.0
        %2079 = vmatprep.subr.mxu0 0.0
        %2080 = vmatpush2.msra.mxu0 0.0
        %2081 = vmatprep.subr.mxu0 0.0
        %2082 = vmatpush2.msra.mxu0 0.0
        %2083 = vmatprep.subr.mxu0 0.0
        %2084 = vmatpush2.msra.mxu0 0.0
        %2085 = vmatprep.subr.mxu0 0.0
        %2086 = vmatpush2.msra.mxu0 0.0
        %2087 = vmatprep.subr.mxu0 0.0
        %2088 = vmatpush2.msra.mxu0 0.0
        %2089 = vmatprep.subr.mxu0 0.0
        %2090 = vmatpush2.msra.mxu0 0.0
        %2091 = vmatprep.subr.mxu0 0.0
        %2092 = vmatpush2.msra.mxu0 0.0
        %2093 = vmatprep.mubr.f32.mxu0 0.0
        %2094 = vmatmul.mubr.f32.gmra.mxu0 %v2014
        %v2095 = vpop.f32.mrf.mxu0
        %v2096 = vadd.f32 0.0, %v2095
        %v2097 = vpop.f32.mrf.mxu0
        %2098 = vmatprep.mubr.f32.mxu0 0.0
        %2099 = vmatmul.mubr.f32.gmra.mxu0 %v2017
        %v2100 = vpop.f32.mrf.mxu0
        %v2101 = vadd.f32 0.0, %v2100
        %v2102 = vpop.f32.mrf.mxu0
        %2103 = vmatprep.mubr.f32.mxu0 0.0
        %2104 = vmatmul.mubr.f32.gmra.mxu0 %v2020
        %v2105 = vpop.f32.mrf.mxu0
        %v2106 = vadd.f32 0.0, %v2105
        %v2107 = vpop.f32.mrf.mxu0
        %2108 = vmatprep.mubr.f32.mxu0 0.0
        %2109 = vmatmul.mubr.f32.gmra.mxu0 %v2023
        %v2110 = vpop.f32.mrf.mxu0
        %v2111 = vadd.f32 0.0, %v2110
        %v2112 = vpop.f32.mrf.mxu0
        %2113 = vdwg.mxu0
        %v2114 = vmul.f32 %v2096, %v1878
        %v2115 = vmul.f32 %v2101, %v1881
        %v2116 = vadd.f32 %v2114, %v2115
        %v2117 = vmul.f32 %v2106, %v1878
        %v2118 = vmul.f32 %v2111, %v1881
        %v2119 = vadd.f32 %v2117, %v2118
        %v2120 = vpack.c.bf16 %v2119, %v2116
        %v2121 = vld [vmem:[%s955] sm:$0xf]
        %v2122 = vld [vmem:[%s955 + $0x4] sm:$0xf]
        %v2123 = vld [vmem:[%s955 + $0x8] sm:$0xf]
        %v2124 = vld [vmem:[%s955 + $0xc] sm:$0xf]
        %v2125 = vld [vmem:[%s955 + $0x10] sm:$0xf]
        %v2126 = vld [vmem:[%s955 + $0x14] sm:$0xf]
        %v2127 = vld [vmem:[%s955 + $0x18] sm:$0xf]
        %v2128 = vld [vmem:[%s955 + $0x1c] sm:$0xf]
        %v2129 = vld [vmem:[%s955 + $0x20] sm:$0xf]
        %v2130 = vld [vmem:[%s955 + $0x24] sm:$0xf]
        %v2131 = vld [vmem:[%s955 + $0x28] sm:$0xf]
        %v2132 = vld [vmem:[%s955 + $0x2c] sm:$0xf]
        %v2133 = vld [vmem:[%s955 + $0x30] sm:$0xf]
        %v2134 = vld [vmem:[%s955 + $0x34] sm:$0xf]
        %v2135 = vld [vmem:[%s955 + $0x38] sm:$0xf]
        %v2136 = vld [vmem:[%s955 + $0x3c] sm:$0xf]
        %v2137 = vld [vmem:[%s1086] sm:$0x1]
        %v2139 = vlaneseq
        %v2140 = vshrl.u32 %v2139, 7
        %v2141 = vsub.s32 0, %v2140
        %v2142 = vrot.slane %v2137, %v2141
        %v2160 = vunpack.c.l.b16 %v2121
        %v2161 = vunpack.c.l.b16 %v2122
        %v2162 = vunpack.c.l.b16 %v2123
        %v2163 = vunpack.c.l.b16 %v2124
        %v2164 = vunpack.c.l.b16 %v2125
        %v2165 = vunpack.c.l.b16 %v2126
        %v2166 = vunpack.c.l.b16 %v2127
        %v2167 = vunpack.c.l.b16 %v2128
        %v2168 = vunpack.c.l.b16 %v2129
        %v2169 = vunpack.c.l.b16 %v2130
        %v2170 = vunpack.c.l.b16 %v2131
        %v2171 = vunpack.c.l.b16 %v2132
        %v2172 = vunpack.c.l.b16 %v2133
        %v2173 = vunpack.c.l.b16 %v2134
        %v2174 = vunpack.c.l.b16 %v2135
        %v2175 = vunpack.c.l.b16 %v2136
        %v2176 = vpack.c.b16 %v2161, %v2160
        %v2177 = vpack.c.b16 %v2163, %v2162
        %v2178 = vpack.c.b16 %v2165, %v2164
        %v2179 = vpack.c.b16 %v2167, %v2166
        %v2180 = vpack.c.b16 %v2169, %v2168
        %v2181 = vpack.c.b16 %v2171, %v2170
        %v2182 = vpack.c.b16 %v2173, %v2172
        %v2183 = vpack.c.b16 %v2175, %v2174
        %2192 = vmatprep.subr.bf16.mxu0 0
        %2193 = vmatpush1.bf16.msra.mxu0 %v2183
        %2194 = vmatprep.subr.bf16.mxu0 0
        %2195 = vmatpush1.bf16.msra.mxu0 %v2182
        %2196 = vmatprep.subr.bf16.mxu0 0
        %2197 = vmatpush1.bf16.msra.mxu0 %v2181
        %2198 = vmatprep.subr.bf16.mxu0 0
        %2199 = vmatpush1.bf16.msra.mxu0 %v2180
        %2200 = vmatprep.subr.bf16.mxu0 0
        %2201 = vmatpush1.bf16.msra.mxu0 %v2179
        %2202 = vmatprep.subr.bf16.mxu0 0
        %2203 = vmatpush1.bf16.msra.mxu0 %v2178
        %2204 = vmatprep.subr.bf16.mxu0 0
        %2205 = vmatpush1.bf16.msra.mxu0 %v2177
        %2206 = vmatprep.subr.bf16.mxu0 0
        %2207 = vmatpush1.bf16.msra.mxu0 %v2176
        %2208 = vmatprep.subr.bf16.mxu0 0
        %2209 = vmatpush2.bf16.msra.mxu0 0
        %2210 = vmatprep.subr.bf16.mxu0 0
        %2211 = vmatpush2.bf16.msra.mxu0 0
        %2212 = vmatprep.subr.bf16.mxu0 0
        %2213 = vmatpush2.bf16.msra.mxu0 0
        %2214 = vmatprep.subr.bf16.mxu0 0
        %2215 = vmatpush2.bf16.msra.mxu0 0
        %2216 = vmatprep.subr.bf16.mxu0 0
        %2217 = vmatpush2.bf16.msra.mxu0 0
        %2218 = vmatprep.subr.bf16.mxu0 0
        %2219 = vmatpush2.bf16.msra.mxu0 0
        %2220 = vmatprep.subr.bf16.mxu0 0
        %2221 = vmatpush2.bf16.msra.mxu0 0
        %2222 = vmatprep.subr.bf16.mxu0 0
        %2223 = vmatpush2.bf16.msra.mxu0 0
        %2224 = vmatprep.mubr.bf16.mxu0 0
        %2225 = vmatmul.mubr.bf16.gmra.mxu0 %v2120
        %v2226 = vpop.f32.mrf.mxu0
        %v2227 = vadd.f32 %v2142, %v2226
        %v2228 = vpop.f32.mrf.mxu0
        %v2229 = vpop.f32.mrf.mxu0
        %v2230 = vadd.f32 %v2142, %v2229
        %v2231 = vpop.f32.mrf.mxu0
        %2232 = vdwg.mxu0
        %v2233 = vadd.f32 %v1620, %v2227
        %v2234 = vadd.f32 %v1621, %v2230
        %v2235 = vld [vmem:[%s1089] sm:$0x1]
        %v2236 = vld [vmem:[%s1092] sm:$0x1]
        %2237 = vadd.xlane.f32.xlu0 %v2233
        %v2238 = vpop.xlane.xlu0 %2237
        %2239 = vadd.xlane.f32.xlu0 %v2234
        %v2240 = vpop.xlane.xlu0 %2239
        %v2241 = vrcp.pop 128.0
        %v2242 = vmul.f32 %v2238, %v2241
        %v2243 = vmul.f32 %v2240, %v2241
        %v2244 = vsub.f32 %v2233, %v2242
        %v2245 = vsub.f32 %v2234, %v2243
        %v2246 = vmul.f32 %v2244, %v2244
        %v2247 = vmul.f32 %v2245, %v2245
        %2248 = vadd.xlane.f32.xlu0 %v2246
        %v2249 = vpop.xlane.xlu0 %2248
        %2250 = vadd.xlane.f32.xlu0 %v2247
        %v2251 = vpop.xlane.xlu0 %2250
        %v2252 = vmul.f32 %v2249, %v2241
        %v2253 = vmul.f32 %v2251, %v2241
        %v2254 = vadd.f32 %v2252, 1e-05
        %v2255 = vadd.f32 %v2253, 1e-05
        %v2256 = vrsqrt.pop %v2254
        %v2257 = vrsqrt.pop %v2255
        %v2258 = vmul.f32 %v2244, %v2256
        %v2259 = vmul.f32 %v2245, %v2257
        %v2261 = vlaneseq
        %v2262 = vshrl.u32 %v2261, 7
        %v2263 = vsub.s32 0, %v2262
        %v2264 = vrot.slane %v2235, %v2263
        %v2266 = vmul.f32 %v2258, %v2264
        %v2267 = vmul.f32 %v2259, %v2264
        %v2269 = vlaneseq
        %v2270 = vshrl.u32 %v2269, 7
        %v2271 = vsub.s32 0, %v2270
        %v2272 = vrot.slane %v2236, %v2271
        %v2274 = vadd.f32 %v2266, %v2272
        %v2275 = vadd.f32 %v2267, %v2272
        %v2276 = vpack.c.bf16 %v2275, %v2274
        %v2277 = vld [vmem:[%s964] sm:$0xff]
        %v2278 = vld [vmem:[%s964 + $0x8] sm:$0xff]
        %v2279 = vld [vmem:[%s964 + $0x40] sm:$0xff]
        %v2280 = vld [vmem:[%s964 + $0x48] sm:$0xff]
        %v2281 = vld [vmem:[%s964 + $0x80] sm:$0xff]
        %v2282 = vld [vmem:[%s964 + $0x88] sm:$0xff]
        %v2283 = vld [vmem:[%s964 + $0xc0] sm:$0xff]
        %v2284 = vld [vmem:[%s964 + $0xc8] sm:$0xff]
        %v2285 = vld [vmem:[%s964 + $0x100] sm:$0xff]
        %v2286 = vld [vmem:[%s964 + $0x108] sm:$0xff]
        %v2287 = vld [vmem:[%s964 + $0x140] sm:$0xff]
        %v2288 = vld [vmem:[%s964 + $0x148] sm:$0xff]
        %v2289 = vld [vmem:[%s964 + $0x180] sm:$0xff]
        %v2290 = vld [vmem:[%s964 + $0x188] sm:$0xff]
        %v2291 = vld [vmem:[%s964 + $0x1c0] sm:$0xff]
        %v2292 = vld [vmem:[%s964 + $0x1c8] sm:$0xff]
        %v2293 = vld [vmem:[%s964 + $0x200] sm:$0xff]
        %v2294 = vld [vmem:[%s964 + $0x208] sm:$0xff]
        %v2295 = vld [vmem:[%s964 + $0x240] sm:$0xff]
        %v2296 = vld [vmem:[%s964 + $0x248] sm:$0xff]
        %v2297 = vld [vmem:[%s964 + $0x280] sm:$0xff]
        %v2298 = vld [vmem:[%s964 + $0x288] sm:$0xff]
        %v2299 = vld [vmem:[%s964 + $0x2c0] sm:$0xff]
        %v2300 = vld [vmem:[%s964 + $0x2c8] sm:$0xff]
        %v2301 = vld [vmem:[%s964 + $0x300] sm:$0xff]
        %v2302 = vld [vmem:[%s964 + $0x308] sm:$0xff]
        %v2303 = vld [vmem:[%s964 + $0x340] sm:$0xff]
        %v2304 = vld [vmem:[%s964 + $0x348] sm:$0xff]
        %v2305 = vld [vmem:[%s964 + $0x380] sm:$0xff]
        %v2306 = vld [vmem:[%s964 + $0x388] sm:$0xff]
        %v2307 = vld [vmem:[%s964 + $0x3c0] sm:$0xff]
        %v2308 = vld [vmem:[%s964 + $0x3c8] sm:$0xff]
        %v2309 = vld [vmem:[%s1096] sm:$0xf]
        %v2311 = vlaneseq
        %v2312 = vshrl.u32 %v2311, 7
        %v2313 = vsub.s32 0, %v2312
        %v2314 = vrot.slane %v2309, %v2313
        %v2315 = vlaneseq
        %v2316 = vshrl.u32 %v2315, 7
        %v2317 = vsub.s32 1, %v2316
        %v2318 = vrot.slane %v2309, %v2317
        %v2319 = vlaneseq
        %v2320 = vshrl.u32 %v2319, 7
        %v2321 = vsub.s32 2, %v2320
        %v2322 = vrot.slane %v2309, %v2321
        %v2323 = vlaneseq
        %v2324 = vshrl.u32 %v2323, 7
        %v2325 = vsub.s32 3, %v2324
        %v2326 = vrot.slane %v2309, %v2325
        %v2363 = vunpack.c.l.b16 %v2277
        %v2364 = vunpack.c.h.b16 %v2277
        %v2365 = vunpack.c.l.b16 %v2278
        %v2366 = vunpack.c.h.b16 %v2278
        %v2367 = vunpack.c.l.b16 %v2279
        %v2368 = vunpack.c.h.b16 %v2279
        %v2369 = vunpack.c.l.b16 %v2280
        %v2370 = vunpack.c.h.b16 %v2280
        %v2371 = vunpack.c.l.b16 %v2281
        %v2372 = vunpack.c.h.b16 %v2281
        %v2373 = vunpack.c.l.b16 %v2282
        %v2374 = vunpack.c.h.b16 %v2282
        %v2375 = vunpack.c.l.b16 %v2283
        %v2376 = vunpack.c.h.b16 %v2283
        %v2377 = vunpack.c.l.b16 %v2284
        %v2378 = vunpack.c.h.b16 %v2284
        %v2379 = vunpack.c.l.b16 %v2285
        %v2380 = vunpack.c.h.b16 %v2285
        %v2381 = vunpack.c.l.b16 %v2286
        %v2382 = vunpack.c.h.b16 %v2286
        %v2383 = vunpack.c.l.b16 %v2287
        %v2384 = vunpack.c.h.b16 %v2287
        %v2385 = vunpack.c.l.b16 %v2288
        %v2386 = vunpack.c.h.b16 %v2288
        %v2387 = vunpack.c.l.b16 %v2289
        %v2388 = vunpack.c.h.b16 %v2289
        %v2389 = vunpack.c.l.b16 %v2290
        %v2390 = vunpack.c.h.b16 %v2290
        %v2391 = vunpack.c.l.b16 %v2291
        %v2392 = vunpack.c.h.b16 %v2291
        %v2393 = vunpack.c.l.b16 %v2292
        %v2394 = vunpack.c.h.b16 %v2292
        %v2395 = vunpack.c.l.b16 %v2293
        %v2396 = vunpack.c.h.b16 %v2293
        %v2397 = vunpack.c.l.b16 %v2294
        %v2398 = vunpack.c.h.b16 %v2294
        %v2399 = vunpack.c.l.b16 %v2295
        %v2400 = vunpack.c.h.b16 %v2295
        %v2401 = vunpack.c.l.b16 %v2296
        %v2402 = vunpack.c.h.b16 %v2296
        %v2403 = vunpack.c.l.b16 %v2297
        %v2404 = vunpack.c.h.b16 %v2297
        %v2405 = vunpack.c.l.b16 %v2298
        %v2406 = vunpack.c.h.b16 %v2298
        %v2407 = vunpack.c.l.b16 %v2299
        %v2408 = vunpack.c.h.b16 %v2299
        %v2409 = vunpack.c.l.b16 %v2300
        %v2410 = vunpack.c.h.b16 %v2300
        %v2411 = vunpack.c.l.b16 %v2301
        %v2412 = vunpack.c.h.b16 %v2301
        %v2413 = vunpack.c.l.b16 %v2302
        %v2414 = vunpack.c.h.b16 %v2302
        %v2415 = vunpack.c.l.b16 %v2303
        %v2416 = vunpack.c.h.b16 %v2303
        %v2417 = vunpack.c.l.b16 %v2304
        %v2418 = vunpack.c.h.b16 %v2304
        %v2419 = vunpack.c.l.b16 %v2305
        %v2420 = vunpack.c.h.b16 %v2305
        %v2421 = vunpack.c.l.b16 %v2306
        %v2422 = vunpack.c.h.b16 %v2306
        %v2423 = vunpack.c.l.b16 %v2307
        %v2424 = vunpack.c.h.b16 %v2307
        %v2425 = vunpack.c.l.b16 %v2308
        %v2426 = vunpack.c.h.b16 %v2308
        %v2427 = vpack.c.b16 %v2367, %v2363
        %v2428 = vpack.c.b16 %v2368, %v2364
        %v2429 = vpack.c.b16 %v2369, %v2365
        %v2430 = vpack.c.b16 %v2370, %v2366
        %v2431 = vpack.c.b16 %v2375, %v2371
        %v2432 = vpack.c.b16 %v2376, %v2372
        %v2433 = vpack.c.b16 %v2377, %v2373
        %v2434 = vpack.c.b16 %v2378, %v2374
        %v2435 = vpack.c.b16 %v2383, %v2379
        %v2436 = vpack.c.b16 %v2384, %v2380
        %v2437 = vpack.c.b16 %v2385, %v2381
        %v2438 = vpack.c.b16 %v2386, %v2382
        %v2439 = vpack.c.b16 %v2391, %v2387
        %v2440 = vpack.c.b16 %v2392, %v2388
        %v2441 = vpack.c.b16 %v2393, %v2389
        %v2442 = vpack.c.b16 %v2394, %v2390
        %v2443 = vpack.c.b16 %v2399, %v2395
        %v2444 = vpack.c.b16 %v2400, %v2396
        %v2445 = vpack.c.b16 %v2401, %v2397
        %v2446 = vpack.c.b16 %v2402, %v2398
        %v2447 = vpack.c.b16 %v2407, %v2403
        %v2448 = vpack.c.b16 %v2408, %v2404
        %v2449 = vpack.c.b16 %v2409, %v2405
        %v2450 = vpack.c.b16 %v2410, %v2406
        %v2451 = vpack.c.b16 %v2415, %v2411
        %v2452 = vpack.c.b16 %v2416, %v2412
        %v2453 = vpack.c.b16 %v2417, %v2413
        %v2454 = vpack.c.b16 %v2418, %v2414
        %v2455 = vpack.c.b16 %v2423, %v2419
        %v2456 = vpack.c.b16 %v2424, %v2420
        %v2457 = vpack.c.b16 %v2425, %v2421
        %v2458 = vpack.c.b16 %v2426, %v2422
        %2491 = vmatprep.subr.bf16.mxu0 %v2456
        %2492 = vmatpush1.bf16.msra.mxu0 %v2455
        %2493 = vmatprep.subr.bf16.mxu0 %v2452
        %2494 = vmatpush1.bf16.msra.mxu0 %v2451
        %2495 = vmatprep.subr.bf16.mxu0 %v2448
        %2496 = vmatpush1.bf16.msra.mxu0 %v2447
        %2497 = vmatprep.subr.bf16.mxu0 %v2444
        %2498 = vmatpush1.bf16.msra.mxu0 %v2443
        %2499 = vmatprep.subr.bf16.mxu0 %v2440
        %2500 = vmatpush1.bf16.msra.mxu0 %v2439
        %2501 = vmatprep.subr.bf16.mxu0 %v2436
        %2502 = vmatpush1.bf16.msra.mxu0 %v2435
        %2503 = vmatprep.subr.bf16.mxu0 %v2432
        %2504 = vmatpush1.bf16.msra.mxu0 %v2431
        %2505 = vmatprep.subr.bf16.mxu0 %v2428
        %2506 = vmatpush1.bf16.msra.mxu0 %v2427
        %2507 = vmatprep.subr.bf16.mxu0 0
        %2508 = vmatpush2.bf16.msra.mxu0 0
        %2509 = vmatprep.subr.bf16.mxu0 0
        %2510 = vmatpush2.bf16.msra.mxu0 0
        %2511 = vmatprep.subr.bf16.mxu0 0
        %2512 = vmatpush2.bf16.msra.mxu0 0
        %2513 = vmatprep.subr.bf16.mxu0 0
        %2514 = vmatpush2.bf16.msra.mxu0 0
        %2515 = vmatprep.subr.bf16.mxu0 0
        %2516 = vmatpush2.bf16.msra.mxu0 0
        %2517 = vmatprep.subr.bf16.mxu0 0
        %2518 = vmatpush2.bf16.msra.mxu0 0
        %2519 = vmatprep.subr.bf16.mxu0 0
        %2520 = vmatpush2.bf16.msra.mxu0 0
        %2521 = vmatprep.subr.bf16.mxu0 0
        %2522 = vmatpush2.bf16.msra.mxu0 0
        %2523 = vmatprep.mubr.bf16.mxu0 0
        %2524 = vmatmul.mubr.bf16.gmra.mxu0 %v2276
        %v2525 = vpop.f32.mrf.mxu0
        %v2526 = vadd.f32 %v2314, %v2525
        %v2527 = vpop.f32.mrf.mxu0
        %v2528 = vadd.f32 %v2318, %v2527
        %v2529 = vpop.f32.mrf.mxu0
        %v2530 = vadd.f32 %v2314, %v2529
        %v2531 = vpop.f32.mrf.mxu0
        %v2532 = vadd.f32 %v2318, %v2531
        %2533 = vdwg.mxu0
        %2534 = vmatprep.subr.bf16.mxu0 %v2458
        %2535 = vmatpush1.bf16.msra.mxu0 %v2457
        %2536 = vmatprep.subr.bf16.mxu0 %v2454
        %2537 = vmatpush1.bf16.msra.mxu0 %v2453
        %2538 = vmatprep.subr.bf16.mxu0 %v2450
        %2539 = vmatpush1.bf16.msra.mxu0 %v2449
        %2540 = vmatprep.subr.bf16.mxu0 %v2446
        %2541 = vmatpush1.bf16.msra.mxu0 %v2445
        %2542 = vmatprep.subr.bf16.mxu0 %v2442
        %2543 = vmatpush1.bf16.msra.mxu0 %v2441
        %2544 = vmatprep.subr.bf16.mxu0 %v2438
        %2545 = vmatpush1.bf16.msra.mxu0 %v2437
        %2546 = vmatprep.subr.bf16.mxu0 %v2434
        %2547 = vmatpush1.bf16.msra.mxu0 %v2433
        %2548 = vmatprep.subr.bf16.mxu0 %v2430
        %2549 = vmatpush1.bf16.msra.mxu0 %v2429
        %2550 = vmatprep.subr.bf16.mxu0 0
        %2551 = vmatpush2.bf16.msra.mxu0 0
        %2552 = vmatprep.subr.bf16.mxu0 0
        %2553 = vmatpush2.bf16.msra.mxu0 0
        %2554 = vmatprep.subr.bf16.mxu0 0
        %2555 = vmatpush2.bf16.msra.mxu0 0
        %2556 = vmatprep.subr.bf16.mxu0 0
        %2557 = vmatpush2.bf16.msra.mxu0 0
        %2558 = vmatprep.subr.bf16.mxu0 0
        %2559 = vmatpush2.bf16.msra.mxu0 0
        %2560 = vmatprep.subr.bf16.mxu0 0
        %2561 = vmatpush2.bf16.msra.mxu0 0
        %2562 = vmatprep.subr.bf16.mxu0 0
        %2563 = vmatpush2.bf16.msra.mxu0 0
        %2564 = vmatprep.subr.bf16.mxu0 0
        %2565 = vmatpush2.bf16.msra.mxu0 0
        %2566 = vmatprep.mubr.bf16.mxu0 0
        %2567 = vmatmul.mubr.bf16.gmra.mxu0 %v2276
        %v2568 = vpop.f32.mrf.mxu0
        %v2569 = vadd.f32 %v2322, %v2568
        %v2570 = vpop.f32.mrf.mxu0
        %v2571 = vadd.f32 %v2326, %v2570
        %v2572 = vpop.f32.mrf.mxu0
        %v2573 = vadd.f32 %v2322, %v2572
        %v2574 = vpop.f32.mrf.mxu0
        %v2575 = vadd.f32 %v2326, %v2574
        %2576 = vdwg.mxu0
        %v2577 = vmax.f32 %v2526, 0.0
        %v2578 = vmax.f32 %v2528, 0.0
        %v2579 = vmax.f32 %v2569, 0.0
        %v2580 = vmax.f32 %v2571, 0.0
        %v2581 = vmax.f32 %v2530, 0.0
        %v2582 = vmax.f32 %v2532, 0.0
        %v2583 = vmax.f32 %v2573, 0.0
        %v2584 = vmax.f32 %v2575, 0.0
        %v2585 = vpack.c.bf16 %v2581, %v2577
        %v2586 = vpack.c.bf16 %v2582, %v2578
        %v2587 = vpack.c.bf16 %v2583, %v2579
        %v2588 = vpack.c.bf16 %v2584, %v2580
        %v2589 = vld [vmem:[%s973] sm:$0xf]
        %v2590 = vld [vmem:[%s973 + $0x4] sm:$0xf]
        %v2591 = vld [vmem:[%s973 + $0x8] sm:$0xf]
        %v2592 = vld [vmem:[%s973 + $0xc] sm:$0xf]
        %v2593 = vld [vmem:[%s973 + $0x10] sm:$0xf]
        %v2594 = vld [vmem:[%s973 + $0x14] sm:$0xf]
        %v2595 = vld [vmem:[%s973 + $0x18] sm:$0xf]
        %v2596 = vld [vmem:[%s973 + $0x1c] sm:$0xf]
        %v2597 = vld [vmem:[%s973 + $0x20] sm:$0xf]
        %v2598 = vld [vmem:[%s973 + $0x24] sm:$0xf]
        %v2599 = vld [vmem:[%s973 + $0x28] sm:$0xf]
        %v2600 = vld [vmem:[%s973 + $0x2c] sm:$0xf]
        %v2601 = vld [vmem:[%s973 + $0x30] sm:$0xf]
        %v2602 = vld [vmem:[%s973 + $0x34] sm:$0xf]
        %v2603 = vld [vmem:[%s973 + $0x38] sm:$0xf]
        %v2604 = vld [vmem:[%s973 + $0x3c] sm:$0xf]
        %v2605 = vld [vmem:[%s973 + $0x40] sm:$0xf]
        %v2606 = vld [vmem:[%s973 + $0x44] sm:$0xf]
        %v2607 = vld [vmem:[%s973 + $0x48] sm:$0xf]
        %v2608 = vld [vmem:[%s973 + $0x4c] sm:$0xf]
        %v2609 = vld [vmem:[%s973 + $0x50] sm:$0xf]
        %v2610 = vld [vmem:[%s973 + $0x54] sm:$0xf]
        %v2611 = vld [vmem:[%s973 + $0x58] sm:$0xf]
        %v2612 = vld [vmem:[%s973 + $0x5c] sm:$0xf]
        %v2613 = vld [vmem:[%s973 + $0x60] sm:$0xf]
        %v2614 = vld [vmem:[%s973 + $0x64] sm:$0xf]
        %v2615 = vld [vmem:[%s973 + $0x68] sm:$0xf]
        %v2616 = vld [vmem:[%s973 + $0x6c] sm:$0xf]
        %v2617 = vld [vmem:[%s973 + $0x70] sm:$0xf]
        %v2618 = vld [vmem:[%s973 + $0x74] sm:$0xf]
        %v2619 = vld [vmem:[%s973 + $0x78] sm:$0xf]
        %v2620 = vld [vmem:[%s973 + $0x7c] sm:$0xf]
        %v2621 = vld [vmem:[%s973 + $0x80] sm:$0xf]
        %v2622 = vld [vmem:[%s973 + $0x84] sm:$0xf]
        %v2623 = vld [vmem:[%s973 + $0x88] sm:$0xf]
        %v2624 = vld [vmem:[%s973 + $0x8c] sm:$0xf]
        %v2625 = vld [vmem:[%s973 + $0x90] sm:$0xf]
        %v2626 = vld [vmem:[%s973 + $0x94] sm:$0xf]
        %v2627 = vld [vmem:[%s973 + $0x98] sm:$0xf]
        %v2628 = vld [vmem:[%s973 + $0x9c] sm:$0xf]
        %v2629 = vld [vmem:[%s973 + $0xa0] sm:$0xf]
        %v2630 = vld [vmem:[%s973 + $0xa4] sm:$0xf]
        %v2631 = vld [vmem:[%s973 + $0xa8] sm:$0xf]
        %v2632 = vld [vmem:[%s973 + $0xac] sm:$0xf]
        %v2633 = vld [vmem:[%s973 + $0xb0] sm:$0xf]
        %v2634 = vld [vmem:[%s973 + $0xb4] sm:$0xf]
        %v2635 = vld [vmem:[%s973 + $0xb8] sm:$0xf]
        %v2636 = vld [vmem:[%s973 + $0xbc] sm:$0xf]
        %v2637 = vld [vmem:[%s973 + $0xc0] sm:$0xf]
        %v2638 = vld [vmem:[%s973 + $0xc4] sm:$0xf]
        %v2639 = vld [vmem:[%s973 + $0xc8] sm:$0xf]
        %v2640 = vld [vmem:[%s973 + $0xcc] sm:$0xf]
        %v2641 = vld [vmem:[%s973 + $0xd0] sm:$0xf]
        %v2642 = vld [vmem:[%s973 + $0xd4] sm:$0xf]
        %v2643 = vld [vmem:[%s973 + $0xd8] sm:$0xf]
        %v2644 = vld [vmem:[%s973 + $0xdc] sm:$0xf]
        %v2645 = vld [vmem:[%s973 + $0xe0] sm:$0xf]
        %v2646 = vld [vmem:[%s973 + $0xe4] sm:$0xf]
        %v2647 = vld [vmem:[%s973 + $0xe8] sm:$0xf]
        %v2648 = vld [vmem:[%s973 + $0xec] sm:$0xf]
        %v2649 = vld [vmem:[%s973 + $0xf0] sm:$0xf]
        %v2650 = vld [vmem:[%s973 + $0xf4] sm:$0xf]
        %v2651 = vld [vmem:[%s973 + $0xf8] sm:$0xf]
        %v2652 = vld [vmem:[%s973 + $0xfc] sm:$0xf]
        %v2653 = vld [vmem:[%s964 + $0x10] sm:$0xff]
        %v2654 = vld [vmem:[%s964 + $0x18] sm:$0xff]
        %v2655 = vld [vmem:[%s964 + $0x50] sm:$0xff]
        %v2656 = vld [vmem:[%s964 + $0x58] sm:$0xff]
        %v2657 = vld [vmem:[%s964 + $0x90] sm:$0xff]
        %v2658 = vld [vmem:[%s964 + $0x98] sm:$0xff]
        %v2659 = vld [vmem:[%s964 + $0xd0] sm:$0xff]
        %v2660 = vld [vmem:[%s964 + $0xd8] sm:$0xff]
        %v2661 = vld [vmem:[%s964 + $0x110] sm:$0xff]
        %v2662 = vld [vmem:[%s964 + $0x118] sm:$0xff]
        %v2663 = vld [vmem:[%s964 + $0x150] sm:$0xff]
        %v2664 = vld [vmem:[%s964 + $0x158] sm:$0xff]
        %v2665 = vld [vmem:[%s964 + $0x190] sm:$0xff]
        %v2666 = vld [vmem:[%s964 + $0x198] sm:$0xff]
        %v2667 = vld [vmem:[%s964 + $0x1d0] sm:$0xff]
        %v2668 = vld [vmem:[%s964 + $0x1d8] sm:$0xff]
        %v2669 = vld [vmem:[%s964 + $0x210] sm:$0xff]
        %v2670 = vld [vmem:[%s964 + $0x218] sm:$0xff]
        %v2671 = vld [vmem:[%s964 + $0x250] sm:$0xff]
        %v2672 = vld [vmem:[%s964 + $0x258] sm:$0xff]
        %v2673 = vld [vmem:[%s964 + $0x290] sm:$0xff]
        %v2674 = vld [vmem:[%s964 + $0x298] sm:$0xff]
        %v2675 = vld [vmem:[%s964 + $0x2d0] sm:$0xff]
        %v2676 = vld [vmem:[%s964 + $0x2d8] sm:$0xff]
        %v2677 = vld [vmem:[%s964 + $0x310] sm:$0xff]
        %v2678 = vld [vmem:[%s964 + $0x318] sm:$0xff]
        %v2679 = vld [vmem:[%s964 + $0x350] sm:$0xff]
        %v2680 = vld [vmem:[%s964 + $0x358] sm:$0xff]
        %v2681 = vld [vmem:[%s964 + $0x390] sm:$0xff]
        %v2682 = vld [vmem:[%s964 + $0x398] sm:$0xff]
        %v2683 = vld [vmem:[%s964 + $0x3d0] sm:$0xff]
        %v2684 = vld [vmem:[%s964 + $0x3d8] sm:$0xff]
        %v2685 = vld [vmem:[%s1096 + $0x4] sm:$0xf]
        %v2687 = vlaneseq
        %v2688 = vshrl.u32 %v2687, 7
        %v2689 = vsub.s32 0, %v2688
        %v2690 = vrot.slane %v2685, %v2689
        %v2691 = vlaneseq
        %v2692 = vshrl.u32 %v2691, 7
        %v2693 = vsub.s32 1, %v2692
        %v2694 = vrot.slane %v2685, %v2693
        %v2695 = vlaneseq
        %v2696 = vshrl.u32 %v2695, 7
        %v2697 = vsub.s32 2, %v2696
        %v2698 = vrot.slane %v2685, %v2697
        %v2699 = vlaneseq
        %v2700 = vshrl.u32 %v2699, 7
        %v2701 = vsub.s32 3, %v2700
        %v2702 = vrot.slane %v2685, %v2701
        %v2739 = vunpack.c.l.b16 %v2653
        %v2740 = vunpack.c.h.b16 %v2653
        %v2741 = vunpack.c.l.b16 %v2654
        %v2742 = vunpack.c.h.b16 %v2654
        %v2743 = vunpack.c.l.b16 %v2655
        %v2744 = vunpack.c.h.b16 %v2655
        %v2745 = vunpack.c.l.b16 %v2656
        %v2746 = vunpack.c.h.b16 %v2656
        %v2747 = vunpack.c.l.b16 %v2657
        %v2748 = vunpack.c.h.b16 %v2657
        %v2749 = vunpack.c.l.b16 %v2658
        %v2750 = vunpack.c.h.b16 %v2658
        %v2751 = vunpack.c.l.b16 %v2659
        %v2752 = vunpack.c.h.b16 %v2659
        %v2753 = vunpack.c.l.b16 %v2660
        %v2754 = vunpack.c.h.b16 %v2660
        %v2755 = vunpack.c.l.b16 %v2661
        %v2756 = vunpack.c.h.b16 %v2661
        %v2757 = vunpack.c.l.b16 %v2662
        %v2758 = vunpack.c.h.b16 %v2662
        %v2759 = vunpack.c.l.b16 %v2663
        %v2760 = vunpack.c.h.b16 %v2663
        %v2761 = vunpack.c.l.b16 %v2664
        %v2762 = vunpack.c.h.b16 %v2664
        %v2763 = vunpack.c.l.b16 %v2665
        %v2764 = vunpack.c.h.b16 %v2665
        %v2765 = vunpack.c.l.b16 %v2666
        %v2766 = vunpack.c.h.b16 %v2666
        %v2767 = vunpack.c.l.b16 %v2667
        %v2768 = vunpack.c.h.b16 %v2667
        %v2769 = vunpack.c.l.b16 %v2668
        %v2770 = vunpack.c.h.b16 %v2668
        %v2771 = vunpack.c.l.b16 %v2669
        %v2772 = vunpack.c.h.b16 %v2669
        %v2773 = vunpack.c.l.b16 %v2670
        %v2774 = vunpack.c.h.b16 %v2670
        %v2775 = vunpack.c.l.b16 %v2671
        %v2776 = vunpack.c.h.b16 %v2671
        %v2777 = vunpack.c.l.b16 %v2672
        %v2778 = vunpack.c.h.b16 %v2672
        %v2779 = vunpack.c.l.b16 %v2673
        %v2780 = vunpack.c.h.b16 %v2673
        %v2781 = vunpack.c.l.b16 %v2674
        %v2782 = vunpack.c.h.b16 %v2674
        %v2783 = vunpack.c.l.b16 %v2675
        %v2784 = vunpack.c.h.b16 %v2675
        %v2785 = vunpack.c.l.b16 %v2676
        %v2786 = vunpack.c.h.b16 %v2676
        %v2787 = vunpack.c.l.b16 %v2677
        %v2788 = vunpack.c.h.b16 %v2677
        %v2789 = vunpack.c.l.b16 %v2678
        %v2790 = vunpack.c.h.b16 %v2678
        %v2791 = vunpack.c.l.b16 %v2679
        %v2792 = vunpack.c.h.b16 %v2679
        %v2793 = vunpack.c.l.b16 %v2680
        %v2794 = vunpack.c.h.b16 %v2680
        %v2795 = vunpack.c.l.b16 %v2681
        %v2796 = vunpack.c.h.b16 %v2681
        %v2797 = vunpack.c.l.b16 %v2682
        %v2798 = vunpack.c.h.b16 %v2682
        %v2799 = vunpack.c.l.b16 %v2683
        %v2800 = vunpack.c.h.b16 %v2683
        %v2801 = vunpack.c.l.b16 %v2684
        %v2802 = vunpack.c.h.b16 %v2684
        %v2803 = vpack.c.b16 %v2743, %v2739
        %v2804 = vpack.c.b16 %v2744, %v2740
        %v2805 = vpack.c.b16 %v2745, %v2741
        %v2806 = vpack.c.b16 %v2746, %v2742
        %v2807 = vpack.c.b16 %v2751, %v2747
        %v2808 = vpack.c.b16 %v2752, %v2748
        %v2809 = vpack.c.b16 %v2753, %v2749
        %v2810 = vpack.c.b16 %v2754, %v2750
        %v2811 = vpack.c.b16 %v2759, %v2755
        %v2812 = vpack.c.b16 %v2760, %v2756
        %v2813 = vpack.c.b16 %v2761, %v2757
        %v2814 = vpack.c.b16 %v2762, %v2758
        %v2815 = vpack.c.b16 %v2767, %v2763
        %v2816 = vpack.c.b16 %v2768, %v2764
        %v2817 = vpack.c.b16 %v2769, %v2765
        %v2818 = vpack.c.b16 %v2770, %v2766
        %v2819 = vpack.c.b16 %v2775, %v2771
        %v2820 = vpack.c.b16 %v2776, %v2772
        %v2821 = vpack.c.b16 %v2777, %v2773
        %v2822 = vpack.c.b16 %v2778, %v2774
        %v2823 = vpack.c.b16 %v2783, %v2779
        %v2824 = vpack.c.b16 %v2784, %v2780
        %v2825 = vpack.c.b16 %v2785, %v2781
        %v2826 = vpack.c.b16 %v2786, %v2782
        %v2827 = vpack.c.b16 %v2791, %v2787
        %v2828 = vpack.c.b16 %v2792, %v2788
        %v2829 = vpack.c.b16 %v2793, %v2789
        %v2830 = vpack.c.b16 %v2794, %v2790
        %v2831 = vpack.c.b16 %v2799, %v2795
        %v2832 = vpack.c.b16 %v2800, %v2796
        %v2833 = vpack.c.b16 %v2801, %v2797
        %v2834 = vpack.c.b16 %v2802, %v2798
        %2867 = vmatprep.subr.bf16.mxu0 %v2832
        %2868 = vmatpush1.bf16.msra.mxu0 %v2831
        %2869 = vmatprep.subr.bf16.mxu0 %v2828
        %2870 = vmatpush1.bf16.msra.mxu0 %v2827
        %2871 = vmatprep.subr.bf16.mxu0 %v2824
        %2872 = vmatpush1.bf16.msra.mxu0 %v2823
        %2873 = vmatprep.subr.bf16.mxu0 %v2820
        %2874 = vmatpush1.bf16.msra.mxu0 %v2819
        %2875 = vmatprep.subr.bf16.mxu0 %v2816
        %2876 = vmatpush1.bf16.msra.mxu0 %v2815
        %2877 = vmatprep.subr.bf16.mxu0 %v2812
        %2878 = vmatpush1.bf16.msra.mxu0 %v2811
        %2879 = vmatprep.subr.bf16.mxu0 %v2808
        %2880 = vmatpush1.bf16.msra.mxu0 %v2807
        %2881 = vmatprep.subr.bf16.mxu0 %v2804
        %2882 = vmatpush1.bf16.msra.mxu0 %v2803
        %2883 = vmatprep.subr.bf16.mxu0 0
        %2884 = vmatpush2.bf16.msra.mxu0 0
        %2885 = vmatprep.subr.bf16.mxu0 0
        %2886 = vmatpush2.bf16.msra.mxu0 0
        %2887 = vmatprep.subr.bf16.mxu0 0
        %2888 = vmatpush2.bf16.msra.mxu0 0
        %2889 = vmatprep.subr.bf16.mxu0 0
        %2890 = vmatpush2.bf16.msra.mxu0 0
        %2891 = vmatprep.subr.bf16.mxu0 0
        %2892 = vmatpush2.bf16.msra.mxu0 0
        %2893 = vmatprep.subr.bf16.mxu0 0
        %2894 = vmatpush2.bf16.msra.mxu0 0
        %2895 = vmatprep.subr.bf16.mxu0 0
        %2896 = vmatpush2.bf16.msra.mxu0 0
        %2897 = vmatprep.subr.bf16.mxu0 0
        %2898 = vmatpush2.bf16.msra.mxu0 0
        %2899 = vmatprep.mubr.bf16.mxu0 0
        %2900 = vmatmul.mubr.bf16.gmra.mxu0 %v2276
        %v2901 = vpop.f32.mrf.mxu0
        %v2902 = vadd.f32 %v2690, %v2901
        %v2903 = vpop.f32.mrf.mxu0
        %v2904 = vadd.f32 %v2694, %v2903
        %v2905 = vpop.f32.mrf.mxu0
        %v2906 = vadd.f32 %v2690, %v2905
        %v2907 = vpop.f32.mrf.mxu0
        %v2908 = vadd.f32 %v2694, %v2907
        %2909 = vdwg.mxu0
        %2910 = vmatprep.subr.bf16.mxu0 %v2834
        %2911 = vmatpush1.bf16.msra.mxu0 %v2833
        %2912 = vmatprep.subr.bf16.mxu0 %v2830
        %2913 = vmatpush1.bf16.msra.mxu0 %v2829
        %2914 = vmatprep.subr.bf16.mxu0 %v2826
        %2915 = vmatpush1.bf16.msra.mxu0 %v2825
        %2916 = vmatprep.subr.bf16.mxu0 %v2822
        %2917 = vmatpush1.bf16.msra.mxu0 %v2821
        %2918 = vmatprep.subr.bf16.mxu0 %v2818
        %2919 = vmatpush1.bf16.msra.mxu0 %v2817
        %2920 = vmatprep.subr.bf16.mxu0 %v2814
        %2921 = vmatpush1.bf16.msra.mxu0 %v2813
        %2922 = vmatprep.subr.bf16.mxu0 %v2810
        %2923 = vmatpush1.bf16.msra.mxu0 %v2809
        %2924 = vmatprep.subr.bf16.mxu0 %v2806
        %2925 = vmatpush1.bf16.msra.mxu0 %v2805
        %2926 = vmatprep.subr.bf16.mxu0 0
        %2927 = vmatpush2.bf16.msra.mxu0 0
        %2928 = vmatprep.subr.bf16.mxu0 0
        %2929 = vmatpush2.bf16.msra.mxu0 0
        %2930 = vmatprep.subr.bf16.mxu0 0
        %2931 = vmatpush2.bf16.msra.mxu0 0
        %2932 = vmatprep.subr.bf16.mxu0 0
        %2933 = vmatpush2.bf16.msra.mxu0 0
        %2934 = vmatprep.subr.bf16.mxu0 0
        %2935 = vmatpush2.bf16.msra.mxu0 0
        %2936 = vmatprep.subr.bf16.mxu0 0
        %2937 = vmatpush2.bf16.msra.mxu0 0
        %2938 = vmatprep.subr.bf16.mxu0 0
        %2939 = vmatpush2.bf16.msra.mxu0 0
        %2940 = vmatprep.subr.bf16.mxu0 0
        %2941 = vmatpush2.bf16.msra.mxu0 0
        %2942 = vmatprep.mubr.bf16.mxu0 0
        %2943 = vmatmul.mubr.bf16.gmra.mxu0 %v2276
        %v2944 = vpop.f32.mrf.mxu0
        %v2945 = vadd.f32 %v2698, %v2944
        %v2946 = vpop.f32.mrf.mxu0
        %v2947 = vadd.f32 %v2702, %v2946
        %v2948 = vpop.f32.mrf.mxu0
        %v2949 = vadd.f32 %v2698, %v2948
        %v2950 = vpop.f32.mrf.mxu0
        %v2951 = vadd.f32 %v2702, %v2950
        %2952 = vdwg.mxu0
        %v2953 = vmax.f32 %v2902, 0.0
        %v2954 = vmax.f32 %v2904, 0.0
        %v2955 = vmax.f32 %v2945, 0.0
        %v2956 = vmax.f32 %v2947, 0.0
        %v2957 = vmax.f32 %v2906, 0.0
        %v2958 = vmax.f32 %v2908, 0.0
        %v2959 = vmax.f32 %v2949, 0.0
        %v2960 = vmax.f32 %v2951, 0.0
        %v2961 = vpack.c.bf16 %v2957, %v2953
        %v2962 = vpack.c.bf16 %v2958, %v2954
        %v2963 = vpack.c.bf16 %v2959, %v2955
        %v2964 = vpack.c.bf16 %v2960, %v2956
        %v2965 = vld [vmem:[%s973 + $0x100] sm:$0xf]
        %v2966 = vld [vmem:[%s973 + $0x104] sm:$0xf]
        %v2967 = vld [vmem:[%s973 + $0x108] sm:$0xf]
        %v2968 = vld [vmem:[%s973 + $0x10c] sm:$0xf]
        %v2969 = vld [vmem:[%s973 + $0x110] sm:$0xf]
        %v2970 = vld [vmem:[%s973 + $0x114] sm:$0xf]
        %v2971 = vld [vmem:[%s973 + $0x118] sm:$0xf]
        %v2972 = vld [vmem:[%s973 + $0x11c] sm:$0xf]
        %v2973 = vld [vmem:[%s973 + $0x120] sm:$0xf]
        %v2974 = vld [vmem:[%s973 + $0x124] sm:$0xf]
        %v2975 = vld [vmem:[%s973 + $0x128] sm:$0xf]
        %v2976 = vld [vmem:[%s973 + $0x12c] sm:$0xf]
        %v2977 = vld [vmem:[%s973 + $0x130] sm:$0xf]
        %v2978 = vld [vmem:[%s973 + $0x134] sm:$0xf]
        %v2979 = vld [vmem:[%s973 + $0x138] sm:$0xf]
        %v2980 = vld [vmem:[%s973 + $0x13c] sm:$0xf]
        %v2981 = vld [vmem:[%s973 + $0x140] sm:$0xf]
        %v2982 = vld [vmem:[%s973 + $0x144] sm:$0xf]
        %v2983 = vld [vmem:[%s973 + $0x148] sm:$0xf]
        %v2984 = vld [vmem:[%s973 + $0x14c] sm:$0xf]
        %v2985 = vld [vmem:[%s973 + $0x150] sm:$0xf]
        %v2986 = vld [vmem:[%s973 + $0x154] sm:$0xf]
        %v2987 = vld [vmem:[%s973 + $0x158] sm:$0xf]
        %v2988 = vld [vmem:[%s973 + $0x15c] sm:$0xf]
        %v2989 = vld [vmem:[%s973 + $0x160] sm:$0xf]
        %v2990 = vld [vmem:[%s973 + $0x164] sm:$0xf]
        %v2991 = vld [vmem:[%s973 + $0x168] sm:$0xf]
        %v2992 = vld [vmem:[%s973 + $0x16c] sm:$0xf]
        %v2993 = vld [vmem:[%s973 + $0x170] sm:$0xf]
        %v2994 = vld [vmem:[%s973 + $0x174] sm:$0xf]
        %v2995 = vld [vmem:[%s973 + $0x178] sm:$0xf]
        %v2996 = vld [vmem:[%s973 + $0x17c] sm:$0xf]
        %v2997 = vld [vmem:[%s973 + $0x180] sm:$0xf]
        %v2998 = vld [vmem:[%s973 + $0x184] sm:$0xf]
        %v2999 = vld [vmem:[%s973 + $0x188] sm:$0xf]
        %v3000 = vld [vmem:[%s973 + $0x18c] sm:$0xf]
        %v3001 = vld [vmem:[%s973 + $0x190] sm:$0xf]
        %v3002 = vld [vmem:[%s973 + $0x194] sm:$0xf]
        %v3003 = vld [vmem:[%s973 + $0x198] sm:$0xf]
        %v3004 = vld [vmem:[%s973 + $0x19c] sm:$0xf]
        %v3005 = vld [vmem:[%s973 + $0x1a0] sm:$0xf]
        %v3006 = vld [vmem:[%s973 + $0x1a4] sm:$0xf]
        %v3007 = vld [vmem:[%s973 + $0x1a8] sm:$0xf]
        %v3008 = vld [vmem:[%s973 + $0x1ac] sm:$0xf]
        %v3009 = vld [vmem:[%s973 + $0x1b0] sm:$0xf]
        %v3010 = vld [vmem:[%s973 + $0x1b4] sm:$0xf]
        %v3011 = vld [vmem:[%s973 + $0x1b8] sm:$0xf]
        %v3012 = vld [vmem:[%s973 + $0x1bc] sm:$0xf]
        %v3013 = vld [vmem:[%s973 + $0x1c0] sm:$0xf]
        %v3014 = vld [vmem:[%s973 + $0x1c4] sm:$0xf]
        %v3015 = vld [vmem:[%s973 + $0x1c8] sm:$0xf]
        %v3016 = vld [vmem:[%s973 + $0x1cc] sm:$0xf]
        %v3017 = vld [vmem:[%s973 + $0x1d0] sm:$0xf]
        %v3018 = vld [vmem:[%s973 + $0x1d4] sm:$0xf]
        %v3019 = vld [vmem:[%s973 + $0x1d8] sm:$0xf]
        %v3020 = vld [vmem:[%s973 + $0x1dc] sm:$0xf]
        %v3021 = vld [vmem:[%s973 + $0x1e0] sm:$0xf]
        %v3022 = vld [vmem:[%s973 + $0x1e4] sm:$0xf]
        %v3023 = vld [vmem:[%s973 + $0x1e8] sm:$0xf]
        %v3024 = vld [vmem:[%s973 + $0x1ec] sm:$0xf]
        %v3025 = vld [vmem:[%s973 + $0x1f0] sm:$0xf]
        %v3026 = vld [vmem:[%s973 + $0x1f4] sm:$0xf]
        %v3027 = vld [vmem:[%s973 + $0x1f8] sm:$0xf]
        %v3028 = vld [vmem:[%s973 + $0x1fc] sm:$0xf]
        %v3093 = vunpack.c.l.b16 %v2965
        %v3094 = vunpack.c.l.b16 %v2966
        %v3095 = vunpack.c.l.b16 %v2967
        %v3096 = vunpack.c.l.b16 %v2968
        %v3097 = vunpack.c.l.b16 %v2969
        %v3098 = vunpack.c.l.b16 %v2970
        %v3099 = vunpack.c.l.b16 %v2971
        %v3100 = vunpack.c.l.b16 %v2972
        %v3101 = vunpack.c.l.b16 %v2973
        %v3102 = vunpack.c.l.b16 %v2974
        %v3103 = vunpack.c.l.b16 %v2975
        %v3104 = vunpack.c.l.b16 %v2976
        %v3105 = vunpack.c.l.b16 %v2977
        %v3106 = vunpack.c.l.b16 %v2978
        %v3107 = vunpack.c.l.b16 %v2979
        %v3108 = vunpack.c.l.b16 %v2980
        %v3109 = vunpack.c.l.b16 %v2981
        %v3110 = vunpack.c.l.b16 %v2982
        %v3111 = vunpack.c.l.b16 %v2983
        %v3112 = vunpack.c.l.b16 %v2984
        %v3113 = vunpack.c.l.b16 %v2985
        %v3114 = vunpack.c.l.b16 %v2986
        %v3115 = vunpack.c.l.b16 %v2987
        %v3116 = vunpack.c.l.b16 %v2988
        %v3117 = vunpack.c.l.b16 %v2989
        %v3118 = vunpack.c.l.b16 %v2990
        %v3119 = vunpack.c.l.b16 %v2991
        %v3120 = vunpack.c.l.b16 %v2992
        %v3121 = vunpack.c.l.b16 %v2993
        %v3122 = vunpack.c.l.b16 %v2994
        %v3123 = vunpack.c.l.b16 %v2995
        %v3124 = vunpack.c.l.b16 %v2996
        %v3125 = vunpack.c.l.b16 %v2997
        %v3126 = vunpack.c.l.b16 %v2998
        %v3127 = vunpack.c.l.b16 %v2999
        %v3128 = vunpack.c.l.b16 %v3000
        %v3129 = vunpack.c.l.b16 %v3001
        %v3130 = vunpack.c.l.b16 %v3002
        %v3131 = vunpack.c.l.b16 %v3003
        %v3132 = vunpack.c.l.b16 %v3004
        %v3133 = vunpack.c.l.b16 %v3005
        %v3134 = vunpack.c.l.b16 %v3006
        %v3135 = vunpack.c.l.b16 %v3007
        %v3136 = vunpack.c.l.b16 %v3008
        %v3137 = vunpack.c.l.b16 %v3009
        %v3138 = vunpack.c.l.b16 %v3010
        %v3139 = vunpack.c.l.b16 %v3011
        %v3140 = vunpack.c.l.b16 %v3012
        %v3141 = vunpack.c.l.b16 %v3013
        %v3142 = vunpack.c.l.b16 %v3014
        %v3143 = vunpack.c.l.b16 %v3015
        %v3144 = vunpack.c.l.b16 %v3016
        %v3145 = vunpack.c.l.b16 %v3017
        %v3146 = vunpack.c.l.b16 %v3018
        %v3147 = vunpack.c.l.b16 %v3019
        %v3148 = vunpack.c.l.b16 %v3020
        %v3149 = vunpack.c.l.b16 %v3021
        %v3150 = vunpack.c.l.b16 %v3022
        %v3151 = vunpack.c.l.b16 %v3023
        %v3152 = vunpack.c.l.b16 %v3024
        %v3153 = vunpack.c.l.b16 %v3025
        %v3154 = vunpack.c.l.b16 %v3026
        %v3155 = vunpack.c.l.b16 %v3027
        %v3156 = vunpack.c.l.b16 %v3028
        %v3157 = vpack.c.b16 %v3094, %v3093
        %v3158 = vpack.c.b16 %v3096, %v3095
        %v3159 = vpack.c.b16 %v3098, %v3097
        %v3160 = vpack.c.b16 %v3100, %v3099
        %v3161 = vpack.c.b16 %v3102, %v3101
        %v3162 = vpack.c.b16 %v3104, %v3103
        %v3163 = vpack.c.b16 %v3106, %v3105
        %v3164 = vpack.c.b16 %v3108, %v3107
        %v3165 = vpack.c.b16 %v3110, %v3109
        %v3166 = vpack.c.b16 %v3112, %v3111
        %v3167 = vpack.c.b16 %v3114, %v3113
        %v3168 = vpack.c.b16 %v3116, %v3115
        %v3169 = vpack.c.b16 %v3118, %v3117
        %v3170 = vpack.c.b16 %v3120, %v3119
        %v3171 = vpack.c.b16 %v3122, %v3121
        %v3172 = vpack.c.b16 %v3124, %v3123
        %v3173 = vpack.c.b16 %v3126, %v3125
        %v3174 = vpack.c.b16 %v3128, %v3127
        %v3175 = vpack.c.b16 %v3130, %v3129
        %v3176 = vpack.c.b16 %v3132, %v3131
        %v3177 = vpack.c.b16 %v3134, %v3133
        %v3178 = vpack.c.b16 %v3136, %v3135
        %v3179 = vpack.c.b16 %v3138, %v3137
        %v3180 = vpack.c.b16 %v3140, %v3139
        %v3181 = vpack.c.b16 %v3142, %v3141
        %v3182 = vpack.c.b16 %v3144, %v3143
        %v3183 = vpack.c.b16 %v3146, %v3145
        %v3184 = vpack.c.b16 %v3148, %v3147
        %v3185 = vpack.c.b16 %v3150, %v3149
        %v3186 = vpack.c.b16 %v3152, %v3151
        %v3187 = vpack.c.b16 %v3154, %v3153
        %v3188 = vpack.c.b16 %v3156, %v3155
        %3221 = vmatprep.subr.bf16.mxu0 0
        %3222 = vmatpush1.bf16.msra.mxu0 %v3164
        %3223 = vmatprep.subr.bf16.mxu0 0
        %3224 = vmatpush1.bf16.msra.mxu0 %v3163
        %3225 = vmatprep.subr.bf16.mxu0 0
        %3226 = vmatpush1.bf16.msra.mxu0 %v3162
        %3227 = vmatprep.subr.bf16.mxu0 0
        %3228 = vmatpush1.bf16.msra.mxu0 %v3161
        %3229 = vmatprep.subr.bf16.mxu0 0
        %3230 = vmatpush1.bf16.msra.mxu0 %v3160
        %3231 = vmatprep.subr.bf16.mxu0 0
        %3232 = vmatpush1.bf16.msra.mxu0 %v3159
        %3233 = vmatprep.subr.bf16.mxu0 0
        %3234 = vmatpush1.bf16.msra.mxu0 %v3158
        %3235 = vmatprep.subr.bf16.mxu0 0
        %3236 = vmatpush1.bf16.msra.mxu0 %v3157
        %3237 = vmatprep.subr.bf16.mxu0 0
        %3238 = vmatpush2.bf16.msra.mxu0 %v3172
        %3239 = vmatprep.subr.bf16.mxu0 0
        %3240 = vmatpush2.bf16.msra.mxu0 %v3171
        %3241 = vmatprep.subr.bf16.mxu0 0
        %3242 = vmatpush2.bf16.msra.mxu0 %v3170
        %3243 = vmatprep.subr.bf16.mxu0 0
        %3244 = vmatpush2.bf16.msra.mxu0 %v3169
        %3245 = vmatprep.subr.bf16.mxu0 0
        %3246 = vmatpush2.bf16.msra.mxu0 %v3168
        %3247 = vmatprep.subr.bf16.mxu0 0
        %3248 = vmatpush2.bf16.msra.mxu0 %v3167
        %3249 = vmatprep.subr.bf16.mxu0 0
        %3250 = vmatpush2.bf16.msra.mxu0 %v3166
        %3251 = vmatprep.subr.bf16.mxu0 0
        %3252 = vmatpush2.bf16.msra.mxu0 %v3165
        %3253 = vmatprep.mubr.bf16.mxu0 %v2962
        %3254 = vmatmul.mubr.bf16.gmra.mxu0 %v2961
        %v3255 = vpop.f32.mrf.mxu0
        %v3256 = vadd.f32 0.0, %v3255
        %v3257 = vpop.f32.mrf.mxu0
        %v3258 = vpop.f32.mrf.mxu0
        %v3259 = vadd.f32 0.0, %v3258
        %v3260 = vpop.f32.mrf.mxu0
        %3261 = vdwg.mxu0
        %3262 = vmatprep.subr.bf16.mxu0 0
        %3263 = vmatpush1.bf16.msra.mxu0 %v3180
        %3264 = vmatprep.subr.bf16.mxu0 0
        %3265 = vmatpush1.bf16.msra.mxu0 %v3179
        %3266 = vmatprep.subr.bf16.mxu0 0
        %3267 = vmatpush1.bf16.msra.mxu0 %v3178
        %3268 = vmatprep.subr.bf16.mxu0 0
        %3269 = vmatpush1.bf16.msra.mxu0 %v3177
        %3270 = vmatprep.subr.bf16.mxu0 0
        %3271 = vmatpush1.bf16.msra.mxu0 %v3176
        %3272 = vmatprep.subr.bf16.mxu0 0
        %3273 = vmatpush1.bf16.msra.mxu0 %v3175
        %3274 = vmatprep.subr.bf16.mxu0 0
        %3275 = vmatpush1.bf16.msra.mxu0 %v3174
        %3276 = vmatprep.subr.bf16.mxu0 0
        %3277 = vmatpush1.bf16.msra.mxu0 %v3173
        %3278 = vmatprep.subr.bf16.mxu0 0
        %3279 = vmatpush2.bf16.msra.mxu0 %v3188
        %3280 = vmatprep.subr.bf16.mxu0 0
        %3281 = vmatpush2.bf16.msra.mxu0 %v3187
        %3282 = vmatprep.subr.bf16.mxu0 0
        %3283 = vmatpush2.bf16.msra.mxu0 %v3186
        %3284 = vmatprep.subr.bf16.mxu0 0
        %3285 = vmatpush2.bf16.msra.mxu0 %v3185
        %3286 = vmatprep.subr.bf16.mxu0 0
        %3287 = vmatpush2.bf16.msra.mxu0 %v3184
        %3288 = vmatprep.subr.bf16.mxu0 0
        %3289 = vmatpush2.bf16.msra.mxu0 %v3183
        %3290 = vmatprep.subr.bf16.mxu0 0
        %3291 = vmatpush2.bf16.msra.mxu0 %v3182
        %3292 = vmatprep.subr.bf16.mxu0 0
        %3293 = vmatpush2.bf16.msra.mxu0 %v3181
        %3294 = vmatprep.mubr.bf16.mxu0 %v2964
        %3295 = vmatmul.mubr.bf16.gmra.mxu0 %v2963
        %v3296 = vpop.f32.mrf.mxu0
        %v3297 = vadd.f32 %v3256, %v3296
        %v3298 = vpop.f32.mrf.mxu0
        %v3299 = vpop.f32.mrf.mxu0
        %v3300 = vadd.f32 %v3259, %v3299
        %v3301 = vpop.f32.mrf.mxu0
        %3302 = vdwg.mxu0
        %v3367 = vunpack.c.l.b16 %v2589
        %v3368 = vunpack.c.l.b16 %v2590
        %v3369 = vunpack.c.l.b16 %v2591
        %v3370 = vunpack.c.l.b16 %v2592
        %v3371 = vunpack.c.l.b16 %v2593
        %v3372 = vunpack.c.l.b16 %v2594
        %v3373 = vunpack.c.l.b16 %v2595
        %v3374 = vunpack.c.l.b16 %v2596
        %v3375 = vunpack.c.l.b16 %v2597
        %v3376 = vunpack.c.l.b16 %v2598
        %v3377 = vunpack.c.l.b16 %v2599
        %v3378 = vunpack.c.l.b16 %v2600
        %v3379 = vunpack.c.l.b16 %v2601
        %v3380 = vunpack.c.l.b16 %v2602
        %v3381 = vunpack.c.l.b16 %v2603
        %v3382 = vunpack.c.l.b16 %v2604
        %v3383 = vunpack.c.l.b16 %v2605
        %v3384 = vunpack.c.l.b16 %v2606
        %v3385 = vunpack.c.l.b16 %v2607
        %v3386 = vunpack.c.l.b16 %v2608
        %v3387 = vunpack.c.l.b16 %v2609
        %v3388 = vunpack.c.l.b16 %v2610
        %v3389 = vunpack.c.l.b16 %v2611
        %v3390 = vunpack.c.l.b16 %v2612
        %v3391 = vunpack.c.l.b16 %v2613
        %v3392 = vunpack.c.l.b16 %v2614
        %v3393 = vunpack.c.l.b16 %v2615
        %v3394 = vunpack.c.l.b16 %v2616
        %v3395 = vunpack.c.l.b16 %v2617
        %v3396 = vunpack.c.l.b16 %v2618
        %v3397 = vunpack.c.l.b16 %v2619
        %v3398 = vunpack.c.l.b16 %v2620
        %v3399 = vunpack.c.l.b16 %v2621
        %v3400 = vunpack.c.l.b16 %v2622
        %v3401 = vunpack.c.l.b16 %v2623
        %v3402 = vunpack.c.l.b16 %v2624
        %v3403 = vunpack.c.l.b16 %v2625
        %v3404 = vunpack.c.l.b16 %v2626
        %v3405 = vunpack.c.l.b16 %v2627
        %v3406 = vunpack.c.l.b16 %v2628
        %v3407 = vunpack.c.l.b16 %v2629
        %v3408 = vunpack.c.l.b16 %v2630
        %v3409 = vunpack.c.l.b16 %v2631
        %v3410 = vunpack.c.l.b16 %v2632
        %v3411 = vunpack.c.l.b16 %v2633
        %v3412 = vunpack.c.l.b16 %v2634
        %v3413 = vunpack.c.l.b16 %v2635
        %v3414 = vunpack.c.l.b16 %v2636
        %v3415 = vunpack.c.l.b16 %v2637
        %v3416 = vunpack.c.l.b16 %v2638
        %v3417 = vunpack.c.l.b16 %v2639
        %v3418 = vunpack.c.l.b16 %v2640
        %v3419 = vunpack.c.l.b16 %v2641
        %v3420 = vunpack.c.l.b16 %v2642
        %v3421 = vunpack.c.l.b16 %v2643
        %v3422 = vunpack.c.l.b16 %v2644
        %v3423 = vunpack.c.l.b16 %v2645
        %v3424 = vunpack.c.l.b16 %v2646
        %v3425 = vunpack.c.l.b16 %v2647
        %v3426 = vunpack.c.l.b16 %v2648
        %v3427 = vunpack.c.l.b16 %v2649
        %v3428 = vunpack.c.l.b16 %v2650
        %v3429 = vunpack.c.l.b16 %v2651
        %v3430 = vunpack.c.l.b16 %v2652
        %v3431 = vpack.c.b16 %v3368, %v3367
        %v3432 = vpack.c.b16 %v3370, %v3369
        %v3433 = vpack.c.b16 %v3372, %v3371
        %v3434 = vpack.c.b16 %v3374, %v3373
        %v3435 = vpack.c.b16 %v3376, %v3375
        %v3436 = vpack.c.b16 %v3378, %v3377
        %v3437 = vpack.c.b16 %v3380, %v3379
        %v3438 = vpack.c.b16 %v3382, %v3381
        %v3439 = vpack.c.b16 %v3384, %v3383
        %v3440 = vpack.c.b16 %v3386, %v3385
        %v3441 = vpack.c.b16 %v3388, %v3387
        %v3442 = vpack.c.b16 %v3390, %v3389
        %v3443 = vpack.c.b16 %v3392, %v3391
        %v3444 = vpack.c.b16 %v3394, %v3393
        %v3445 = vpack.c.b16 %v3396, %v3395
        %v3446 = vpack.c.b16 %v3398, %v3397
        %v3447 = vpack.c.b16 %v3400, %v3399
        %v3448 = vpack.c.b16 %v3402, %v3401
        %v3449 = vpack.c.b16 %v3404, %v3403
        %v3450 = vpack.c.b16 %v3406, %v3405
        %v3451 = vpack.c.b16 %v3408, %v3407
        %v3452 = vpack.c.b16 %v3410, %v3409
        %v3453 = vpack.c.b16 %v3412, %v3411
        %v3454 = vpack.c.b16 %v3414, %v3413
        %v3455 = vpack.c.b16 %v3416, %v3415
        %v3456 = vpack.c.b16 %v3418, %v3417
        %v3457 = vpack.c.b16 %v3420, %v3419
        %v3458 = vpack.c.b16 %v3422, %v3421
        %v3459 = vpack.c.b16 %v3424, %v3423
        %v3460 = vpack.c.b16 %v3426, %v3425
        %v3461 = vpack.c.b16 %v3428, %v3427
        %v3462 = vpack.c.b16 %v3430, %v3429
        %3495 = vmatprep.subr.bf16.mxu0 0
        %3496 = vmatpush1.bf16.msra.mxu0 %v3438
        %3497 = vmatprep.subr.bf16.mxu0 0
        %3498 = vmatpush1.bf16.msra.mxu0 %v3437
        %3499 = vmatprep.subr.bf16.mxu0 0
        %3500 = vmatpush1.bf16.msra.mxu0 %v3436
        %3501 = vmatprep.subr.bf16.mxu0 0
        %3502 = vmatpush1.bf16.msra.mxu0 %v3435
        %3503 = vmatprep.subr.bf16.mxu0 0
        %3504 = vmatpush1.bf16.msra.mxu0 %v3434
        %3505 = vmatprep.subr.bf16.mxu0 0
        %3506 = vmatpush1.bf16.msra.mxu0 %v3433
        %3507 = vmatprep.subr.bf16.mxu0 0
        %3508 = vmatpush1.bf16.msra.mxu0 %v3432
        %3509 = vmatprep.subr.bf16.mxu0 0
        %3510 = vmatpush1.bf16.msra.mxu0 %v3431
        %3511 = vmatprep.subr.bf16.mxu0 0
        %3512 = vmatpush2.bf16.msra.mxu0 %v3446
        %3513 = vmatprep.subr.bf16.mxu0 0
        %3514 = vmatpush2.bf16.msra.mxu0 %v3445
        %3515 = vmatprep.subr.bf16.mxu0 0
        %3516 = vmatpush2.bf16.msra.mxu0 %v3444
        %3517 = vmatprep.subr.bf16.mxu0 0
        %3518 = vmatpush2.bf16.msra.mxu0 %v3443
        %3519 = vmatprep.subr.bf16.mxu0 0
        %3520 = vmatpush2.bf16.msra.mxu0 %v3442
        %3521 = vmatprep.subr.bf16.mxu0 0
        %3522 = vmatpush2.bf16.msra.mxu0 %v3441
        %3523 = vmatprep.subr.bf16.mxu0 0
        %3524 = vmatpush2.bf16.msra.mxu0 %v3440
        %3525 = vmatprep.subr.bf16.mxu0 0
        %3526 = vmatpush2.bf16.msra.mxu0 %v3439
        %3527 = vmatprep.mubr.bf16.mxu0 %v2586
        %3528 = vmatmul.mubr.bf16.gmra.mxu0 %v2585
        %v3529 = vpop.f32.mrf.mxu0
        %v3530 = vadd.f32 %v3297, %v3529
        %v3531 = vpop.f32.mrf.mxu0
        %v3532 = vpop.f32.mrf.mxu0
        %v3533 = vadd.f32 %v3300, %v3532
        %v3534 = vpop.f32.mrf.mxu0
        %3535 = vdwg.mxu0
        %3536 = vmatprep.subr.bf16.mxu0 0
        %3537 = vmatpush1.bf16.msra.mxu0 %v3454
        %3538 = vmatprep.subr.bf16.mxu0 0
        %3539 = vmatpush1.bf16.msra.mxu0 %v3453
        %3540 = vmatprep.subr.bf16.mxu0 0
        %3541 = vmatpush1.bf16.msra.mxu0 %v3452
        %3542 = vmatprep.subr.bf16.mxu0 0
        %3543 = vmatpush1.bf16.msra.mxu0 %v3451
        %3544 = vmatprep.subr.bf16.mxu0 0
        %3545 = vmatpush1.bf16.msra.mxu0 %v3450
        %3546 = vmatprep.subr.bf16.mxu0 0
        %3547 = vmatpush1.bf16.msra.mxu0 %v3449
        %3548 = vmatprep.subr.bf16.mxu0 0
        %3549 = vmatpush1.bf16.msra.mxu0 %v3448
        %3550 = vmatprep.subr.bf16.mxu0 0
        %3551 = vmatpush1.bf16.msra.mxu0 %v3447
        %3552 = vmatprep.subr.bf16.mxu0 0
        %3553 = vmatpush2.bf16.msra.mxu0 %v3462
        %3554 = vmatprep.subr.bf16.mxu0 0
        %3555 = vmatpush2.bf16.msra.mxu0 %v3461
        %3556 = vmatprep.subr.bf16.mxu0 0
        %3557 = vmatpush2.bf16.msra.mxu0 %v3460
        %3558 = vmatprep.subr.bf16.mxu0 0
        %3559 = vmatpush2.bf16.msra.mxu0 %v3459
        %3560 = vmatprep.subr.bf16.mxu0 0
        %3561 = vmatpush2.bf16.msra.mxu0 %v3458
        %3562 = vmatprep.subr.bf16.mxu0 0
        %3563 = vmatpush2.bf16.msra.mxu0 %v3457
        %3564 = vmatprep.subr.bf16.mxu0 0
        %3565 = vmatpush2.bf16.msra.mxu0 %v3456
        %3566 = vmatprep.subr.bf16.mxu0 0
        %3567 = vmatpush2.bf16.msra.mxu0 %v3455
        %3568 = vmatprep.mubr.bf16.mxu0 %v2588
        %3569 = vmatmul.mubr.bf16.gmra.mxu0 %v2587
        %v3570 = vpop.f32.mrf.mxu0
        %v3571 = vadd.f32 %v3530, %v3570
        %v3572 = vpop.f32.mrf.mxu0
        %v3573 = vpop.f32.mrf.mxu0
        %v3574 = vadd.f32 %v3533, %v3573
        %v3575 = vpop.f32.mrf.mxu0
        %3576 = vdwg.mxu0
        %v3577 = vld [vmem:[%s964 + $0x20] sm:$0xff]
        %v3578 = vld [vmem:[%s964 + $0x28] sm:$0xff]
        %v3579 = vld [vmem:[%s964 + $0x60] sm:$0xff]
        %v3580 = vld [vmem:[%s964 + $0x68] sm:$0xff]
        %v3581 = vld [vmem:[%s964 + $0xa0] sm:$0xff]
        %v3582 = vld [vmem:[%s964 + $0xa8] sm:$0xff]
        %v3583 = vld [vmem:[%s964 + $0xe0] sm:$0xff]
        %v3584 = vld [vmem:[%s964 + $0xe8] sm:$0xff]
        %v3585 = vld [vmem:[%s964 + $0x120] sm:$0xff]
        %v3586 = vld [vmem:[%s964 + $0x128] sm:$0xff]
        %v3587 = vld [vmem:[%s964 + $0x160] sm:$0xff]
        %v3588 = vld [vmem:[%s964 + $0x168] sm:$0xff]
        %v3589 = vld [vmem:[%s964 + $0x1a0] sm:$0xff]
        %v3590 = vld [vmem:[%s964 + $0x1a8] sm:$0xff]
        %v3591 = vld [vmem:[%s964 + $0x1e0] sm:$0xff]
        %v3592 = vld [vmem:[%s964 + $0x1e8] sm:$0xff]
        %v3593 = vld [vmem:[%s964 + $0x220] sm:$0xff]
        %v3594 = vld [vmem:[%s964 + $0x228] sm:$0xff]
        %v3595 = vld [vmem:[%s964 + $0x260] sm:$0xff]
        %v3596 = vld [vmem:[%s964 + $0x268] sm:$0xff]
        %v3597 = vld [vmem:[%s964 + $0x2a0] sm:$0xff]
        %v3598 = vld [vmem:[%s964 + $0x2a8] sm:$0xff]
        %v3599 = vld [vmem:[%s964 + $0x2e0] sm:$0xff]
        %v3600 = vld [vmem:[%s964 + $0x2e8] sm:$0xff]
        %v3601 = vld [vmem:[%s964 + $0x320] sm:$0xff]
        %v3602 = vld [vmem:[%s964 + $0x328] sm:$0xff]
        %v3603 = vld [vmem:[%s964 + $0x360] sm:$0xff]
        %v3604 = vld [vmem:[%s964 + $0x368] sm:$0xff]
        %v3605 = vld [vmem:[%s964 + $0x3a0] sm:$0xff]
        %v3606 = vld [vmem:[%s964 + $0x3a8] sm:$0xff]
        %v3607 = vld [vmem:[%s964 + $0x3e0] sm:$0xff]
        %v3608 = vld [vmem:[%s964 + $0x3e8] sm:$0xff]
        %v3609 = vld [vmem:[%s1096 + $0x8] sm:$0xf]
        %v3611 = vlaneseq
        %v3612 = vshrl.u32 %v3611, 7
        %v3613 = vsub.s32 0, %v3612
        %v3614 = vrot.slane %v3609, %v3613
        %v3615 = vlaneseq
        %v3616 = vshrl.u32 %v3615, 7
        %v3617 = vsub.s32 1, %v3616
        %v3618 = vrot.slane %v3609, %v3617
        %v3619 = vlaneseq
        %v3620 = vshrl.u32 %v3619, 7
        %v3621 = vsub.s32 2, %v3620
        %v3622 = vrot.slane %v3609, %v3621
        %v3623 = vlaneseq
        %v3624 = vshrl.u32 %v3623, 7
        %v3625 = vsub.s32 3, %v3624
        %v3626 = vrot.slane %v3609, %v3625
        %v3663 = vunpack.c.l.b16 %v3577
        %v3664 = vunpack.c.h.b16 %v3577
        %v3665 = vunpack.c.l.b16 %v3578
        %v3666 = vunpack.c.h.b16 %v3578
        %v3667 = vunpack.c.l.b16 %v3579
        %v3668 = vunpack.c.h.b16 %v3579
        %v3669 = vunpack.c.l.b16 %v3580
        %v3670 = vunpack.c.h.b16 %v3580
        %v3671 = vunpack.c.l.b16 %v3581
        %v3672 = vunpack.c.h.b16 %v3581
        %v3673 = vunpack.c.l.b16 %v3582
        %v3674 = vunpack.c.h.b16 %v3582
        %v3675 = vunpack.c.l.b16 %v3583
        %v3676 = vunpack.c.h.b16 %v3583
        %v3677 = vunpack.c.l.b16 %v3584
        %v3678 = vunpack.c.h.b16 %v3584
        %v3679 = vunpack.c.l.b16 %v3585
        %v3680 = vunpack.c.h.b16 %v3585
        %v3681 = vunpack.c.l.b16 %v3586
        %v3682 = vunpack.c.h.b16 %v3586
        %v3683 = vunpack.c.l.b16 %v3587
        %v3684 = vunpack.c.h.b16 %v3587
        %v3685 = vunpack.c.l.b16 %v3588
        %v3686 = vunpack.c.h.b16 %v3588
        %v3687 = vunpack.c.l.b16 %v3589
        %v3688 = vunpack.c.h.b16 %v3589
        %v3689 = vunpack.c.l.b16 %v3590
        %v3690 = vunpack.c.h.b16 %v3590
        %v3691 = vunpack.c.l.b16 %v3591
        %v3692 = vunpack.c.h.b16 %v3591
        %v3693 = vunpack.c.l.b16 %v3592
        %v3694 = vunpack.c.h.b16 %v3592
        %v3695 = vunpack.c.l.b16 %v3593
        %v3696 = vunpack.c.h.b16 %v3593
        %v3697 = vunpack.c.l.b16 %v3594
        %v3698 = vunpack.c.h.b16 %v3594
        %v3699 = vunpack.c.l.b16 %v3595
        %v3700 = vunpack.c.h.b16 %v3595
        %v3701 = vunpack.c.l.b16 %v3596
        %v3702 = vunpack.c.h.b16 %v3596
        %v3703 = vunpack.c.l.b16 %v3597
        %v3704 = vunpack.c.h.b16 %v3597
        %v3705 = vunpack.c.l.b16 %v3598
        %v3706 = vunpack.c.h.b16 %v3598
        %v3707 = vunpack.c.l.b16 %v3599
        %v3708 = vunpack.c.h.b16 %v3599
        %v3709 = vunpack.c.l.b16 %v3600
        %v3710 = vunpack.c.h.b16 %v3600
        %v3711 = vunpack.c.l.b16 %v3601
        %v3712 = vunpack.c.h.b16 %v3601
        %v3713 = vunpack.c.l.b16 %v3602
        %v3714 = vunpack.c.h.b16 %v3602
        %v3715 = vunpack.c.l.b16 %v3603
        %v3716 = vunpack.c.h.b16 %v3603
        %v3717 = vunpack.c.l.b16 %v3604
        %v3718 = vunpack.c.h.b16 %v3604
        %v3719 = vunpack.c.l.b16 %v3605
        %v3720 = vunpack.c.h.b16 %v3605
        %v3721 = vunpack.c.l.b16 %v3606
        %v3722 = vunpack.c.h.b16 %v3606
        %v3723 = vunpack.c.l.b16 %v3607
        %v3724 = vunpack.c.h.b16 %v3607
        %v3725 = vunpack.c.l.b16 %v3608
        %v3726 = vunpack.c.h.b16 %v3608
        %v3727 = vpack.c.b16 %v3667, %v3663
        %v3728 = vpack.c.b16 %v3668, %v3664
        %v3729 = vpack.c.b16 %v3669, %v3665
        %v3730 = vpack.c.b16 %v3670, %v3666
        %v3731 = vpack.c.b16 %v3675, %v3671
        %v3732 = vpack.c.b16 %v3676, %v3672
        %v3733 = vpack.c.b16 %v3677, %v3673
        %v3734 = vpack.c.b16 %v3678, %v3674
        %v3735 = vpack.c.b16 %v3683, %v3679
        %v3736 = vpack.c.b16 %v3684, %v3680
        %v3737 = vpack.c.b16 %v3685, %v3681
        %v3738 = vpack.c.b16 %v3686, %v3682
        %v3739 = vpack.c.b16 %v3691, %v3687
        %v3740 = vpack.c.b16 %v3692, %v3688
        %v3741 = vpack.c.b16 %v3693, %v3689
        %v3742 = vpack.c.b16 %v3694, %v3690
        %v3743 = vpack.c.b16 %v3699, %v3695
        %v3744 = vpack.c.b16 %v3700, %v3696
        %v3745 = vpack.c.b16 %v3701, %v3697
        %v3746 = vpack.c.b16 %v3702, %v3698
        %v3747 = vpack.c.b16 %v3707, %v3703
        %v3748 = vpack.c.b16 %v3708, %v3704
        %v3749 = vpack.c.b16 %v3709, %v3705
        %v3750 = vpack.c.b16 %v3710, %v3706
        %v3751 = vpack.c.b16 %v3715, %v3711
        %v3752 = vpack.c.b16 %v3716, %v3712
        %v3753 = vpack.c.b16 %v3717, %v3713
        %v3754 = vpack.c.b16 %v3718, %v3714
        %v3755 = vpack.c.b16 %v3723, %v3719
        %v3756 = vpack.c.b16 %v3724, %v3720
        %v3757 = vpack.c.b16 %v3725, %v3721
        %v3758 = vpack.c.b16 %v3726, %v3722
        %3791 = vmatprep.subr.bf16.mxu0 %v3756
        %3792 = vmatpush1.bf16.msra.mxu0 %v3755
        %3793 = vmatprep.subr.bf16.mxu0 %v3752
        %3794 = vmatpush1.bf16.msra.mxu0 %v3751
        %3795 = vmatprep.subr.bf16.mxu0 %v3748
        %3796 = vmatpush1.bf16.msra.mxu0 %v3747
        %3797 = vmatprep.subr.bf16.mxu0 %v3744
        %3798 = vmatpush1.bf16.msra.mxu0 %v3743
        %3799 = vmatprep.subr.bf16.mxu0 %v3740
        %3800 = vmatpush1.bf16.msra.mxu0 %v3739
        %3801 = vmatprep.subr.bf16.mxu0 %v3736
        %3802 = vmatpush1.bf16.msra.mxu0 %v3735
        %3803 = vmatprep.subr.bf16.mxu0 %v3732
        %3804 = vmatpush1.bf16.msra.mxu0 %v3731
        %3805 = vmatprep.subr.bf16.mxu0 %v3728
        %3806 = vmatpush1.bf16.msra.mxu0 %v3727
        %3807 = vmatprep.subr.bf16.mxu0 0
        %3808 = vmatpush2.bf16.msra.mxu0 0
        %3809 = vmatprep.subr.bf16.mxu0 0
        %3810 = vmatpush2.bf16.msra.mxu0 0
        %3811 = vmatprep.subr.bf16.mxu0 0
        %3812 = vmatpush2.bf16.msra.mxu0 0
        %3813 = vmatprep.subr.bf16.mxu0 0
        %3814 = vmatpush2.bf16.msra.mxu0 0
        %3815 = vmatprep.subr.bf16.mxu0 0
        %3816 = vmatpush2.bf16.msra.mxu0 0
        %3817 = vmatprep.subr.bf16.mxu0 0
        %3818 = vmatpush2.bf16.msra.mxu0 0
        %3819 = vmatprep.subr.bf16.mxu0 0
        %3820 = vmatpush2.bf16.msra.mxu0 0
        %3821 = vmatprep.subr.bf16.mxu0 0
        %3822 = vmatpush2.bf16.msra.mxu0 0
        %3823 = vmatprep.mubr.bf16.mxu0 0
        %3824 = vmatmul.mubr.bf16.gmra.mxu0 %v2276
        %v3825 = vpop.f32.mrf.mxu0
        %v3826 = vadd.f32 %v3614, %v3825
        %v3827 = vpop.f32.mrf.mxu0
        %v3828 = vadd.f32 %v3618, %v3827
        %v3829 = vpop.f32.mrf.mxu0
        %v3830 = vadd.f32 %v3614, %v3829
        %v3831 = vpop.f32.mrf.mxu0
        %v3832 = vadd.f32 %v3618, %v3831
        %3833 = vdwg.mxu0
        %3834 = vmatprep.subr.bf16.mxu0 %v3758
        %3835 = vmatpush1.bf16.msra.mxu0 %v3757
        %3836 = vmatprep.subr.bf16.mxu0 %v3754
        %3837 = vmatpush1.bf16.msra.mxu0 %v3753
        %3838 = vmatprep.subr.bf16.mxu0 %v3750
        %3839 = vmatpush1.bf16.msra.mxu0 %v3749
        %3840 = vmatprep.subr.bf16.mxu0 %v3746
        %3841 = vmatpush1.bf16.msra.mxu0 %v3745
        %3842 = vmatprep.subr.bf16.mxu0 %v3742
        %3843 = vmatpush1.bf16.msra.mxu0 %v3741
        %3844 = vmatprep.subr.bf16.mxu0 %v3738
        %3845 = vmatpush1.bf16.msra.mxu0 %v3737
        %3846 = vmatprep.subr.bf16.mxu0 %v3734
        %3847 = vmatpush1.bf16.msra.mxu0 %v3733
        %3848 = vmatprep.subr.bf16.mxu0 %v3730
        %3849 = vmatpush1.bf16.msra.mxu0 %v3729
        %3850 = vmatprep.subr.bf16.mxu0 0
        %3851 = vmatpush2.bf16.msra.mxu0 0
        %3852 = vmatprep.subr.bf16.mxu0 0
        %3853 = vmatpush2.bf16.msra.mxu0 0
        %3854 = vmatprep.subr.bf16.mxu0 0
        %3855 = vmatpush2.bf16.msra.mxu0 0
        %3856 = vmatprep.subr.bf16.mxu0 0
        %3857 = vmatpush2.bf16.msra.mxu0 0
        %3858 = vmatprep.subr.bf16.mxu0 0
        %3859 = vmatpush2.bf16.msra.mxu0 0
        %3860 = vmatprep.subr.bf16.mxu0 0
        %3861 = vmatpush2.bf16.msra.mxu0 0
        %3862 = vmatprep.subr.bf16.mxu0 0
        %3863 = vmatpush2.bf16.msra.mxu0 0
        %3864 = vmatprep.subr.bf16.mxu0 0
        %3865 = vmatpush2.bf16.msra.mxu0 0
        %3866 = vmatprep.mubr.bf16.mxu0 0
        %3867 = vmatmul.mubr.bf16.gmra.mxu0 %v2276
        %v3868 = vpop.f32.mrf.mxu0
        %v3869 = vadd.f32 %v3622, %v3868
        %v3870 = vpop.f32.mrf.mxu0
        %v3871 = vadd.f32 %v3626, %v3870
        %v3872 = vpop.f32.mrf.mxu0
        %v3873 = vadd.f32 %v3622, %v3872
        %v3874 = vpop.f32.mrf.mxu0
        %v3875 = vadd.f32 %v3626, %v3874
        %3876 = vdwg.mxu0
        %v3877 = vmax.f32 %v3826, 0.0
        %v3878 = vmax.f32 %v3828, 0.0
        %v3879 = vmax.f32 %v3869, 0.0
        %v3880 = vmax.f32 %v3871, 0.0
        %v3881 = vmax.f32 %v3830, 0.0
        %v3882 = vmax.f32 %v3832, 0.0
        %v3883 = vmax.f32 %v3873, 0.0
        %v3884 = vmax.f32 %v3875, 0.0
        %v3885 = vpack.c.bf16 %v3881, %v3877
        %v3886 = vpack.c.bf16 %v3882, %v3878
        %v3887 = vpack.c.bf16 %v3883, %v3879
        %v3888 = vpack.c.bf16 %v3884, %v3880
        %v3889 = vld [vmem:[%s973 + $0x200] sm:$0xf]
        %v3890 = vld [vmem:[%s973 + $0x204] sm:$0xf]
        %v3891 = vld [vmem:[%s973 + $0x208] sm:$0xf]
        %v3892 = vld [vmem:[%s973 + $0x20c] sm:$0xf]
        %v3893 = vld [vmem:[%s973 + $0x210] sm:$0xf]
        %v3894 = vld [vmem:[%s973 + $0x214] sm:$0xf]
        %v3895 = vld [vmem:[%s973 + $0x218] sm:$0xf]
        %v3896 = vld [vmem:[%s973 + $0x21c] sm:$0xf]
        %v3897 = vld [vmem:[%s973 + $0x220] sm:$0xf]
        %v3898 = vld [vmem:[%s973 + $0x224] sm:$0xf]
        %v3899 = vld [vmem:[%s973 + $0x228] sm:$0xf]
        %v3900 = vld [vmem:[%s973 + $0x22c] sm:$0xf]
        %v3901 = vld [vmem:[%s973 + $0x230] sm:$0xf]
        %v3902 = vld [vmem:[%s973 + $0x234] sm:$0xf]
        %v3903 = vld [vmem:[%s973 + $0x238] sm:$0xf]
        %v3904 = vld [vmem:[%s973 + $0x23c] sm:$0xf]
        %v3905 = vld [vmem:[%s973 + $0x240] sm:$0xf]
        %v3906 = vld [vmem:[%s973 + $0x244] sm:$0xf]
        %v3907 = vld [vmem:[%s973 + $0x248] sm:$0xf]
        %v3908 = vld [vmem:[%s973 + $0x24c] sm:$0xf]
        %v3909 = vld [vmem:[%s973 + $0x250] sm:$0xf]
        %v3910 = vld [vmem:[%s973 + $0x254] sm:$0xf]
        %v3911 = vld [vmem:[%s973 + $0x258] sm:$0xf]
        %v3912 = vld [vmem:[%s973 + $0x25c] sm:$0xf]
        %v3913 = vld [vmem:[%s973 + $0x260] sm:$0xf]
        %v3914 = vld [vmem:[%s973 + $0x264] sm:$0xf]
        %v3915 = vld [vmem:[%s973 + $0x268] sm:$0xf]
        %v3916 = vld [vmem:[%s973 + $0x26c] sm:$0xf]
        %v3917 = vld [vmem:[%s973 + $0x270] sm:$0xf]
        %v3918 = vld [vmem:[%s973 + $0x274] sm:$0xf]
        %v3919 = vld [vmem:[%s973 + $0x278] sm:$0xf]
        %v3920 = vld [vmem:[%s973 + $0x27c] sm:$0xf]
        %v3921 = vld [vmem:[%s973 + $0x280] sm:$0xf]
        %v3922 = vld [vmem:[%s973 + $0x284] sm:$0xf]
        %v3923 = vld [vmem:[%s973 + $0x288] sm:$0xf]
        %v3924 = vld [vmem:[%s973 + $0x28c] sm:$0xf]
        %v3925 = vld [vmem:[%s973 + $0x290] sm:$0xf]
        %v3926 = vld [vmem:[%s973 + $0x294] sm:$0xf]
        %v3927 = vld [vmem:[%s973 + $0x298] sm:$0xf]
        %v3928 = vld [vmem:[%s973 + $0x29c] sm:$0xf]
        %v3929 = vld [vmem:[%s973 + $0x2a0] sm:$0xf]
        %v3930 = vld [vmem:[%s973 + $0x2a4] sm:$0xf]
        %v3931 = vld [vmem:[%s973 + $0x2a8] sm:$0xf]
        %v3932 = vld [vmem:[%s973 + $0x2ac] sm:$0xf]
        %v3933 = vld [vmem:[%s973 + $0x2b0] sm:$0xf]
        %v3934 = vld [vmem:[%s973 + $0x2b4] sm:$0xf]
        %v3935 = vld [vmem:[%s973 + $0x2b8] sm:$0xf]
        %v3936 = vld [vmem:[%s973 + $0x2bc] sm:$0xf]
        %v3937 = vld [vmem:[%s973 + $0x2c0] sm:$0xf]
        %v3938 = vld [vmem:[%s973 + $0x2c4] sm:$0xf]
        %v3939 = vld [vmem:[%s973 + $0x2c8] sm:$0xf]
        %v3940 = vld [vmem:[%s973 + $0x2cc] sm:$0xf]
        %v3941 = vld [vmem:[%s973 + $0x2d0] sm:$0xf]
        %v3942 = vld [vmem:[%s973 + $0x2d4] sm:$0xf]
        %v3943 = vld [vmem:[%s973 + $0x2d8] sm:$0xf]
        %v3944 = vld [vmem:[%s973 + $0x2dc] sm:$0xf]
        %v3945 = vld [vmem:[%s973 + $0x2e0] sm:$0xf]
        %v3946 = vld [vmem:[%s973 + $0x2e4] sm:$0xf]
        %v3947 = vld [vmem:[%s973 + $0x2e8] sm:$0xf]
        %v3948 = vld [vmem:[%s973 + $0x2ec] sm:$0xf]
        %v3949 = vld [vmem:[%s973 + $0x2f0] sm:$0xf]
        %v3950 = vld [vmem:[%s973 + $0x2f4] sm:$0xf]
        %v3951 = vld [vmem:[%s973 + $0x2f8] sm:$0xf]
        %v3952 = vld [vmem:[%s973 + $0x2fc] sm:$0xf]
        %v4017 = vunpack.c.l.b16 %v3889
        %v4018 = vunpack.c.l.b16 %v3890
        %v4019 = vunpack.c.l.b16 %v3891
        %v4020 = vunpack.c.l.b16 %v3892
        %v4021 = vunpack.c.l.b16 %v3893
        %v4022 = vunpack.c.l.b16 %v3894
        %v4023 = vunpack.c.l.b16 %v3895
        %v4024 = vunpack.c.l.b16 %v3896
        %v4025 = vunpack.c.l.b16 %v3897
        %v4026 = vunpack.c.l.b16 %v3898
        %v4027 = vunpack.c.l.b16 %v3899
        %v4028 = vunpack.c.l.b16 %v3900
        %v4029 = vunpack.c.l.b16 %v3901
        %v4030 = vunpack.c.l.b16 %v3902
        %v4031 = vunpack.c.l.b16 %v3903
        %v4032 = vunpack.c.l.b16 %v3904
        %v4033 = vunpack.c.l.b16 %v3905
        %v4034 = vunpack.c.l.b16 %v3906
        %v4035 = vunpack.c.l.b16 %v3907
        %v4036 = vunpack.c.l.b16 %v3908
        %v4037 = vunpack.c.l.b16 %v3909
        %v4038 = vunpack.c.l.b16 %v3910
        %v4039 = vunpack.c.l.b16 %v3911
        %v4040 = vunpack.c.l.b16 %v3912
        %v4041 = vunpack.c.l.b16 %v3913
        %v4042 = vunpack.c.l.b16 %v3914
        %v4043 = vunpack.c.l.b16 %v3915
        %v4044 = vunpack.c.l.b16 %v3916
        %v4045 = vunpack.c.l.b16 %v3917
        %v4046 = vunpack.c.l.b16 %v3918
        %v4047 = vunpack.c.l.b16 %v3919
        %v4048 = vunpack.c.l.b16 %v3920
        %v4049 = vunpack.c.l.b16 %v3921
        %v4050 = vunpack.c.l.b16 %v3922
        %v4051 = vunpack.c.l.b16 %v3923
        %v4052 = vunpack.c.l.b16 %v3924
        %v4053 = vunpack.c.l.b16 %v3925
        %v4054 = vunpack.c.l.b16 %v3926
        %v4055 = vunpack.c.l.b16 %v3927
        %v4056 = vunpack.c.l.b16 %v3928
        %v4057 = vunpack.c.l.b16 %v3929
        %v4058 = vunpack.c.l.b16 %v3930
        %v4059 = vunpack.c.l.b16 %v3931
        %v4060 = vunpack.c.l.b16 %v3932
        %v4061 = vunpack.c.l.b16 %v3933
        %v4062 = vunpack.c.l.b16 %v3934
        %v4063 = vunpack.c.l.b16 %v3935
        %v4064 = vunpack.c.l.b16 %v3936
        %v4065 = vunpack.c.l.b16 %v3937
        %v4066 = vunpack.c.l.b16 %v3938
        %v4067 = vunpack.c.l.b16 %v3939
        %v4068 = vunpack.c.l.b16 %v3940
        %v4069 = vunpack.c.l.b16 %v3941
        %v4070 = vunpack.c.l.b16 %v3942
        %v4071 = vunpack.c.l.b16 %v3943
        %v4072 = vunpack.c.l.b16 %v3944
        %v4073 = vunpack.c.l.b16 %v3945
        %v4074 = vunpack.c.l.b16 %v3946
        %v4075 = vunpack.c.l.b16 %v3947
        %v4076 = vunpack.c.l.b16 %v3948
        %v4077 = vunpack.c.l.b16 %v3949
        %v4078 = vunpack.c.l.b16 %v3950
        %v4079 = vunpack.c.l.b16 %v3951
        %v4080 = vunpack.c.l.b16 %v3952
        %v4081 = vpack.c.b16 %v4018, %v4017
        %v4082 = vpack.c.b16 %v4020, %v4019
        %v4083 = vpack.c.b16 %v4022, %v4021
        %v4084 = vpack.c.b16 %v4024, %v4023
        %v4085 = vpack.c.b16 %v4026, %v4025
        %v4086 = vpack.c.b16 %v4028, %v4027
        %v4087 = vpack.c.b16 %v4030, %v4029
        %v4088 = vpack.c.b16 %v4032, %v4031
        %v4089 = vpack.c.b16 %v4034, %v4033
        %v4090 = vpack.c.b16 %v4036, %v4035
        %v4091 = vpack.c.b16 %v4038, %v4037
        %v4092 = vpack.c.b16 %v4040, %v4039
        %v4093 = vpack.c.b16 %v4042, %v4041
        %v4094 = vpack.c.b16 %v4044, %v4043
        %v4095 = vpack.c.b16 %v4046, %v4045
        %v4096 = vpack.c.b16 %v4048, %v4047
        %v4097 = vpack.c.b16 %v4050, %v4049
        %v4098 = vpack.c.b16 %v4052, %v4051
        %v4099 = vpack.c.b16 %v4054, %v4053
        %v4100 = vpack.c.b16 %v4056, %v4055
        %v4101 = vpack.c.b16 %v4058, %v4057
        %v4102 = vpack.c.b16 %v4060, %v4059
        %v4103 = vpack.c.b16 %v4062, %v4061
        %v4104 = vpack.c.b16 %v4064, %v4063
        %v4105 = vpack.c.b16 %v4066, %v4065
        %v4106 = vpack.c.b16 %v4068, %v4067
        %v4107 = vpack.c.b16 %v4070, %v4069
        %v4108 = vpack.c.b16 %v4072, %v4071
        %v4109 = vpack.c.b16 %v4074, %v4073
        %v4110 = vpack.c.b16 %v4076, %v4075
        %v4111 = vpack.c.b16 %v4078, %v4077
        %v4112 = vpack.c.b16 %v4080, %v4079
        %4145 = vmatprep.subr.bf16.mxu0 0
        %4146 = vmatpush1.bf16.msra.mxu0 %v4088
        %4147 = vmatprep.subr.bf16.mxu0 0
        %4148 = vmatpush1.bf16.msra.mxu0 %v4087
        %4149 = vmatprep.subr.bf16.mxu0 0
        %4150 = vmatpush1.bf16.msra.mxu0 %v4086
        %4151 = vmatprep.subr.bf16.mxu0 0
        %4152 = vmatpush1.bf16.msra.mxu0 %v4085
        %4153 = vmatprep.subr.bf16.mxu0 0
        %4154 = vmatpush1.bf16.msra.mxu0 %v4084
        %4155 = vmatprep.subr.bf16.mxu0 0
        %4156 = vmatpush1.bf16.msra.mxu0 %v4083
        %4157 = vmatprep.subr.bf16.mxu0 0
        %4158 = vmatpush1.bf16.msra.mxu0 %v4082
        %4159 = vmatprep.subr.bf16.mxu0 0
        %4160 = vmatpush1.bf16.msra.mxu0 %v4081
        %4161 = vmatprep.subr.bf16.mxu0 0
        %4162 = vmatpush2.bf16.msra.mxu0 %v4096
        %4163 = vmatprep.subr.bf16.mxu0 0
        %4164 = vmatpush2.bf16.msra.mxu0 %v4095
        %4165 = vmatprep.subr.bf16.mxu0 0
        %4166 = vmatpush2.bf16.msra.mxu0 %v4094
        %4167 = vmatprep.subr.bf16.mxu0 0
        %4168 = vmatpush2.bf16.msra.mxu0 %v4093
        %4169 = vmatprep.subr.bf16.mxu0 0
        %4170 = vmatpush2.bf16.msra.mxu0 %v4092
        %4171 = vmatprep.subr.bf16.mxu0 0
        %4172 = vmatpush2.bf16.msra.mxu0 %v4091
        %4173 = vmatprep.subr.bf16.mxu0 0
        %4174 = vmatpush2.bf16.msra.mxu0 %v4090
        %4175 = vmatprep.subr.bf16.mxu0 0
        %4176 = vmatpush2.bf16.msra.mxu0 %v4089
        %4177 = vmatprep.mubr.bf16.mxu0 %v3886
        %4178 = vmatmul.mubr.bf16.gmra.mxu0 %v3885
        %v4179 = vpop.f32.mrf.mxu0
        %v4180 = vadd.f32 0.0, %v4179
        %v4181 = vpop.f32.mrf.mxu0
        %v4182 = vpop.f32.mrf.mxu0
        %v4183 = vadd.f32 0.0, %v4182
        %v4184 = vpop.f32.mrf.mxu0
        %4185 = vdwg.mxu0
        %4186 = vmatprep.subr.bf16.mxu0 0
        %4187 = vmatpush1.bf16.msra.mxu0 %v4104
        %4188 = vmatprep.subr.bf16.mxu0 0
        %4189 = vmatpush1.bf16.msra.mxu0 %v4103
        %4190 = vmatprep.subr.bf16.mxu0 0
        %4191 = vmatpush1.bf16.msra.mxu0 %v4102
        %4192 = vmatprep.subr.bf16.mxu0 0
        %4193 = vmatpush1.bf16.msra.mxu0 %v4101
        %4194 = vmatprep.subr.bf16.mxu0 0
        %4195 = vmatpush1.bf16.msra.mxu0 %v4100
        %4196 = vmatprep.subr.bf16.mxu0 0
        %4197 = vmatpush1.bf16.msra.mxu0 %v4099
        %4198 = vmatprep.subr.bf16.mxu0 0
        %4199 = vmatpush1.bf16.msra.mxu0 %v4098
        %4200 = vmatprep.subr.bf16.mxu0 0
        %4201 = vmatpush1.bf16.msra.mxu0 %v4097
        %4202 = vmatprep.subr.bf16.mxu0 0
        %4203 = vmatpush2.bf16.msra.mxu0 %v4112
        %4204 = vmatprep.subr.bf16.mxu0 0
        %4205 = vmatpush2.bf16.msra.mxu0 %v4111
        %4206 = vmatprep.subr.bf16.mxu0 0
        %4207 = vmatpush2.bf16.msra.mxu0 %v4110
        %4208 = vmatprep.subr.bf16.mxu0 0
        %4209 = vmatpush2.bf16.msra.mxu0 %v4109
        %4210 = vmatprep.subr.bf16.mxu0 0
        %4211 = vmatpush2.bf16.msra.mxu0 %v4108
        %4212 = vmatprep.subr.bf16.mxu0 0
        %4213 = vmatpush2.bf16.msra.mxu0 %v4107
        %4214 = vmatprep.subr.bf16.mxu0 0
        %4215 = vmatpush2.bf16.msra.mxu0 %v4106
        %4216 = vmatprep.subr.bf16.mxu0 0
        %4217 = vmatpush2.bf16.msra.mxu0 %v4105
        %4218 = vmatprep.mubr.bf16.mxu0 %v3888
        %4219 = vmatmul.mubr.bf16.gmra.mxu0 %v3887
        %v4220 = vpop.f32.mrf.mxu0
        %v4221 = vadd.f32 %v4180, %v4220
        %v4222 = vpop.f32.mrf.mxu0
        %v4223 = vpop.f32.mrf.mxu0
        %v4224 = vadd.f32 %v4183, %v4223
        %v4225 = vpop.f32.mrf.mxu0
        %4226 = vdwg.mxu0
        %v4227 = vadd.f32 %v3571, %v4221
        %v4228 = vadd.f32 %v3574, %v4224
        %v4229 = vld [vmem:[%s964 + $0x30] sm:$0xff]
        %v4230 = vld [vmem:[%s964 + $0x38] sm:$0xff]
        %v4231 = vld [vmem:[%s964 + $0x70] sm:$0xff]
        %v4232 = vld [vmem:[%s964 + $0x78] sm:$0xff]
        %v4233 = vld [vmem:[%s964 + $0xb0] sm:$0xff]
        %v4234 = vld [vmem:[%s964 + $0xb8] sm:$0xff]
        %v4235 = vld [vmem:[%s964 + $0xf0] sm:$0xff]
        %v4236 = vld [vmem:[%s964 + $0xf8] sm:$0xff]
        %v4237 = vld [vmem:[%s964 + $0x130] sm:$0xff]
        %v4238 = vld [vmem:[%s964 + $0x138] sm:$0xff]
        %v4239 = vld [vmem:[%s964 + $0x170] sm:$0xff]
        %v4240 = vld [vmem:[%s964 + $0x178] sm:$0xff]
        %v4241 = vld [vmem:[%s964 + $0x1b0] sm:$0xff]
        %v4242 = vld [vmem:[%s964 + $0x1b8] sm:$0xff]
        %v4243 = vld [vmem:[%s964 + $0x1f0] sm:$0xff]
        %v4244 = vld [vmem:[%s964 + $0x1f8] sm:$0xff]
        %v4245 = vld [vmem:[%s964 + $0x230] sm:$0xff]
        %v4246 = vld [vmem:[%s964 + $0x238] sm:$0xff]
        %v4247 = vld [vmem:[%s964 + $0x270] sm:$0xff]
        %v4248 = vld [vmem:[%s964 + $0x278] sm:$0xff]
        %v4249 = vld [vmem:[%s964 + $0x2b0] sm:$0xff]
        %v4250 = vld [vmem:[%s964 + $0x2b8] sm:$0xff]
        %v4251 = vld [vmem:[%s964 + $0x2f0] sm:$0xff]
        %v4252 = vld [vmem:[%s964 + $0x2f8] sm:$0xff]
        %v4253 = vld [vmem:[%s964 + $0x330] sm:$0xff]
        %v4254 = vld [vmem:[%s964 + $0x338] sm:$0xff]
        %v4255 = vld [vmem:[%s964 + $0x370] sm:$0xff]
        %v4256 = vld [vmem:[%s964 + $0x378] sm:$0xff]
        %v4257 = vld [vmem:[%s964 + $0x3b0] sm:$0xff]
        %v4258 = vld [vmem:[%s964 + $0x3b8] sm:$0xff]
        %v4259 = vld [vmem:[%s964 + $0x3f0] sm:$0xff]
        %v4260 = vld [vmem:[%s964 + $0x3f8] sm:$0xff]
        %v4261 = vld [vmem:[%s1096 + $0xc] sm:$0xf]
        %v4263 = vlaneseq
        %v4264 = vshrl.u32 %v4263, 7
        %v4265 = vsub.s32 0, %v4264
        %v4266 = vrot.slane %v4261, %v4265
        %v4267 = vlaneseq
        %v4268 = vshrl.u32 %v4267, 7
        %v4269 = vsub.s32 1, %v4268
        %v4270 = vrot.slane %v4261, %v4269
        %v4271 = vlaneseq
        %v4272 = vshrl.u32 %v4271, 7
        %v4273 = vsub.s32 2, %v4272
        %v4274 = vrot.slane %v4261, %v4273
        %v4275 = vlaneseq
        %v4276 = vshrl.u32 %v4275, 7
        %v4277 = vsub.s32 3, %v4276
        %v4278 = vrot.slane %v4261, %v4277
        %v4315 = vunpack.c.l.b16 %v4229
        %v4316 = vunpack.c.h.b16 %v4229
        %v4317 = vunpack.c.l.b16 %v4230
        %v4318 = vunpack.c.h.b16 %v4230
        %v4319 = vunpack.c.l.b16 %v4231
        %v4320 = vunpack.c.h.b16 %v4231
        %v4321 = vunpack.c.l.b16 %v4232
        %v4322 = vunpack.c.h.b16 %v4232
        %v4323 = vunpack.c.l.b16 %v4233
        %v4324 = vunpack.c.h.b16 %v4233
        %v4325 = vunpack.c.l.b16 %v4234
        %v4326 = vunpack.c.h.b16 %v4234
        %v4327 = vunpack.c.l.b16 %v4235
        %v4328 = vunpack.c.h.b16 %v4235
        %v4329 = vunpack.c.l.b16 %v4236
        %v4330 = vunpack.c.h.b16 %v4236
        %v4331 = vunpack.c.l.b16 %v4237
        %v4332 = vunpack.c.h.b16 %v4237
        %v4333 = vunpack.c.l.b16 %v4238
        %v4334 = vunpack.c.h.b16 %v4238
        %v4335 = vunpack.c.l.b16 %v4239
        %v4336 = vunpack.c.h.b16 %v4239
        %v4337 = vunpack.c.l.b16 %v4240
        %v4338 = vunpack.c.h.b16 %v4240
        %v4339 = vunpack.c.l.b16 %v4241
        %v4340 = vunpack.c.h.b16 %v4241
        %v4341 = vunpack.c.l.b16 %v4242
        %v4342 = vunpack.c.h.b16 %v4242
        %v4343 = vunpack.c.l.b16 %v4243
        %v4344 = vunpack.c.h.b16 %v4243
        %v4345 = vunpack.c.l.b16 %v4244
        %v4346 = vunpack.c.h.b16 %v4244
        %v4347 = vunpack.c.l.b16 %v4245
        %v4348 = vunpack.c.h.b16 %v4245
        %v4349 = vunpack.c.l.b16 %v4246
        %v4350 = vunpack.c.h.b16 %v4246
        %v4351 = vunpack.c.l.b16 %v4247
        %v4352 = vunpack.c.h.b16 %v4247
        %v4353 = vunpack.c.l.b16 %v4248
        %v4354 = vunpack.c.h.b16 %v4248
        %v4355 = vunpack.c.l.b16 %v4249
        %v4356 = vunpack.c.h.b16 %v4249
        %v4357 = vunpack.c.l.b16 %v4250
        %v4358 = vunpack.c.h.b16 %v4250
        %v4359 = vunpack.c.l.b16 %v4251
        %v4360 = vunpack.c.h.b16 %v4251
        %v4361 = vunpack.c.l.b16 %v4252
        %v4362 = vunpack.c.h.b16 %v4252
        %v4363 = vunpack.c.l.b16 %v4253
        %v4364 = vunpack.c.h.b16 %v4253
        %v4365 = vunpack.c.l.b16 %v4254
        %v4366 = vunpack.c.h.b16 %v4254
        %v4367 = vunpack.c.l.b16 %v4255
        %v4368 = vunpack.c.h.b16 %v4255
        %v4369 = vunpack.c.l.b16 %v4256
        %v4370 = vunpack.c.h.b16 %v4256
        %v4371 = vunpack.c.l.b16 %v4257
        %v4372 = vunpack.c.h.b16 %v4257
        %v4373 = vunpack.c.l.b16 %v4258
        %v4374 = vunpack.c.h.b16 %v4258
        %v4375 = vunpack.c.l.b16 %v4259
        %v4376 = vunpack.c.h.b16 %v4259
        %v4377 = vunpack.c.l.b16 %v4260
        %v4378 = vunpack.c.h.b16 %v4260
        %v4379 = vpack.c.b16 %v4319, %v4315
        %v4380 = vpack.c.b16 %v4320, %v4316
        %v4381 = vpack.c.b16 %v4321, %v4317
        %v4382 = vpack.c.b16 %v4322, %v4318
        %v4383 = vpack.c.b16 %v4327, %v4323
        %v4384 = vpack.c.b16 %v4328, %v4324
        %v4385 = vpack.c.b16 %v4329, %v4325
        %v4386 = vpack.c.b16 %v4330, %v4326
        %v4387 = vpack.c.b16 %v4335, %v4331
        %v4388 = vpack.c.b16 %v4336, %v4332
        %v4389 = vpack.c.b16 %v4337, %v4333
        %v4390 = vpack.c.b16 %v4338, %v4334
        %v4391 = vpack.c.b16 %v4343, %v4339
        %v4392 = vpack.c.b16 %v4344, %v4340
        %v4393 = vpack.c.b16 %v4345, %v4341
        %v4394 = vpack.c.b16 %v4346, %v4342
        %v4395 = vpack.c.b16 %v4351, %v4347
        %v4396 = vpack.c.b16 %v4352, %v4348
        %v4397 = vpack.c.b16 %v4353, %v4349
        %v4398 = vpack.c.b16 %v4354, %v4350
        %v4399 = vpack.c.b16 %v4359, %v4355
        %v4400 = vpack.c.b16 %v4360, %v4356
        %v4401 = vpack.c.b16 %v4361, %v4357
        %v4402 = vpack.c.b16 %v4362, %v4358
        %v4403 = vpack.c.b16 %v4367, %v4363
        %v4404 = vpack.c.b16 %v4368, %v4364
        %v4405 = vpack.c.b16 %v4369, %v4365
        %v4406 = vpack.c.b16 %v4370, %v4366
        %v4407 = vpack.c.b16 %v4375, %v4371
        %v4408 = vpack.c.b16 %v4376, %v4372
        %v4409 = vpack.c.b16 %v4377, %v4373
        %v4410 = vpack.c.b16 %v4378, %v4374
        %4443 = vmatprep.subr.bf16.mxu0 %v4408
        %4444 = vmatpush1.bf16.msra.mxu0 %v4407
        %4445 = vmatprep.subr.bf16.mxu0 %v4404
        %4446 = vmatpush1.bf16.msra.mxu0 %v4403
        %4447 = vmatprep.subr.bf16.mxu0 %v4400
        %4448 = vmatpush1.bf16.msra.mxu0 %v4399
        %4449 = vmatprep.subr.bf16.mxu0 %v4396
        %4450 = vmatpush1.bf16.msra.mxu0 %v4395
        %4451 = vmatprep.subr.bf16.mxu0 %v4392
        %4452 = vmatpush1.bf16.msra.mxu0 %v4391
        %4453 = vmatprep.subr.bf16.mxu0 %v4388
        %4454 = vmatpush1.bf16.msra.mxu0 %v4387
        %4455 = vmatprep.subr.bf16.mxu0 %v4384
        %4456 = vmatpush1.bf16.msra.mxu0 %v4383
        %4457 = vmatprep.subr.bf16.mxu0 %v4380
        %4458 = vmatpush1.bf16.msra.mxu0 %v4379
        %4459 = vmatprep.subr.bf16.mxu0 0
        %4460 = vmatpush2.bf16.msra.mxu0 0
        %4461 = vmatprep.subr.bf16.mxu0 0
        %4462 = vmatpush2.bf16.msra.mxu0 0
        %4463 = vmatprep.subr.bf16.mxu0 0
        %4464 = vmatpush2.bf16.msra.mxu0 0
        %4465 = vmatprep.subr.bf16.mxu0 0
        %4466 = vmatpush2.bf16.msra.mxu0 0
        %4467 = vmatprep.subr.bf16.mxu0 0
        %4468 = vmatpush2.bf16.msra.mxu0 0
        %4469 = vmatprep.subr.bf16.mxu0 0
        %4470 = vmatpush2.bf16.msra.mxu0 0
        %4471 = vmatprep.subr.bf16.mxu0 0
        %4472 = vmatpush2.bf16.msra.mxu0 0
        %4473 = vmatprep.subr.bf16.mxu0 0
        %4474 = vmatpush2.bf16.msra.mxu0 0
        %4475 = vmatprep.mubr.bf16.mxu0 0
        %4476 = vmatmul.mubr.bf16.gmra.mxu0 %v2276
        %v4477 = vpop.f32.mrf.mxu0
        %v4478 = vadd.f32 %v4266, %v4477
        %v4479 = vpop.f32.mrf.mxu0
        %v4480 = vadd.f32 %v4270, %v4479
        %v4481 = vpop.f32.mrf.mxu0
        %v4482 = vadd.f32 %v4266, %v4481
        %v4483 = vpop.f32.mrf.mxu0
        %v4484 = vadd.f32 %v4270, %v4483
        %4485 = vdwg.mxu0
        %4486 = vmatprep.subr.bf16.mxu0 %v4410
        %4487 = vmatpush1.bf16.msra.mxu0 %v4409
        %4488 = vmatprep.subr.bf16.mxu0 %v4406
        %4489 = vmatpush1.bf16.msra.mxu0 %v4405
        %4490 = vmatprep.subr.bf16.mxu0 %v4402
        %4491 = vmatpush1.bf16.msra.mxu0 %v4401
        %4492 = vmatprep.subr.bf16.mxu0 %v4398
        %4493 = vmatpush1.bf16.msra.mxu0 %v4397
        %4494 = vmatprep.subr.bf16.mxu0 %v4394
        %4495 = vmatpush1.bf16.msra.mxu0 %v4393
        %4496 = vmatprep.subr.bf16.mxu0 %v4390
        %4497 = vmatpush1.bf16.msra.mxu0 %v4389
        %4498 = vmatprep.subr.bf16.mxu0 %v4386
        %4499 = vmatpush1.bf16.msra.mxu0 %v4385
        %4500 = vmatprep.subr.bf16.mxu0 %v4382
        %4501 = vmatpush1.bf16.msra.mxu0 %v4381
        %4502 = vmatprep.subr.bf16.mxu0 0
        %4503 = vmatpush2.bf16.msra.mxu0 0
        %4504 = vmatprep.subr.bf16.mxu0 0
        %4505 = vmatpush2.bf16.msra.mxu0 0
        %4506 = vmatprep.subr.bf16.mxu0 0
        %4507 = vmatpush2.bf16.msra.mxu0 0
        %4508 = vmatprep.subr.bf16.mxu0 0
        %4509 = vmatpush2.bf16.msra.mxu0 0
        %4510 = vmatprep.subr.bf16.mxu0 0
        %4511 = vmatpush2.bf16.msra.mxu0 0
        %4512 = vmatprep.subr.bf16.mxu0 0
        %4513 = vmatpush2.bf16.msra.mxu0 0
        %4514 = vmatprep.subr.bf16.mxu0 0
        %4515 = vmatpush2.bf16.msra.mxu0 0
        %4516 = vmatprep.subr.bf16.mxu0 0
        %4517 = vmatpush2.bf16.msra.mxu0 0
        %4518 = vmatprep.mubr.bf16.mxu0 0
        %4519 = vmatmul.mubr.bf16.gmra.mxu0 %v2276
        %v4520 = vpop.f32.mrf.mxu0
        %v4521 = vadd.f32 %v4274, %v4520
        %v4522 = vpop.f32.mrf.mxu0
        %v4523 = vadd.f32 %v4278, %v4522
        %v4524 = vpop.f32.mrf.mxu0
        %v4525 = vadd.f32 %v4274, %v4524
        %v4526 = vpop.f32.mrf.mxu0
        %v4527 = vadd.f32 %v4278, %v4526
        %4528 = vdwg.mxu0
        %v4529 = vmax.f32 %v4478, 0.0
        %v4530 = vmax.f32 %v4480, 0.0
        %v4531 = vmax.f32 %v4521, 0.0
        %v4532 = vmax.f32 %v4523, 0.0
        %v4533 = vmax.f32 %v4482, 0.0
        %v4534 = vmax.f32 %v4484, 0.0
        %v4535 = vmax.f32 %v4525, 0.0
        %v4536 = vmax.f32 %v4527, 0.0
        %v4537 = vpack.c.bf16 %v4533, %v4529
        %v4538 = vpack.c.bf16 %v4534, %v4530
        %v4539 = vpack.c.bf16 %v4535, %v4531
        %v4540 = vpack.c.bf16 %v4536, %v4532
        %v4541 = vld [vmem:[%s973 + $0x300] sm:$0xf]
        %v4542 = vld [vmem:[%s973 + $0x304] sm:$0xf]
        %v4543 = vld [vmem:[%s973 + $0x308] sm:$0xf]
        %v4544 = vld [vmem:[%s973 + $0x30c] sm:$0xf]
        %v4545 = vld [vmem:[%s973 + $0x310] sm:$0xf]
        %v4546 = vld [vmem:[%s973 + $0x314] sm:$0xf]
        %v4547 = vld [vmem:[%s973 + $0x318] sm:$0xf]
        %v4548 = vld [vmem:[%s973 + $0x31c] sm:$0xf]
        %v4549 = vld [vmem:[%s973 + $0x320] sm:$0xf]
        %v4550 = vld [vmem:[%s973 + $0x324] sm:$0xf]
        %v4551 = vld [vmem:[%s973 + $0x328] sm:$0xf]
        %v4552 = vld [vmem:[%s973 + $0x32c] sm:$0xf]
        %v4553 = vld [vmem:[%s973 + $0x330] sm:$0xf]
        %v4554 = vld [vmem:[%s973 + $0x334] sm:$0xf]
        %v4555 = vld [vmem:[%s973 + $0x338] sm:$0xf]
        %v4556 = vld [vmem:[%s973 + $0x33c] sm:$0xf]
        %v4557 = vld [vmem:[%s973 + $0x340] sm:$0xf]
        %v4558 = vld [vmem:[%s973 + $0x344] sm:$0xf]
        %v4559 = vld [vmem:[%s973 + $0x348] sm:$0xf]
        %v4560 = vld [vmem:[%s973 + $0x34c] sm:$0xf]
        %v4561 = vld [vmem:[%s973 + $0x350] sm:$0xf]
        %v4562 = vld [vmem:[%s973 + $0x354] sm:$0xf]
        %v4563 = vld [vmem:[%s973 + $0x358] sm:$0xf]
        %v4564 = vld [vmem:[%s973 + $0x35c] sm:$0xf]
        %v4565 = vld [vmem:[%s973 + $0x360] sm:$0xf]
        %v4566 = vld [vmem:[%s973 + $0x364] sm:$0xf]
        %v4567 = vld [vmem:[%s973 + $0x368] sm:$0xf]
        %v4568 = vld [vmem:[%s973 + $0x36c] sm:$0xf]
        %v4569 = vld [vmem:[%s973 + $0x370] sm:$0xf]
        %v4570 = vld [vmem:[%s973 + $0x374] sm:$0xf]
        %v4571 = vld [vmem:[%s973 + $0x378] sm:$0xf]
        %v4572 = vld [vmem:[%s973 + $0x37c] sm:$0xf]
        %v4573 = vld [vmem:[%s973 + $0x380] sm:$0xf]
        %v4574 = vld [vmem:[%s973 + $0x384] sm:$0xf]
        %v4575 = vld [vmem:[%s973 + $0x388] sm:$0xf]
        %v4576 = vld [vmem:[%s973 + $0x38c] sm:$0xf]
        %v4577 = vld [vmem:[%s973 + $0x390] sm:$0xf]
        %v4578 = vld [vmem:[%s973 + $0x394] sm:$0xf]
        %v4579 = vld [vmem:[%s973 + $0x398] sm:$0xf]
        %v4580 = vld [vmem:[%s973 + $0x39c] sm:$0xf]
        %v4581 = vld [vmem:[%s973 + $0x3a0] sm:$0xf]
        %v4582 = vld [vmem:[%s973 + $0x3a4] sm:$0xf]
        %v4583 = vld [vmem:[%s973 + $0x3a8] sm:$0xf]
        %v4584 = vld [vmem:[%s973 + $0x3ac] sm:$0xf]
        %v4585 = vld [vmem:[%s973 + $0x3b0] sm:$0xf]
        %v4586 = vld [vmem:[%s973 + $0x3b4] sm:$0xf]
        %v4587 = vld [vmem:[%s973 + $0x3b8] sm:$0xf]
        %v4588 = vld [vmem:[%s973 + $0x3bc] sm:$0xf]
        %v4589 = vld [vmem:[%s973 + $0x3c0] sm:$0xf]
        %v4590 = vld [vmem:[%s973 + $0x3c4] sm:$0xf]
        %v4591 = vld [vmem:[%s973 + $0x3c8] sm:$0xf]
        %v4592 = vld [vmem:[%s973 + $0x3cc] sm:$0xf]
        %v4593 = vld [vmem:[%s973 + $0x3d0] sm:$0xf]
        %v4594 = vld [vmem:[%s973 + $0x3d4] sm:$0xf]
        %v4595 = vld [vmem:[%s973 + $0x3d8] sm:$0xf]
        %v4596 = vld [vmem:[%s973 + $0x3dc] sm:$0xf]
        %v4597 = vld [vmem:[%s973 + $0x3e0] sm:$0xf]
        %v4598 = vld [vmem:[%s973 + $0x3e4] sm:$0xf]
        %v4599 = vld [vmem:[%s973 + $0x3e8] sm:$0xf]
        %v4600 = vld [vmem:[%s973 + $0x3ec] sm:$0xf]
        %v4601 = vld [vmem:[%s973 + $0x3f0] sm:$0xf]
        %v4602 = vld [vmem:[%s973 + $0x3f4] sm:$0xf]
        %v4603 = vld [vmem:[%s973 + $0x3f8] sm:$0xf]
        %v4604 = vld [vmem:[%s973 + $0x3fc] sm:$0xf]
        %v4669 = vunpack.c.l.b16 %v4541
        %v4670 = vunpack.c.l.b16 %v4542
        %v4671 = vunpack.c.l.b16 %v4543
        %v4672 = vunpack.c.l.b16 %v4544
        %v4673 = vunpack.c.l.b16 %v4545
        %v4674 = vunpack.c.l.b16 %v4546
        %v4675 = vunpack.c.l.b16 %v4547
        %v4676 = vunpack.c.l.b16 %v4548
        %v4677 = vunpack.c.l.b16 %v4549
        %v4678 = vunpack.c.l.b16 %v4550
        %v4679 = vunpack.c.l.b16 %v4551
        %v4680 = vunpack.c.l.b16 %v4552
        %v4681 = vunpack.c.l.b16 %v4553
        %v4682 = vunpack.c.l.b16 %v4554
        %v4683 = vunpack.c.l.b16 %v4555
        %v4684 = vunpack.c.l.b16 %v4556
        %v4685 = vunpack.c.l.b16 %v4557
        %v4686 = vunpack.c.l.b16 %v4558
        %v4687 = vunpack.c.l.b16 %v4559
        %v4688 = vunpack.c.l.b16 %v4560
        %v4689 = vunpack.c.l.b16 %v4561
        %v4690 = vunpack.c.l.b16 %v4562
        %v4691 = vunpack.c.l.b16 %v4563
        %v4692 = vunpack.c.l.b16 %v4564
        %v4693 = vunpack.c.l.b16 %v4565
        %v4694 = vunpack.c.l.b16 %v4566
        %v4695 = vunpack.c.l.b16 %v4567
        %v4696 = vunpack.c.l.b16 %v4568
        %v4697 = vunpack.c.l.b16 %v4569
        %v4698 = vunpack.c.l.b16 %v4570
        %v4699 = vunpack.c.l.b16 %v4571
        %v4700 = vunpack.c.l.b16 %v4572
        %v4701 = vunpack.c.l.b16 %v4573
        %v4702 = vunpack.c.l.b16 %v4574
        %v4703 = vunpack.c.l.b16 %v4575
        %v4704 = vunpack.c.l.b16 %v4576
        %v4705 = vunpack.c.l.b16 %v4577
        %v4706 = vunpack.c.l.b16 %v4578
        %v4707 = vunpack.c.l.b16 %v4579
        %v4708 = vunpack.c.l.b16 %v4580
        %v4709 = vunpack.c.l.b16 %v4581
        %v4710 = vunpack.c.l.b16 %v4582
        %v4711 = vunpack.c.l.b16 %v4583
        %v4712 = vunpack.c.l.b16 %v4584
        %v4713 = vunpack.c.l.b16 %v4585
        %v4714 = vunpack.c.l.b16 %v4586
        %v4715 = vunpack.c.l.b16 %v4587
        %v4716 = vunpack.c.l.b16 %v4588
        %v4717 = vunpack.c.l.b16 %v4589
        %v4718 = vunpack.c.l.b16 %v4590
        %v4719 = vunpack.c.l.b16 %v4591
        %v4720 = vunpack.c.l.b16 %v4592
        %v4721 = vunpack.c.l.b16 %v4593
        %v4722 = vunpack.c.l.b16 %v4594
        %v4723 = vunpack.c.l.b16 %v4595
        %v4724 = vunpack.c.l.b16 %v4596
        %v4725 = vunpack.c.l.b16 %v4597
        %v4726 = vunpack.c.l.b16 %v4598
        %v4727 = vunpack.c.l.b16 %v4599
        %v4728 = vunpack.c.l.b16 %v4600
        %v4729 = vunpack.c.l.b16 %v4601
        %v4730 = vunpack.c.l.b16 %v4602
        %v4731 = vunpack.c.l.b16 %v4603
        %v4732 = vunpack.c.l.b16 %v4604
        %v4733 = vpack.c.b16 %v4670, %v4669
        %v4734 = vpack.c.b16 %v4672, %v4671
        %v4735 = vpack.c.b16 %v4674, %v4673
        %v4736 = vpack.c.b16 %v4676, %v4675
        %v4737 = vpack.c.b16 %v4678, %v4677
        %v4738 = vpack.c.b16 %v4680, %v4679
        %v4739 = vpack.c.b16 %v4682, %v4681
        %v4740 = vpack.c.b16 %v4684, %v4683
        %v4741 = vpack.c.b16 %v4686, %v4685
        %v4742 = vpack.c.b16 %v4688, %v4687
        %v4743 = vpack.c.b16 %v4690, %v4689
        %v4744 = vpack.c.b16 %v4692, %v4691
        %v4745 = vpack.c.b16 %v4694, %v4693
        %v4746 = vpack.c.b16 %v4696, %v4695
        %v4747 = vpack.c.b16 %v4698, %v4697
        %v4748 = vpack.c.b16 %v4700, %v4699
        %v4749 = vpack.c.b16 %v4702, %v4701
        %v4750 = vpack.c.b16 %v4704, %v4703
        %v4751 = vpack.c.b16 %v4706, %v4705
        %v4752 = vpack.c.b16 %v4708, %v4707
        %v4753 = vpack.c.b16 %v4710, %v4709
        %v4754 = vpack.c.b16 %v4712, %v4711
        %v4755 = vpack.c.b16 %v4714, %v4713
        %v4756 = vpack.c.b16 %v4716, %v4715
        %v4757 = vpack.c.b16 %v4718, %v4717
        %v4758 = vpack.c.b16 %v4720, %v4719
        %v4759 = vpack.c.b16 %v4722, %v4721
        %v4760 = vpack.c.b16 %v4724, %v4723
        %v4761 = vpack.c.b16 %v4726, %v4725
        %v4762 = vpack.c.b16 %v4728, %v4727
        %v4763 = vpack.c.b16 %v4730, %v4729
        %v4764 = vpack.c.b16 %v4732, %v4731
        %4797 = vmatprep.subr.bf16.mxu0 0
        %4798 = vmatpush1.bf16.msra.mxu0 %v4740
        %4799 = vmatprep.subr.bf16.mxu0 0
        %4800 = vmatpush1.bf16.msra.mxu0 %v4739
        %4801 = vmatprep.subr.bf16.mxu0 0
        %4802 = vmatpush1.bf16.msra.mxu0 %v4738
        %4803 = vmatprep.subr.bf16.mxu0 0
        %4804 = vmatpush1.bf16.msra.mxu0 %v4737
        %4805 = vmatprep.subr.bf16.mxu0 0
        %4806 = vmatpush1.bf16.msra.mxu0 %v4736
        %4807 = vmatprep.subr.bf16.mxu0 0
        %4808 = vmatpush1.bf16.msra.mxu0 %v4735
        %4809 = vmatprep.subr.bf16.mxu0 0
        %4810 = vmatpush1.bf16.msra.mxu0 %v4734
        %4811 = vmatprep.subr.bf16.mxu0 0
        %4812 = vmatpush1.bf16.msra.mxu0 %v4733
        %4813 = vmatprep.subr.bf16.mxu0 0
        %4814 = vmatpush2.bf16.msra.mxu0 %v4748
        %4815 = vmatprep.subr.bf16.mxu0 0
        %4816 = vmatpush2.bf16.msra.mxu0 %v4747
        %4817 = vmatprep.subr.bf16.mxu0 0
        %4818 = vmatpush2.bf16.msra.mxu0 %v4746
        %4819 = vmatprep.subr.bf16.mxu0 0
        %4820 = vmatpush2.bf16.msra.mxu0 %v4745
        %4821 = vmatprep.subr.bf16.mxu0 0
        %4822 = vmatpush2.bf16.msra.mxu0 %v4744
        %4823 = vmatprep.subr.bf16.mxu0 0
        %4824 = vmatpush2.bf16.msra.mxu0 %v4743
        %4825 = vmatprep.subr.bf16.mxu0 0
        %4826 = vmatpush2.bf16.msra.mxu0 %v4742
        %4827 = vmatprep.subr.bf16.mxu0 0
        %4828 = vmatpush2.bf16.msra.mxu0 %v4741
        %4829 = vmatprep.mubr.bf16.mxu0 %v4538
        %4830 = vmatmul.mubr.bf16.gmra.mxu0 %v4537
        %v4831 = vpop.f32.mrf.mxu0
        %v4832 = vadd.f32 0.0, %v4831
        %v4833 = vpop.f32.mrf.mxu0
        %v4834 = vpop.f32.mrf.mxu0
        %v4835 = vadd.f32 0.0, %v4834
        %v4836 = vpop.f32.mrf.mxu0
        %4837 = vdwg.mxu0
        %4838 = vmatprep.subr.bf16.mxu0 0
        %4839 = vmatpush1.bf16.msra.mxu0 %v4756
        %4840 = vmatprep.subr.bf16.mxu0 0
        %4841 = vmatpush1.bf16.msra.mxu0 %v4755
        %4842 = vmatprep.subr.bf16.mxu0 0
        %4843 = vmatpush1.bf16.msra.mxu0 %v4754
        %4844 = vmatprep.subr.bf16.mxu0 0
        %4845 = vmatpush1.bf16.msra.mxu0 %v4753
        %4846 = vmatprep.subr.bf16.mxu0 0
        %4847 = vmatpush1.bf16.msra.mxu0 %v4752
        %4848 = vmatprep.subr.bf16.mxu0 0
        %4849 = vmatpush1.bf16.msra.mxu0 %v4751
        %4850 = vmatprep.subr.bf16.mxu0 0
        %4851 = vmatpush1.bf16.msra.mxu0 %v4750
        %4852 = vmatprep.subr.bf16.mxu0 0
        %4853 = vmatpush1.bf16.msra.mxu0 %v4749
        %4854 = vmatprep.subr.bf16.mxu0 0
        %4855 = vmatpush2.bf16.msra.mxu0 %v4764
        %4856 = vmatprep.subr.bf16.mxu0 0
        %4857 = vmatpush2.bf16.msra.mxu0 %v4763
        %4858 = vmatprep.subr.bf16.mxu0 0
        %4859 = vmatpush2.bf16.msra.mxu0 %v4762
        %4860 = vmatprep.subr.bf16.mxu0 0
        %4861 = vmatpush2.bf16.msra.mxu0 %v4761
        %4862 = vmatprep.subr.bf16.mxu0 0
        %4863 = vmatpush2.bf16.msra.mxu0 %v4760
        %4864 = vmatprep.subr.bf16.mxu0 0
        %4865 = vmatpush2.bf16.msra.mxu0 %v4759
        %4866 = vmatprep.subr.bf16.mxu0 0
        %4867 = vmatpush2.bf16.msra.mxu0 %v4758
        %4868 = vmatprep.subr.bf16.mxu0 0
        %4869 = vmatpush2.bf16.msra.mxu0 %v4757
        %4870 = vmatprep.mubr.bf16.mxu0 %v4540
        %4871 = vmatmul.mubr.bf16.gmra.mxu0 %v4539
        %v4872 = vpop.f32.mrf.mxu0
        %v4873 = vadd.f32 %v4832, %v4872
        %v4874 = vpop.f32.mrf.mxu0
        %v4875 = vpop.f32.mrf.mxu0
        %v4876 = vadd.f32 %v4835, %v4875
        %v4877 = vpop.f32.mrf.mxu0
        %4878 = vdwg.mxu0
        %v4879 = vadd.f32 %v4227, %v4873
        %v4880 = vadd.f32 %v4228, %v4876
        %v4881 = vld [vmem:[%s1099] sm:$0x1]
        %v4883 = vlaneseq
        %v4884 = vshrl.u32 %v4883, 7
        %v4885 = vsub.s32 0, %v4884
        %v4886 = vrot.slane %v4881, %v4885
        %v4888 = vadd.f32 %v4879, %v4886
        %v4889 = vadd.f32 %v4880, %v4886
        %v4890 = vadd.f32 %v2274, %v4888
        %v4891 = vadd.f32 %v2275, %v4889
        %v4892 = vld [vmem:[%s1102] sm:$0x1]
        %v4893 = vld [vmem:[%s1105] sm:$0x1]
        %4894 = vadd.xlane.f32.xlu0 %v4890
        %v4895 = vpop.xlane.xlu0 %4894
        %4896 = vadd.xlane.f32.xlu0 %v4891
        %v4897 = vpop.xlane.xlu0 %4896
        %v4898 = vmul.f32 %v4895, %v2241
        %v4899 = vmul.f32 %v4897, %v2241
        %v4900 = vsub.f32 %v4890, %v4898
        %v4901 = vsub.f32 %v4891, %v4899
        %v4902 = vmul.f32 %v4900, %v4900
        %v4903 = vmul.f32 %v4901, %v4901
        %4904 = vadd.xlane.f32.xlu0 %v4902
        %v4905 = vpop.xlane.xlu0 %4904
        %4906 = vadd.xlane.f32.xlu0 %v4903
        %v4907 = vpop.xlane.xlu0 %4906
        %v4908 = vmul.f32 %v4905, %v2241
        %v4909 = vmul.f32 %v4907, %v2241
        %v4910 = vadd.f32 %v4908, 1e-05
        %v4911 = vadd.f32 %v4909, 1e-05
        %v4912 = vrsqrt.pop %v4910
        %v4913 = vrsqrt.pop %v4911
        %v4914 = vmul.f32 %v4900, %v4912
        %v4915 = vmul.f32 %v4901, %v4913
        %v4917 = vlaneseq
        %v4918 = vshrl.u32 %v4917, 7
        %v4919 = vsub.s32 0, %v4918
        %v4920 = vrot.slane %v4892, %v4919
        %v4922 = vmul.f32 %v4914, %v4920
        %v4923 = vmul.f32 %v4915, %v4920
        %v4925 = vlaneseq
        %v4926 = vshrl.u32 %v4925, 7
        %v4927 = vsub.s32 0, %v4926
        %v4928 = vrot.slane %v4893, %v4927
        %v4930 = vadd.f32 %v4922, %v4928
        %v4931 = vadd.f32 %v4923, %v4928
        %4932 = vst [vmem:[#allocation2] sm:$0xff] %v4930
        %4933 = vst [vmem:[#allocation2 + $0x8] sm:$0xff] %v4931
        %p4934 = scmp.eq.s32.totalorder %s44, 1
        // Predicated region
        $region165: #{t2vbert_forward.1} parent=127 // pred_check
          %p4935 = pneg %p4934
        $region166: #{t2vbert_forward.1} parent=127 // pred_check_branch
          %4937 = sbr.rel (%p4935) target = $region168
        $region167: #{t2vbert_forward.1} parent=127 // pred_region
          %v4938 = vrot.slane %v4930, 4
          %v4939 = vadd.f32 %v4930, %v4938
          %v4940 = vrot.slane %v4939, 2
          %v4941 = vadd.f32 %v4939, %v4940
          %v4942 = vrot.slane %v4941, 1
          %v4943 = vadd.f32 %v4941, %v4942
          %v4944 = vrcp.pop 8.0
          %v4945 = vmul.f32 %v4943, %v4944
          %v4946 = vrot.slane %v4931, 4
          %v4947 = vadd.f32 %v4931, %v4946
          %v4948 = vrot.slane %v4947, 2
          %v4949 = vadd.f32 %v4947, %v4948
          %v4950 = vrot.slane %v4949, 1
          %v4951 = vadd.f32 %v4949, %v4950
          %v4952 = vmul.f32 %v4951, %v4944
          %vm4953 = vcmask 1040384
          %v4954 = vsel %vm4953, %v4945, %v4952
          %v4955 = vld [vmem:[%s11] sm:$0xff]
          %v4956 = vld [vmem:[%s11 + $0x8] sm:$0xff]
          %v4957 = vld [vmem:[%s11 + $0x10] sm:$0xff]
          %v4958 = vld [vmem:[%s11 + $0x18] sm:$0xff]
          %v4959 = vld [vmem:[%s11 + $0x20] sm:$0xff]
          %v4960 = vld [vmem:[%s11 + $0x28] sm:$0xff]
          %v4961 = vld [vmem:[%s11 + $0x30] sm:$0xff]
          %v4962 = vld [vmem:[%s11 + $0x38] sm:$0xff]
          %v4963 = vld [vmem:[%s11 + $0x40] sm:$0xff]
          %v4964 = vld [vmem:[%s11 + $0x48] sm:$0xff]
          %v4965 = vld [vmem:[%s11 + $0x50] sm:$0xff]
          %v4966 = vld [vmem:[%s11 + $0x58] sm:$0xff]
          %v4967 = vld [vmem:[%s11 + $0x60] sm:$0xff]
          %v4968 = vld [vmem:[%s11 + $0x68] sm:$0xff]
          %v4969 = vld [vmem:[%s11 + $0x70] sm:$0xff]
          %v4970 = vld [vmem:[%s11 + $0x78] sm:$0xff]
          %v4971 = vld [vmem:[#allocation7] sm:$0x1]
          %v4973 = vlaneseq
          %v4974 = vshrl.u32 %v4973, 7
          %v4975 = vsub.s32 0, %v4974
          %v4976 = vrot.slane %v4971, %v4975
          %4978 = vmatprep.subr.mxu0 0.0
          %4979 = vmatpush1.msra.mxu0 %v4970
          %4980 = vmatprep.subr.mxu0 0.0
          %4981 = vmatpush1.msra.mxu0 %v4969
          %4982 = vmatprep.subr.mxu0 0.0
          %4983 = vmatpush1.msra.mxu0 %v4968
          %4984 = vmatprep.subr.mxu0 0.0
          %4985 = vmatpush1.msra.mxu0 %v4967
          %4986 = vmatprep.subr.mxu0 0.0
          %4987 = vmatpush1.msra.mxu0 %v4966
          %4988 = vmatprep.subr.mxu0 0.0
          %4989 = vmatpush1.msra.mxu0 %v4965
          %4990 = vmatprep.subr.mxu0 0.0
          %4991 = vmatpush1.msra.mxu0 %v4964
          %4992 = vmatprep.subr.mxu0 0.0
          %4993 = vmatpush1.msra.mxu0 %v4963
          %4994 = vmatprep.subr.mxu0 0.0
          %4995 = vmatpush1.msra.mxu0 %v4962
          %4996 = vmatprep.subr.mxu0 0.0
          %4997 = vmatpush1.msra.mxu0 %v4961
          %4998 = vmatprep.subr.mxu0 0.0
          %4999 = vmatpush1.msra.mxu0 %v4960
          %5000 = vmatprep.subr.mxu0 0.0
          %5001 = vmatpush1.msra.mxu0 %v4959
          %5002 = vmatprep.subr.mxu0 0.0
          %5003 = vmatpush1.msra.mxu0 %v4958
          %5004 = vmatprep.subr.mxu0 0.0
          %5005 = vmatpush1.msra.mxu0 %v4957
          %5006 = vmatprep.subr.mxu0 0.0
          %5007 = vmatpush1.msra.mxu0 %v4956
          %5008 = vmatprep.subr.mxu0 0.0
          %5009 = vmatpush1.msra.mxu0 %v4955
          %5010 = vmatprep.subr.mxu0 0.0
          %5011 = vmatpush2.msra.mxu0 0.0
          %5012 = vmatprep.subr.mxu0 0.0
          %5013 = vmatpush2.msra.mxu0 0.0
          %5014 = vmatprep.subr.mxu0 0.0
          %5015 = vmatpush2.msra.mxu0 0.0
          %5016 = vmatprep.subr.mxu0 0.0
          %5017 = vmatpush2.msra.mxu0 0.0
          %5018 = vmatprep.subr.mxu0 0.0
          %5019 = vmatpush2.msra.mxu0 0.0
          %5020 = vmatprep.subr.mxu0 0.0
          %5021 = vmatpush2.msra.mxu0 0.0
          %5022 = vmatprep.subr.mxu0 0.0
          %5023 = vmatpush2.msra.mxu0 0.0
          %5024 = vmatprep.subr.mxu0 0.0
          %5025 = vmatpush2.msra.mxu0 0.0
          %5026 = vmatprep.subr.mxu0 0.0
          %5027 = vmatpush2.msra.mxu0 0.0
          %5028 = vmatprep.subr.mxu0 0.0
          %5029 = vmatpush2.msra.mxu0 0.0
          %5030 = vmatprep.subr.mxu0 0.0
          %5031 = vmatpush2.msra.mxu0 0.0
          %5032 = vmatprep.subr.mxu0 0.0
          %5033 = vmatpush2.msra.mxu0 0.0
          %5034 = vmatprep.subr.mxu0 0.0
          %5035 = vmatpush2.msra.mxu0 0.0
          %5036 = vmatprep.subr.mxu0 0.0
          %5037 = vmatpush2.msra.mxu0 0.0
          %5038 = vmatprep.subr.mxu0 0.0
          %5039 = vmatpush2.msra.mxu0 0.0
          %5040 = vmatprep.subr.mxu0 0.0
          %5041 = vmatpush2.msra.mxu0 0.0
          %5042 = vmatprep.mubr.f32.mxu0 0.0
          %5043 = vmatmul.mubr.f32.gmra.mxu0 %v4954
          %v5044 = vpop.f32.mrf.mxu0
          %v5045 = vadd.f32 %v4976, %v5044
          %v5046 = vpop.f32.mrf.mxu0
          %5047 = vdwg.mxu0
          %v5048 = vld [vmem:[#allocation9] sm:$0xff]
          %v5049 = vld [vmem:[#allocation9 + $0x8] sm:$0xff]
          %v5050 = vld [vmem:[#allocation9 + $0x10] sm:$0xff]
          %v5051 = vld [vmem:[#allocation9 + $0x18] sm:$0xff]
          %v5052 = vld [vmem:[#allocation9 + $0x20] sm:$0xff]
          %v5053 = vld [vmem:[#allocation9 + $0x28] sm:$0xff]
          %v5054 = vld [vmem:[#allocation9 + $0x30] sm:$0xff]
          %v5055 = vld [vmem:[#allocation9 + $0x38] sm:$0xff]
          %v5056 = vld [vmem:[#allocation9 + $0x40] sm:$0xff]
          %v5057 = vld [vmem:[#allocation9 + $0x48] sm:$0xff]
          %v5058 = vld [vmem:[#allocation9 + $0x50] sm:$0xff]
          %v5059 = vld [vmem:[#allocation9 + $0x58] sm:$0xff]
          %v5060 = vld [vmem:[#allocation9 + $0x60] sm:$0xff]
          %v5061 = vld [vmem:[#allocation9 + $0x68] sm:$0xff]
          %v5062 = vld [vmem:[#allocation9 + $0x70] sm:$0xff]
          %v5063 = vld [vmem:[#allocation9 + $0x78] sm:$0xff]
          %v5064 = vld [vmem:[#allocation10] sm:$0x1]
          %v5066 = vlaneseq
          %v5067 = vshrl.u32 %v5066, 7
          %v5068 = vsub.s32 0, %v5067
          %v5069 = vrot.slane %v5064, %v5068
          %5071 = vmatprep.subr.mxu0 0.0
          %5072 = vmatpush1.msra.mxu0 %v5063
          %5073 = vmatprep.subr.mxu0 0.0
          %5074 = vmatpush1.msra.mxu0 %v5062
          %5075 = vmatprep.subr.mxu0 0.0
          %5076 = vmatpush1.msra.mxu0 %v5061
          %5077 = vmatprep.subr.mxu0 0.0
          %5078 = vmatpush1.msra.mxu0 %v5060
          %5079 = vmatprep.subr.mxu0 0.0
          %5080 = vmatpush1.msra.mxu0 %v5059
          %5081 = vmatprep.subr.mxu0 0.0
          %5082 = vmatpush1.msra.mxu0 %v5058
          %5083 = vmatprep.subr.mxu0 0.0
          %5084 = vmatpush1.msra.mxu0 %v5057
          %5085 = vmatprep.subr.mxu0 0.0
          %5086 = vmatpush1.msra.mxu0 %v5056
          %5087 = vmatprep.subr.mxu0 0.0
          %5088 = vmatpush1.msra.mxu0 %v5055
          %5089 = vmatprep.subr.mxu0 0.0
          %5090 = vmatpush1.msra.mxu0 %v5054
          %5091 = vmatprep.subr.mxu0 0.0
          %5092 = vmatpush1.msra.mxu0 %v5053
          %5093 = vmatprep.subr.mxu0 0.0
          %5094 = vmatpush1.msra.mxu0 %v5052
          %5095 = vmatprep.subr.mxu0 0.0
          %5096 = vmatpush1.msra.mxu0 %v5051
          %5097 = vmatprep.subr.mxu0 0.0
          %5098 = vmatpush1.msra.mxu0 %v5050
          %5099 = vmatprep.subr.mxu0 0.0
          %5100 = vmatpush1.msra.mxu0 %v5049
          %5101 = vmatprep.subr.mxu0 0.0
          %5102 = vmatpush1.msra.mxu0 %v5048
          %5103 = vmatprep.subr.mxu0 0.0
          %5104 = vmatpush2.msra.mxu0 0.0
          %5105 = vmatprep.subr.mxu0 0.0
          %5106 = vmatpush2.msra.mxu0 0.0
          %5107 = vmatprep.subr.mxu0 0.0
          %5108 = vmatpush2.msra.mxu0 0.0
          %5109 = vmatprep.subr.mxu0 0.0
          %5110 = vmatpush2.msra.mxu0 0.0
          %5111 = vmatprep.subr.mxu0 0.0
          %5112 = vmatpush2.msra.mxu0 0.0
          %5113 = vmatprep.subr.mxu0 0.0
          %5114 = vmatpush2.msra.mxu0 0.0
          %5115 = vmatprep.subr.mxu0 0.0
          %5116 = vmatpush2.msra.mxu0 0.0
          %5117 = vmatprep.subr.mxu0 0.0
          %5118 = vmatpush2.msra.mxu0 0.0
          %5119 = vmatprep.subr.mxu0 0.0
          %5120 = vmatpush2.msra.mxu0 0.0
          %5121 = vmatprep.subr.mxu0 0.0
          %5122 = vmatpush2.msra.mxu0 0.0
          %5123 = vmatprep.subr.mxu0 0.0
          %5124 = vmatpush2.msra.mxu0 0.0
          %5125 = vmatprep.subr.mxu0 0.0
          %5126 = vmatpush2.msra.mxu0 0.0
          %5127 = vmatprep.subr.mxu0 0.0
          %5128 = vmatpush2.msra.mxu0 0.0
          %5129 = vmatprep.subr.mxu0 0.0
          %5130 = vmatpush2.msra.mxu0 0.0
          %5131 = vmatprep.subr.mxu0 0.0
          %5132 = vmatpush2.msra.mxu0 0.0
          %5133 = vmatprep.subr.mxu0 0.0
          %5134 = vmatpush2.msra.mxu0 0.0
          %5135 = vmatprep.mubr.f32.mxu0 0.0
          %5136 = vmatmul.mubr.f32.gmra.mxu0 %v5045
          %v5137 = vpop.f32.mrf.mxu0
          %v5138 = vadd.f32 %v5069, %v5137
          %v5139 = vpop.f32.mrf.mxu0
          %5140 = vdwg.mxu0
          %5141 = vst [vmem:[#allocation16] sm:$0x3] %v5138
        $region168: #{t2vbert_forward.1} parent=127 // pred_fallthru
          _
        // Predicated region
        $region169: #{t2vbert_forward.1} parent=127 // pred_check
          %p5142 = pneg %p684
        $region170: #{t2vbert_forward.1} parent=127 // pred_check_branch
          %5144 = sbr.rel (%p5142) target = $region172
        $region171: #{t2vbert_forward.1} parent=127 // pred_region
          %s5146 = ssub.s32 32, 32
          %5147 = vsyncadd [#allocation6], %s5146
          %s5149 = sshll.u32 [#allocation16], 4
          %s5150 = int_to_ptr.vmem [resolvable:$true] %s5149
          %5152 = dma.vmem_to_hbm [thread:$0]  %s5150, 32, %s27, [#allocation6]
        $region172: #{t2vbert_forward.1} parent=127 // pred_fallthru
          _
        // Predicated region
        $region173: #{t2vbert_forward.1} parent=127 // pred_check
          %p5153 = pneg %p684
        $region174: #{t2vbert_forward.1} parent=127 // pred_check_branch
          %5155 = sbr.rel (%p5153) target = $region176
        $region175: #{t2vbert_forward.1} parent=127 // pred_region
          %5156 = dma.done [#allocation6], 32
        $region176: #{t2vbert_forward.1} parent=127 // pred_fallthru
          _
      $region128: #{t2vbert_forward.1} parent=5 // pred_fallthru
        _
      %p5157 = scmp.le.s32.totalorder 2, %s39
      // Predicated region
      $region177: #{t2vbert_forward.1} parent=5 // pred_check
        %p5158 = pneg %p5157
      $region178: #{t2vbert_forward.1} parent=5 // pred_check_branch
        %5160 = sbr.rel (%p5158) target = $region180
      $region179: #{t2vbert_forward.1} parent=5 // pred_region
        %s5161 = ssub.s32 %s39, 2
      $region180: #{t2vbert_forward.1} parent=5 // pred_fallthru
        _
    $region6: #{t2vbert_forward.1} parent=1 // loop_footer
      %s43 = sadd.s32 1, %s39
    $region7: #{t2vbert_forward.1} parent=1 // loop_footer_branch
      %38 = sbr.rel target = $region3
    $region8: #{t2vbert_forward.1} parent=1 // loop_exit
      _
    %5162 = vsyncpa [#allocation5], 1
    %s5163 = scalar_lea.sflag [#allocation5], 1
    %5164 = vsyncpa %s5163, 1
    %5165 = vsyncpa [#allocation8], 1
    %5166 = vsyncpa [#allocation11], 1
    %5167 = vsyncpa [#allocation6], 1
    %s5168 = scalar_lea.sflag [#allocation6], 1
    %5169 = vsyncpa %s5168, 1

</llo_original>
